<compile_context>
chip_gen: v5e
topology: v5e:2x2
jax: 0.10.0
libtpu: 0.0.40
codegen_flags: <defaults>
</compile_context>

<pallas_src>
import jax
import jax.numpy as jnp
from jax.experimental import pallas as pl
from jax.experimental.pallas import tpu as pltpu  # noqa: F401  (TPU backend assumed)

# ------------------------- config (small synthetic sizes) -------------------
B, S, D = 2, 8, 32          # batch, seq_len, embed_dim
HS = 16                     # bilstm2 hidden_size (per direction)
LIN = 32                    # linear_size
LBL = 4                     # lbl_size
VOCAB = 100                 # vocab_size
PRE_VOCAB = 120             # pre-trained embedding vocab
NEG_INF = -1e9
NB = 2 * B                  # number of sequence streams (sent1 + sent2)


# ----------------------------- helpers ---------------------------------------
def _softmax_last(a):
    m = jnp.max(a, axis=-1, keepdims=True)
    e = jnp.exp(a - m)
    return e / jnp.sum(e, axis=-1, keepdims=True)


def _mdot(a, b):
    # MXU matmul: bf16 operands, f32 accumulation.
    return jnp.dot(a.astype(jnp.bfloat16), b.astype(jnp.bfloat16),
                   preferred_element_type=jnp.float32)


# ----------------------------- fused kernel -----------------------------------
def fused_matcher_kernel(x_ref, madd_ref, m1c_ref, valid_ref,
                         encw_ref, encb_ref,
                         wif_ref, whf_ref, bf_ref,
                         wib_ref, whb_ref, bb_ref,
                         w1_ref, b1_ref, w2_ref, b2_ref, w3_ref, b3_ref,
                         o_ref):
    f32 = jnp.float32
    bf16 = jnp.bfloat16

    # ---------------- encoder (both sentences batched: 2B sequences) ----------
    # TODO(synk): RTransformer (local-RNN + multi-head-attention stack) is not
    # defined in the provided source; substituted with one masked self-attention
    # + tanh FFN block of matching output dim (embed_dim).
    x = x_ref[...]                       # (2B, S, D) f32
    madd = madd_ref[...]                 # (2B, 1, S) additive key-pad mask
    xb = x.astype(bf16)
    scale = 1.0 / (D ** 0.5)
    att = jnp.einsum('bsd,btd->bst', xb, xb,
                     preferred_element_type=f32) * scale + madd
    w = _softmax_last(att)
    ctx = jnp.einsum('bst,btd->bsd', w.astype(bf16), xb,
                     preferred_element_type=f32)
    h = x + ctx                          # (2B, S, D)
    h_flat = h.reshape(NB * S, D)
    y_flat = h_flat + jnp.tanh(_mdot(h_flat, encw_ref[...]) + encb_ref[...])
    enc = y_flat.reshape(NB, S, D)

    # ---------------- soft-align attention ------------------------------------
    s1 = enc[:B].astype(bf16)            # (B, S1, D)
    s2 = enc[B:].astype(bf16)            # (B, S2, D)
    att12 = jnp.einsum('bsd,btd->bst', s1, s2,
                       preferred_element_type=f32)        # (B, S1, S2)
    w1a = _softmax_last(att12 + madd[B:])                 # mask sent2 keys
    a1 = jnp.einsum('bst,btd->bsd', w1a.astype(bf16), s2,
                    preferred_element_type=f32)           # (B, S1, D)
    # weight2 = softmax over the S1 axis (no explicit transpose of att)
    att21 = att12 + m1c_ref[...]                          # + (B, S1, 1)
    mx = jnp.max(att21, axis=1, keepdims=True)
    ex = jnp.exp(att21 - mx)
    w2a = ex / jnp.sum(ex, axis=1, keepdims=True)
    a2 = jnp.einsum('bst,bsd->btd', w2a.astype(bf16), s1,
                    preferred_element_type=f32)           # (B, S2, D)

    # ---------------- combine: cat(enc, align, sub, mul) ----------------------
    align_flat = jnp.concatenate([a1, a2], axis=0).reshape(NB * S, D)
    comb = jnp.concatenate([y_flat, align_flat,
                            y_flat - align_flat,
                            y_flat * align_flat], axis=-1)  # (NB*S, 4D)

    # ---------------- masked BiLSTM (sentences + directions batched) ----------
    # TODO(synk): the repo's custom LSTM class is not provided; a standard masked
    # LSTM (gate order i,f,g,o, single bias) is used, pad steps carry state.
    pre_f = _mdot(comb, wif_ref[...]) + bf_ref[...]       # (NB*S, 4HS)
    pre_b = _mdot(comb, wib_ref[...]) + bb_ref[...]       # (NB*S, 4HS)
    whf = whf_ref[...]
    whb = whb_ref[...]
    valid = valid_ref[...]                                # (NB, S) 1=valid

    def cell(g, c_prev):
        i_g = jax.nn.sigmoid(g[:, 0 * HS:1 * HS])
        f_g = jax.nn.sigmoid(g[:, 1 * HS:2 * HS])
        c_g = jnp.tanh(g[:, 2 * HS:3 * HS])
        o_g = jax.nn.sigmoid(g[:, 3 * HS:4 * HS])
        c_new = f_g * c_prev + i_g * c_g
        return o_g * jnp.tanh(c_new), c_new

    def rows_at(pre, t):   # rows of all NB streams at timestep t -> (NB, 4HS)
        return jnp.concatenate(
            [pre[b * S + t:b * S + t + 1] for b in range(NB)], axis=0)

    h_f = jnp.zeros((NB, HS), f32)
    c_f = jnp.zeros((NB, HS), f32)
    h_b = jnp.zeros((NB, HS), f32)
    c_b = jnp.zeros((NB, HS), f32)
    sum_f = jnp.zeros((NB, HS), f32)
    sum_b = jnp.zeros((NB, HS), f32)
    max_f = jnp.full((NB, HS), -jnp.inf, f32)
    max_b = jnp.full((NB, HS), -jnp.inf, f32)

    for t in range(S):                    # statically unrolled recurrence
        rt = S - 1 - t
        gf = rows_at(pre_f, t) + jnp.dot(h_f, whf, preferred_element_type=f32)
        gb = rows_at(pre_b, rt) + jnp.dot(h_b, whb, preferred_element_type=f32)
        hf_new, cf_new = cell(gf, c_f)
        hb_new, cb_new = cell(gb, c_b)
        mf = valid[:, t:t + 1]            # (NB, 1)
        mb = valid[:, rt:rt + 1]
        h_f = mf * hf_new + (1.0 - mf) * h_f
        c_f = mf * cf_new + (1.0 - mf) * c_f
        h_b = mb * hb_new + (1.0 - mb) * h_b
        c_b = mb * cb_new + (1.0 - mb) * c_b
        # fused avg/max pooling accumulation (order-independent over time)
        sum_f = sum_f + h_f
        sum_b = sum_b + h_b
        max_f = jnp.maximum(max_f, h_f)
        max_b = jnp.maximum(max_b, h_b)

    # ---------------- pooling + FFN --------------------------------------------
    inv_s = 1.0 / S
    pooled = jnp.concatenate([sum_f * inv_s, sum_b * inv_s, max_f, max_b],
                             axis=-1)                      # (NB, 4HS)
    feat = jnp.concatenate([pooled[:B], pooled[B:]], axis=-1)   # (B, 8HS)
    hh = jnp.tanh(_mdot(feat, w1_ref[...]) + b1_ref[...])
    hh = jnp.tanh(_mdot(hh, w2_ref[...]) + b2_ref[...])
    o_ref[...] = (_mdot(hh, w3_ref[...]) + b3_ref[...]).astype(o_ref.dtype)


# ------------------------------ wrapper ----------------------------------------
def _fused_call(x_all, madd_all, m1_col, valid_all, params):
    wif, whf, bf, wib, whb, bb = params["lstm"]
    w1, b1, w2, b2, w3, b3 = params["ffn"]
    return pl.pallas_call(
        fused_matcher_kernel,
        out_shape=jax.ShapeDtypeStruct((B, LBL), jnp.float32),
    )(x_all, madd_all, m1_col, valid_all,
      params["enc_w"], params["enc_b"],
      wif, whf, bf, wib, whb, bb,
      w1, b1, w2, b2, w3, b3)


@jax.jit
def sent_matcher_forward(params, sent1, sent2, ext1, ext2):
    pad1 = sent1 == 0
    pad2 = sent2 == 0
    m1_add = jnp.where(pad1, NEG_INF, 0.0).astype(jnp.float32)[:, None, :]  # (B,1,S)
    m2_add = jnp.where(pad2, NEG_INF, 0.0).astype(jnp.float32)[:, None, :]
    madd_all = jnp.concatenate([m1_add, m2_add], axis=0)                    # (2B,1,S)
    m1_col = jnp.where(pad1, NEG_INF, 0.0).astype(jnp.float32)[:, :, None]  # (B,S,1)
    valid_all = jnp.concatenate([~pad1, ~pad2], axis=0).astype(jnp.float32) # (2B,S)

    # Embedding lookup (+ embed_drop/Dropout identity in eval) kept in XLA glue.
    # TODO(synk): in-kernel gather would need scalar-prefetch ids + per-row DMA;
    # tables are tiny so the XLA gather is kept outside the fused kernel.
    e1 = params["word_embed"][sent1] + params["pre_embed"][ext1]
    e2 = params["word_embed"][sent2] + params["pre_embed"][ext2]
    x_all = jnp.concatenate([e1, e2], axis=0)                               # (2B,S,D)

    return _fused_call(x_all, madd_all, m1_col, valid_all, params)


# ------------------------------ params ----------------------------------------
def init_params(key):
    ks = jax.random.split(key, 12)

    def xavier(k, shape):
        lim = (6.0 / (shape[0] + shape[-1])) ** 0.5
        return jax.random.uniform(k, shape, jnp.float32, -lim, lim)

    word_embed = xavier(ks[0], (VOCAB, D)).at[0].set(0.0)          # padding_idx=0
    pre_embed = (0.1 * jax.random.normal(ks[1], (PRE_VOCAB, D),
                                         jnp.float32)).at[0].set(0.0)
    enc_w = xavier(ks[2], (D, D))
    enc_b = jnp.zeros((1, D), jnp.float32)

    Din = 4 * D
    lstm = (xavier(ks[3], (Din, 4 * HS)), xavier(ks[4], (HS, 4 * HS)),
            jnp.zeros((1, 4 * HS), jnp.float32),
            xavier(ks[5], (Din, 4 * HS)), xavier(ks[6], (HS, 4 * HS)),
            jnp.zeros((1, 4 * HS), jnp.float32))

    ffn = (xavier(ks[7], (8 * HS, LIN)), jnp.zeros((1, LIN), jnp.float32),
           xavier(ks[8], (LIN, LIN)), jnp.zeros((1, LIN), jnp.float32),
           xavier(ks[9], (LIN, LBL)), jnp.zeros((1, LBL), jnp.float32))

    return dict(word_embed=word_embed, pre_embed=pre_embed,
                enc_w=enc_w, enc_b=enc_b, lstm=lstm, ffn=ffn)


if __name__ == "__main__":
    key = jax.random.PRNGKey(0)
    pkey, ikey = jax.random.split(key)
    params = init_params(pkey)

    k1, k2, k3, k4 = jax.random.split(ikey, 4)
    sent1 = jax.random.randint(k1, (B, S), 1, VOCAB, dtype=jnp.int32)
    sent2 = jax.random.randint(k2, (B, S), 1, VOCAB, dtype=jnp.int32)
    sent1 = sent1.at[:, S - 2:].set(0)          # trailing pads
    sent2 = sent2.at[:, S - 3:].set(0)
    ext1 = jnp.where(sent1 == 0, 0,
                     jax.random.randint(k3, (B, S), 1, PRE_VOCAB, dtype=jnp.int32))
    ext2 = jnp.where(sent2 == 0, 0,
                     jax.random.randint(k4, (B, S), 1, PRE_VOCAB, dtype=jnp.int32))

    out = sent_matcher_forward(params, sent1, sent2, ext1, ext2)
    out = jax.block_until_ready(out)
    assert out.shape == (B, LBL) and jnp.all(jnp.isfinite(out))
    print("KERNEL_OK")
</pallas_src>

<mosaic_0001>
module attributes {stable_mosaic.version = 11 : i64} {
  func.func @fused_matcher_kernel(%arg0: memref<4x8x32xf32, #tpu.memory_space<vmem>>, %arg1: memref<4x1x8xf32, #tpu.memory_space<vmem>>, %arg2: memref<2x8x1xf32, #tpu.memory_space<vmem>>, %arg3: memref<4x8xf32, #tpu.memory_space<vmem>>, %arg4: memref<32x32xf32, #tpu.memory_space<vmem>>, %arg5: memref<1x32xf32, #tpu.memory_space<vmem>>, %arg6: memref<128x64xf32, #tpu.memory_space<vmem>>, %arg7: memref<16x64xf32, #tpu.memory_space<vmem>>, %arg8: memref<1x64xf32, #tpu.memory_space<vmem>>, %arg9: memref<128x64xf32, #tpu.memory_space<vmem>>, %arg10: memref<16x64xf32, #tpu.memory_space<vmem>>, %arg11: memref<1x64xf32, #tpu.memory_space<vmem>>, %arg12: memref<128x32xf32, #tpu.memory_space<vmem>>, %arg13: memref<1x32xf32, #tpu.memory_space<vmem>>, %arg14: memref<32x32xf32, #tpu.memory_space<vmem>>, %arg15: memref<1x32xf32, #tpu.memory_space<vmem>>, %arg16: memref<32x4xf32, #tpu.memory_space<vmem>>, %arg17: memref<1x4xf32, #tpu.memory_space<vmem>>, %arg18: memref<2x4xf32, #tpu.memory_space<vmem>>) attributes {dimension_semantics = [], scalar_prefetch = 0 : i64, scratch_operands = 0 : i64, tpu.core_type = #tpu.core_type<tc>} {
    %c0 = arith.constant 0 : index
    %c0_0 = arith.constant 0 : index
    %c0_1 = arith.constant 0 : index
    %0 = vector.load %arg0[%c0, %c0_0, %c0_1] : memref<4x8x32xf32, #tpu.memory_space<vmem>>, vector<4x8x32xf32>
    %c0_2 = arith.constant 0 : index
    %c0_3 = arith.constant 0 : index
    %c0_4 = arith.constant 0 : index
    %1 = vector.load %arg1[%c0_2, %c0_3, %c0_4] : memref<4x1x8xf32, #tpu.memory_space<vmem>>, vector<4x1x8xf32>
    %2 = arith.truncf %0 : vector<4x8x32xf32> to vector<4x8x32xbf16>
    "tpu.trace_start"() <{level = 10 : i32, message = "bsd,btd->bst"}> : () -> ()
    %cst = arith.constant dense<0.000000e+00> : vector<4x8x8xf32>
    %3 = tpu.matmul %2, %2, %cst {dimension_numbers = #tpu.dot_dimension_numbers<[2], [2], [1], [1], [0, 0, 0, 1, 1, 1], [0], [0]>} : vector<4x8x32xbf16>, vector<4x8x32xbf16>, vector<4x8x8xf32> -> vector<4x8x8xf32>
    "tpu.trace_stop"() : () -> ()
    %cst_5 = arith.constant 0.176776692 : f32
    %4 = vector.broadcast %cst_5 : f32 to vector<4x8x8xf32>
    %5 = arith.mulf %3, %4 : vector<4x8x8xf32>
    %6 = vector.broadcast %1 : vector<4x1x8xf32> to vector<4x8x8xf32>
    %7 = arith.addf %5, %6 : vector<4x8x8xf32>
    %cst_6 = arith.constant dense<0xFF800000> : vector<4x8xf32>
    %8 = vector.multi_reduction <maximumf>, %7, %cst_6 [2] : vector<4x8x8xf32> to vector<4x8xf32>
    %9 = vector.shape_cast %8 : vector<4x8xf32> to vector<4x8x1xf32>
    %10 = vector.broadcast %9 : vector<4x8x1xf32> to vector<4x8x8xf32>
    %11 = arith.subf %7, %10 : vector<4x8x8xf32>
    %12 = math.exp %11 : vector<4x8x8xf32>
    %cst_7 = arith.constant dense<0.000000e+00> : vector<4x8xf32>
    %13 = vector.multi_reduction <add>, %12, %cst_7 [2] : vector<4x8x8xf32> to vector<4x8xf32>
    %14 = vector.shape_cast %13 : vector<4x8xf32> to vector<4x8x1xf32>
    %15 = vector.broadcast %14 : vector<4x8x1xf32> to vector<4x8x8xf32>
    %16 = arith.divf %12, %15 : vector<4x8x8xf32>
    %17 = arith.truncf %16 : vector<4x8x8xf32> to vector<4x8x8xbf16>
    "tpu.trace_start"() <{level = 10 : i32, message = "bst,btd->bsd"}> : () -> ()
    %cst_8 = arith.constant dense<0.000000e+00> : vector<4x8x32xf32>
    %18 = tpu.matmul %17, %2, %cst_8 {dimension_numbers = #tpu.dot_dimension_numbers<[2], [1], [1], [2], [0, 0, 0, 1, 1, 2], [0], [0]>} : vector<4x8x8xbf16>, vector<4x8x32xbf16>, vector<4x8x32xf32> -> vector<4x8x32xf32>
    "tpu.trace_stop"() : () -> ()
    %19 = arith.addf %0, %18 : vector<4x8x32xf32>
    %20 = vector.shape_cast %19 : vector<4x8x32xf32> to vector<32x32xf32>
    %c0_9 = arith.constant 0 : index
    %c0_10 = arith.constant 0 : index
    %21 = vector.load %arg4[%c0_9, %c0_10] : memref<32x32xf32, #tpu.memory_space<vmem>>, vector<32x32xf32>
    %22 = arith.truncf %20 : vector<32x32xf32> to vector<32x32xbf16>
    %23 = arith.truncf %21 : vector<32x32xf32> to vector<32x32xbf16>
    %cst_11 = arith.constant dense<0.000000e+00> : vector<32x32xf32>
    %24 = tpu.matmul %22, %23, %cst_11 {dimension_numbers = #tpu.dot_dimension_numbers<[1], [0], [0], [1], [0, 0, 1, 1], [], []>} : vector<32x32xbf16>, vector<32x32xbf16>, vector<32x32xf32> -> vector<32x32xf32>
    %c0_12 = arith.constant 0 : index
    %c0_13 = arith.constant 0 : index
    %25 = vector.load %arg5[%c0_12, %c0_13] : memref<1x32xf32, #tpu.memory_space<vmem>>, vector<1x32xf32>
    %26 = vector.broadcast %25 : vector<1x32xf32> to vector<32x32xf32>
    %27 = arith.addf %24, %26 : vector<32x32xf32>
    %28 = math.tanh %27 : vector<32x32xf32>
    %29 = arith.addf %20, %28 : vector<32x32xf32>
    %30 = vector.shape_cast %29 : vector<32x32xf32> to vector<4x8x32xf32>
    %31 = vector.extract_strided_slice %30 {offsets = [0, 0, 0], sizes = [2, 8, 32], strides = [1, 1, 1]} : vector<4x8x32xf32> to vector<2x8x32xf32>
    %32 = arith.truncf %31 : vector<2x8x32xf32> to vector<2x8x32xbf16>
    %33 = vector.extract_strided_slice %30 {offsets = [2, 0, 0], sizes = [2, 8, 32], strides = [1, 1, 1]} : vector<4x8x32xf32> to vector<2x8x32xf32>
    %34 = arith.truncf %33 : vector<2x8x32xf32> to vector<2x8x32xbf16>
    "tpu.trace_start"() <{level = 10 : i32, message = "bsd,btd->bst"}> : () -> ()
    %cst_14 = arith.constant dense<0.000000e+00> : vector<2x8x8xf32>
    %35 = tpu.matmul %32, %34, %cst_14 {dimension_numbers = #tpu.dot_dimension_numbers<[2], [2], [1], [1], [0, 0, 0, 1, 1, 1], [0], [0]>} : vector<2x8x32xbf16>, vector<2x8x32xbf16>, vector<2x8x8xf32> -> vector<2x8x8xf32>
    "tpu.trace_stop"() : () -> ()
    %36 = vector.extract_strided_slice %1 {offsets = [2, 0, 0], sizes = [2, 1, 8], strides = [1, 1, 1]} : vector<4x1x8xf32> to vector<2x1x8xf32>
    %37 = vector.broadcast %36 : vector<2x1x8xf32> to vector<2x8x8xf32>
    %38 = arith.addf %35, %37 : vector<2x8x8xf32>
    %cst_15 = arith.constant dense<0xFF800000> : vector<2x8xf32>
    %39 = vector.multi_reduction <maximumf>, %38, %cst_15 [2] : vector<2x8x8xf32> to vector<2x8xf32>
    %40 = vector.shape_cast %39 : vector<2x8xf32> to vector<2x8x1xf32>
    %41 = vector.broadcast %40 : vector<2x8x1xf32> to vector<2x8x8xf32>
    %42 = arith.subf %38, %41 : vector<2x8x8xf32>
    %43 = math.exp %42 : vector<2x8x8xf32>
    %cst_16 = arith.constant dense<0.000000e+00> : vector<2x8xf32>
    %44 = vector.multi_reduction <add>, %43, %cst_16 [2] : vector<2x8x8xf32> to vector<2x8xf32>
    %45 = vector.shape_cast %44 : vector<2x8xf32> to vector<2x8x1xf32>
    %46 = vector.broadcast %45 : vector<2x8x1xf32> to vector<2x8x8xf32>
    %47 = arith.divf %43, %46 : vector<2x8x8xf32>
    %48 = arith.truncf %47 : vector<2x8x8xf32> to vector<2x8x8xbf16>
    "tpu.trace_start"() <{level = 10 : i32, message = "bst,btd->bsd"}> : () -> ()
    %cst_17 = arith.constant dense<0.000000e+00> : vector<2x8x32xf32>
    %49 = tpu.matmul %48, %34, %cst_17 {dimension_numbers = #tpu.dot_dimension_numbers<[2], [1], [1], [2], [0, 0, 0, 1, 1, 2], [0], [0]>} : vector<2x8x8xbf16>, vector<2x8x32xbf16>, vector<2x8x32xf32> -> vector<2x8x32xf32>
    "tpu.trace_stop"() : () -> ()
    %c0_18 = arith.constant 0 : index
    %c0_19 = arith.constant 0 : index
    %c0_20 = arith.constant 0 : index
    %50 = vector.load %arg2[%c0_18, %c0_19, %c0_20] : memref<2x8x1xf32, #tpu.memory_space<vmem>>, vector<2x8x1xf32>
    %51 = vector.broadcast %50 : vector<2x8x1xf32> to vector<2x8x8xf32>
    %52 = arith.addf %35, %51 : vector<2x8x8xf32>
    %cst_21 = arith.constant dense<0xFF800000> : vector<2x8xf32>
    %53 = vector.multi_reduction <maximumf>, %52, %cst_21 [1] : vector<2x8x8xf32> to vector<2x8xf32>
    %54 = vector.shape_cast %53 : vector<2x8xf32> to vector<2x1x8xf32>
    %55 = vector.broadcast %54 : vector<2x1x8xf32> to vector<2x8x8xf32>
    %56 = arith.subf %52, %55 : vector<2x8x8xf32>
    %57 = math.exp %56 : vector<2x8x8xf32>
    %cst_22 = arith.constant dense<0.000000e+00> : vector<2x8xf32>
    %58 = vector.multi_reduction <add>, %57, %cst_22 [1] : vector<2x8x8xf32> to vector<2x8xf32>
    %59 = vector.shape_cast %58 : vector<2x8xf32> to vector<2x1x8xf32>
    %60 = vector.broadcast %59 : vector<2x1x8xf32> to vector<2x8x8xf32>
    %61 = arith.divf %57, %60 : vector<2x8x8xf32>
    %62 = arith.truncf %61 : vector<2x8x8xf32> to vector<2x8x8xbf16>
    "tpu.trace_start"() <{level = 10 : i32, message = "bst,bsd->btd"}> : () -> ()
    %cst_23 = arith.constant dense<0.000000e+00> : vector<2x8x32xf32>
    %63 = tpu.matmul %62, %32, %cst_23 {dimension_numbers = #tpu.dot_dimension_numbers<[1], [1], [2], [2], [0, 0, 0, 2, 1, 2], [0], [0]>} : vector<2x8x8xbf16>, vector<2x8x32xbf16>, vector<2x8x32xf32> -> vector<2x8x32xf32>
    "tpu.trace_stop"() : () -> ()
    %64 = tpu.concatenate %49, %63 in 0 : vector<2x8x32xf32>, vector<2x8x32xf32> -> vector<4x8x32xf32>
    %65 = vector.shape_cast %64 : vector<4x8x32xf32> to vector<32x32xf32>
    %66 = arith.subf %29, %65 : vector<32x32xf32>
    %67 = arith.mulf %29, %65 : vector<32x32xf32>
    %68 = tpu.concatenate %29, %65, %66, %67 in 1 : vector<32x32xf32>, vector<32x32xf32>, vector<32x32xf32>, vector<32x32xf32> -> vector<32x128xf32>
    %c0_24 = arith.constant 0 : index
    %c0_25 = arith.constant 0 : index
    %69 = vector.load %arg6[%c0_24, %c0_25] : memref<128x64xf32, #tpu.memory_space<vmem>>, vector<128x64xf32>
    %70 = arith.truncf %68 : vector<32x128xf32> to vector<32x128xbf16>
    %71 = arith.truncf %69 : vector<128x64xf32> to vector<128x64xbf16>
    %cst_26 = arith.constant dense<0.000000e+00> : vector<32x64xf32>
    %72 = tpu.matmul %70, %71, %cst_26 {dimension_numbers = #tpu.dot_dimension_numbers<[1], [0], [0], [1], [0, 0, 1, 1], [], []>} : vector<32x128xbf16>, vector<128x64xbf16>, vector<32x64xf32> -> vector<32x64xf32>
    %c0_27 = arith.constant 0 : index
    %c0_28 = arith.constant 0 : index
    %73 = vector.load %arg8[%c0_27, %c0_28] : memref<1x64xf32, #tpu.memory_space<vmem>>, vector<1x64xf32>
    %74 = vector.broadcast %73 : vector<1x64xf32> to vector<32x64xf32>
    %75 = arith.addf %72, %74 : vector<32x64xf32>
    %c0_29 = arith.constant 0 : index
    %c0_30 = arith.constant 0 : index
    %76 = vector.load %arg9[%c0_29, %c0_30] : memref<128x64xf32, #tpu.memory_space<vmem>>, vector<128x64xf32>
    %77 = arith.truncf %68 : vector<32x128xf32> to vector<32x128xbf16>
    %78 = arith.truncf %76 : vector<128x64xf32> to vector<128x64xbf16>
    %cst_31 = arith.constant dense<0.000000e+00> : vector<32x64xf32>
    %79 = tpu.matmul %77, %78, %cst_31 {dimension_numbers = #tpu.dot_dimension_numbers<[1], [0], [0], [1], [0, 0, 1, 1], [], []>} : vector<32x128xbf16>, vector<128x64xbf16>, vector<32x64xf32> -> vector<32x64xf32>
    %c0_32 = arith.constant 0 : index
    %c0_33 = arith.constant 0 : index
    %80 = vector.load %arg11[%c0_32, %c0_33] : memref<1x64xf32, #tpu.memory_space<vmem>>, vector<1x64xf32>
    %81 = vector.broadcast %80 : vector<1x64xf32> to vector<32x64xf32>
    %82 = arith.addf %79, %81 : vector<32x64xf32>
    %c0_34 = arith.constant 0 : index
    %c0_35 = arith.constant 0 : index
    %83 = vector.load %arg7[%c0_34, %c0_35] : memref<16x64xf32, #tpu.memory_space<vmem>>, vector<16x64xf32>
    %c0_36 = arith.constant 0 : index
    %c0_37 = arith.constant 0 : index
    %84 = vector.load %arg10[%c0_36, %c0_37] : memref<16x64xf32, #tpu.memory_space<vmem>>, vector<16x64xf32>
    %c0_38 = arith.constant 0 : index
    %c0_39 = arith.constant 0 : index
    %85 = vector.load %arg3[%c0_38, %c0_39] : memref<4x8xf32, #tpu.memory_space<vmem>>, vector<4x8xf32>
    %cst_40 = arith.constant 0.000000e+00 : f32
    %86 = vector.broadcast %cst_40 : f32 to vector<4x16xf32>
    %cst_41 = arith.constant 0.000000e+00 : f32
    %87 = vector.broadcast %cst_41 : f32 to vector<4x16xf32>
    %cst_42 = arith.constant 0.000000e+00 : f32
    %88 = vector.broadcast %cst_42 : f32 to vector<4x16xf32>
    %cst_43 = arith.constant 0.000000e+00 : f32
    %89 = vector.broadcast %cst_43 : f32 to vector<4x16xf32>
    %cst_44 = arith.constant 0.000000e+00 : f32
    %90 = vector.broadcast %cst_44 : f32 to vector<4x16xf32>
    %cst_45 = arith.constant 0.000000e+00 : f32
    %91 = vector.broadcast %cst_45 : f32 to vector<4x16xf32>
    %cst_46 = arith.constant 0xFF800000 : f32
    %92 = vector.broadcast %cst_46 : f32 to vector<4x16xf32>
    %cst_47 = arith.constant 0xFF800000 : f32
    %93 = vector.broadcast %cst_47 : f32 to vector<4x16xf32>
    %94 = vector.extract_strided_slice %75 {offsets = [0, 0], sizes = [1, 64], strides = [1, 1]} : vector<32x64xf32> to vector<1x64xf32>
    %95 = vector.extract_strided_slice %75 {offsets = [8, 0], sizes = [1, 64], strides = [1, 1]} : vector<32x64xf32> to vector<1x64xf32>
    %96 = vector.extract_strided_slice %75 {offsets = [16, 0], sizes = [1, 64], strides = [1, 1]} : vector<32x64xf32> to vector<1x64xf32>
    %97 = vector.extract_strided_slice %75 {offsets = [24, 0], sizes = [1, 64], strides = [1, 1]} : vector<32x64xf32> to vector<1x64xf32>
    %98 = tpu.concatenate %94, %95, %96, %97 in 0 : vector<1x64xf32>, vector<1x64xf32>, vector<1x64xf32>, vector<1x64xf32> -> vector<4x64xf32>
    %cst_48 = arith.constant dense<0.000000e+00> : vector<4x64xf32>
    %99 = tpu.matmul %86, %83, %cst_48 {dimension_numbers = #tpu.dot_dimension_numbers<[1], [0], [0], [1], [0, 0, 1, 1], [], []>} : vector<4x16xf32>, vector<16x64xf32>, vector<4x64xf32> -> vector<4x64xf32>
    %100 = arith.addf %98, %99 : vector<4x64xf32>
    %101 = vector.extract_strided_slice %82 {offsets = [7, 0], sizes = [1, 64], strides = [1, 1]} : vector<32x64xf32> to vector<1x64xf32>
    %102 = vector.extract_strided_slice %82 {offsets = [15, 0], sizes = [1, 64], strides = [1, 1]} : vector<32x64xf32> to vector<1x64xf32>
    %103 = vector.extract_strided_slice %82 {offsets = [23, 0], sizes = [1, 64], strides = [1, 1]} : vector<32x64xf32> to vector<1x64xf32>
    %104 = vector.extract_strided_slice %82 {offsets = [31, 0], sizes = [1, 64], strides = [1, 1]} : vector<32x64xf32> to vector<1x64xf32>
    %105 = tpu.concatenate %101, %102, %103, %104 in 0 : vector<1x64xf32>, vector<1x64xf32>, vector<1x64xf32>, vector<1x64xf32> -> vector<4x64xf32>
    %cst_49 = arith.constant dense<0.000000e+00> : vector<4x64xf32>
    %106 = tpu.matmul %88, %84, %cst_49 {dimension_numbers = #tpu.dot_dimension_numbers<[1], [0], [0], [1], [0, 0, 1, 1], [], []>} : vector<4x16xf32>, vector<16x64xf32>, vector<4x64xf32> -> vector<4x64xf32>
    %107 = arith.addf %105, %106 : vector<4x64xf32>
    %108 = vector.extract_strided_slice %100 {offsets = [0, 0], sizes = [4, 16], strides = [1, 1]} : vector<4x64xf32> to vector<4x16xf32>
    %109 = arith.negf %108 : vector<4x16xf32>
    %110 = math.exp %109 : vector<4x16xf32>
    %cst_50 = arith.constant 1.000000e+00 : f32
    %111 = vector.broadcast %cst_50 : f32 to vector<4x16xf32>
    %112 = arith.addf %111, %110 : vector<4x16xf32>
    %113 = arith.divf %111, %112 : vector<4x16xf32>
    %114 = vector.extract_strided_slice %100 {offsets = [0, 16], sizes = [4, 16], strides = [1, 1]} : vector<4x64xf32> to vector<4x16xf32>
    %115 = arith.negf %114 : vector<4x16xf32>
    %116 = math.exp %115 : vector<4x16xf32>
    %cst_51 = arith.constant 1.000000e+00 : f32
    %117 = vector.broadcast %cst_51 : f32 to vector<4x16xf32>
    %118 = arith.addf %117, %116 : vector<4x16xf32>
    %119 = arith.divf %117, %118 : vector<4x16xf32>
    %120 = vector.extract_strided_slice %100 {offsets = [0, 32], sizes = [4, 16], strides = [1, 1]} : vector<4x64xf32> to vector<4x16xf32>
    %121 = math.tanh %120 : vector<4x16xf32>
    %122 = vector.extract_strided_slice %100 {offsets = [0, 48], sizes = [4, 16], strides = [1, 1]} : vector<4x64xf32> to vector<4x16xf32>
    %123 = arith.negf %122 : vector<4x16xf32>
    %124 = math.exp %123 : vector<4x16xf32>
    %cst_52 = arith.constant 1.000000e+00 : f32
    %125 = vector.broadcast %cst_52 : f32 to vector<4x16xf32>
    %126 = arith.addf %125, %124 : vector<4x16xf32>
    %127 = arith.divf %125, %126 : vector<4x16xf32>
    %128 = arith.mulf %119, %87 : vector<4x16xf32>
    %129 = arith.mulf %113, %121 : vector<4x16xf32>
    %130 = arith.addf %128, %129 : vector<4x16xf32>
    %131 = math.tanh %130 : vector<4x16xf32>
    %132 = arith.mulf %127, %131 : vector<4x16xf32>
    %133 = vector.extract_strided_slice %107 {offsets = [0, 0], sizes = [4, 16], strides = [1, 1]} : vector<4x64xf32> to vector<4x16xf32>
    %134 = arith.negf %133 : vector<4x16xf32>
    %135 = math.exp %134 : vector<4x16xf32>
    %cst_53 = arith.constant 1.000000e+00 : f32
    %136 = vector.broadcast %cst_53 : f32 to vector<4x16xf32>
    %137 = arith.addf %136, %135 : vector<4x16xf32>
    %138 = arith.divf %136, %137 : vector<4x16xf32>
    %139 = vector.extract_strided_slice %107 {offsets = [0, 16], sizes = [4, 16], strides = [1, 1]} : vector<4x64xf32> to vector<4x16xf32>
    %140 = arith.negf %139 : vector<4x16xf32>
    %141 = math.exp %140 : vector<4x16xf32>
    %cst_54 = arith.constant 1.000000e+00 : f32
    %142 = vector.broadcast %cst_54 : f32 to vector<4x16xf32>
    %143 = arith.addf %142, %141 : vector<4x16xf32>
    %144 = arith.divf %142, %143 : vector<4x16xf32>
    %145 = vector.extract_strided_slice %107 {offsets = [0, 32], sizes = [4, 16], strides = [1, 1]} : vector<4x64xf32> to vector<4x16xf32>
    %146 = math.tanh %145 : vector<4x16xf32>
    %147 = vector.extract_strided_slice %107 {offsets = [0, 48], sizes = [4, 16], strides = [1, 1]} : vector<4x64xf32> to vector<4x16xf32>
    %148 = arith.negf %147 : vector<4x16xf32>
    %149 = math.exp %148 : vector<4x16xf32>
    %cst_55 = arith.constant 1.000000e+00 : f32
    %150 = vector.broadcast %cst_55 : f32 to vector<4x16xf32>
    %151 = arith.addf %150, %149 : vector<4x16xf32>
    %152 = arith.divf %150, %151 : vector<4x16xf32>
    %153 = arith.mulf %144, %89 : vector<4x16xf32>
    %154 = arith.mulf %138, %146 : vector<4x16xf32>
    %155 = arith.addf %153, %154 : vector<4x16xf32>
    %156 = math.tanh %155 : vector<4x16xf32>
    %157 = arith.mulf %152, %156 : vector<4x16xf32>
    %158 = vector.extract_strided_slice %85 {offsets = [0, 0], sizes = [4, 1], strides = [1, 1]} : vector<4x8xf32> to vector<4x1xf32>
    %159 = vector.extract_strided_slice %85 {offsets = [0, 7], sizes = [4, 1], strides = [1, 1]} : vector<4x8xf32> to vector<4x1xf32>
    %160 = vector.broadcast %158 : vector<4x1xf32> to vector<4x16xf32>
    %161 = arith.mulf %160, %132 : vector<4x16xf32>
    %cst_56 = arith.constant 1.000000e+00 : f32
    %162 = vector.broadcast %cst_56 : f32 to vector<4x1xf32>
    %163 = arith.subf %162, %158 : vector<4x1xf32>
    %164 = vector.broadcast %163 : vector<4x1xf32> to vector<4x16xf32>
    %165 = arith.mulf %164, %86 : vector<4x16xf32>
    %166 = arith.addf %161, %165 : vector<4x16xf32>
    %167 = vector.broadcast %158 : vector<4x1xf32> to vector<4x16xf32>
    %168 = arith.mulf %167, %130 : vector<4x16xf32>
    %cst_57 = arith.constant 1.000000e+00 : f32
    %169 = vector.broadcast %cst_57 : f32 to vector<4x1xf32>
    %170 = arith.subf %169, %158 : vector<4x1xf32>
    %171 = vector.broadcast %170 : vector<4x1xf32> to vector<4x16xf32>
    %172 = arith.mulf %171, %87 : vector<4x16xf32>
    %173 = arith.addf %168, %172 : vector<4x16xf32>
    %174 = vector.broadcast %159 : vector<4x1xf32> to vector<4x16xf32>
    %175 = arith.mulf %174, %157 : vector<4x16xf32>
    %cst_58 = arith.constant 1.000000e+00 : f32
    %176 = vector.broadcast %cst_58 : f32 to vector<4x1xf32>
    %177 = arith.subf %176, %159 : vector<4x1xf32>
    %178 = vector.broadcast %177 : vector<4x1xf32> to vector<4x16xf32>
    %179 = arith.mulf %178, %88 : vector<4x16xf32>
    %180 = arith.addf %175, %179 : vector<4x16xf32>
    %181 = vector.broadcast %159 : vector<4x1xf32> to vector<4x16xf32>
    %182 = arith.mulf %181, %155 : vector<4x16xf32>
    %cst_59 = arith.constant 1.000000e+00 : f32
    %183 = vector.broadcast %cst_59 : f32 to vector<4x1xf32>
    %184 = arith.subf %183, %159 : vector<4x1xf32>
    %185 = vector.broadcast %184 : vector<4x1xf32> to vector<4x16xf32>
    %186 = arith.mulf %185, %89 : vector<4x16xf32>
    %187 = arith.addf %182, %186 : vector<4x16xf32>
    %188 = arith.addf %90, %166 : vector<4x16xf32>
    %189 = arith.addf %91, %180 : vector<4x16xf32>
    %190 = arith.maximumf %92, %166 : vector<4x16xf32>
    %191 = arith.maximumf %93, %180 : vector<4x16xf32>
    %192 = vector.extract_strided_slice %75 {offsets = [1, 0], sizes = [1, 64], strides = [1, 1]} : vector<32x64xf32> to vector<1x64xf32>
    %193 = vector.extract_strided_slice %75 {offsets = [9, 0], sizes = [1, 64], strides = [1, 1]} : vector<32x64xf32> to vector<1x64xf32>
    %194 = vector.extract_strided_slice %75 {offsets = [17, 0], sizes = [1, 64], strides = [1, 1]} : vector<32x64xf32> to vector<1x64xf32>
    %195 = vector.extract_strided_slice %75 {offsets = [25, 0], sizes = [1, 64], strides = [1, 1]} : vector<32x64xf32> to vector<1x64xf32>
    %196 = tpu.concatenate %192, %193, %194, %195 in 0 : vector<1x64xf32>, vector<1x64xf32>, vector<1x64xf32>, vector<1x64xf32> -> vector<4x64xf32>
    %cst_60 = arith.constant dense<0.000000e+00> : vector<4x64xf32>
    %197 = tpu.matmul %166, %83, %cst_60 {dimension_numbers = #tpu.dot_dimension_numbers<[1], [0], [0], [1], [0, 0, 1, 1], [], []>} : vector<4x16xf32>, vector<16x64xf32>, vector<4x64xf32> -> vector<4x64xf32>
    %198 = arith.addf %196, %197 : vector<4x64xf32>
    %199 = vector.extract_strided_slice %82 {offsets = [6, 0], sizes = [1, 64], strides = [1, 1]} : vector<32x64xf32> to vector<1x64xf32>
    %200 = vector.extract_strided_slice %82 {offsets = [14, 0], sizes = [1, 64], strides = [1, 1]} : vector<32x64xf32> to vector<1x64xf32>
    %201 = vector.extract_strided_slice %82 {offsets = [22, 0], sizes = [1, 64], strides = [1, 1]} : vector<32x64xf32> to vector<1x64xf32>
    %202 = vector.extract_strided_slice %82 {offsets = [30, 0], sizes = [1, 64], strides = [1, 1]} : vector<32x64xf32> to vector<1x64xf32>
    %203 = tpu.concatenate %199, %200, %201, %202 in 0 : vector<1x64xf32>, vector<1x64xf32>, vector<1x64xf32>, vector<1x64xf32> -> vector<4x64xf32>
    %cst_61 = arith.constant dense<0.000000e+00> : vector<4x64xf32>
    %204 = tpu.matmul %180, %84, %cst_61 {dimension_numbers = #tpu.dot_dimension_numbers<[1], [0], [0], [1], [0, 0, 1, 1], [], []>} : vector<4x16xf32>, vector<16x64xf32>, vector<4x64xf32> -> vector<4x64xf32>
    %205 = arith.addf %203, %204 : vector<4x64xf32>
    %206 = vector.extract_strided_slice %198 {offsets = [0, 0], sizes = [4, 16], strides = [1, 1]} : vector<4x64xf32> to vector<4x16xf32>
    %207 = arith.negf %206 : vector<4x16xf32>
    %208 = math.exp %207 : vector<4x16xf32>
    %cst_62 = arith.constant 1.000000e+00 : f32
    %209 = vector.broadcast %cst_62 : f32 to vector<4x16xf32>
    %210 = arith.addf %209, %208 : vector<4x16xf32>
    %211 = arith.divf %209, %210 : vector<4x16xf32>
    %212 = vector.extract_strided_slice %198 {offsets = [0, 16], sizes = [4, 16], strides = [1, 1]} : vector<4x64xf32> to vector<4x16xf32>
    %213 = arith.negf %212 : vector<4x16xf32>
    %214 = math.exp %213 : vector<4x16xf32>
    %cst_63 = arith.constant 1.000000e+00 : f32
    %215 = vector.broadcast %cst_63 : f32 to vector<4x16xf32>
    %216 = arith.addf %215, %214 : vector<4x16xf32>
    %217 = arith.divf %215, %216 : vector<4x16xf32>
    %218 = vector.extract_strided_slice %198 {offsets = [0, 32], sizes = [4, 16], strides = [1, 1]} : vector<4x64xf32> to vector<4x16xf32>
    %219 = math.tanh %218 : vector<4x16xf32>
    %220 = vector.extract_strided_slice %198 {offsets = [0, 48], sizes = [4, 16], strides = [1, 1]} : vector<4x64xf32> to vector<4x16xf32>
    %221 = arith.negf %220 : vector<4x16xf32>
    %222 = math.exp %221 : vector<4x16xf32>
    %cst_64 = arith.constant 1.000000e+00 : f32
    %223 = vector.broadcast %cst_64 : f32 to vector<4x16xf32>
    %224 = arith.addf %223, %222 : vector<4x16xf32>
    %225 = arith.divf %223, %224 : vector<4x16xf32>
    %226 = arith.mulf %217, %173 : vector<4x16xf32>
    %227 = arith.mulf %211, %219 : vector<4x16xf32>
    %228 = arith.addf %226, %227 : vector<4x16xf32>
    %229 = math.tanh %228 : vector<4x16xf32>
    %230 = arith.mulf %225, %229 : vector<4x16xf32>
    %231 = vector.extract_strided_slice %205 {offsets = [0, 0], sizes = [4, 16], strides = [1, 1]} : vector<4x64xf32> to vector<4x16xf32>
    %232 = arith.negf %231 : vector<4x16xf32>
    %233 = math.exp %232 : vector<4x16xf32>
    %cst_65 = arith.constant 1.000000e+00 : f32
    %234 = vector.broadcast %cst_65 : f32 to vector<4x16xf32>
    %235 = arith.addf %234, %233 : vector<4x16xf32>
    %236 = arith.divf %234, %235 : vector<4x16xf32>
    %237 = vector.extract_strided_slice %205 {offsets = [0, 16], sizes = [4, 16], strides = [1, 1]} : vector<4x64xf32> to vector<4x16xf32>
    %238 = arith.negf %237 : vector<4x16xf32>
    %239 = math.exp %238 : vector<4x16xf32>
    %cst_66 = arith.constant 1.000000e+00 : f32
    %240 = vector.broadcast %cst_66 : f32 to vector<4x16xf32>
    %241 = arith.addf %240, %239 : vector<4x16xf32>
    %242 = arith.divf %240, %241 : vector<4x16xf32>
    %243 = vector.extract_strided_slice %205 {offsets = [0, 32], sizes = [4, 16], strides = [1, 1]} : vector<4x64xf32> to vector<4x16xf32>
    %244 = math.tanh %243 : vector<4x16xf32>
    %245 = vector.extract_strided_slice %205 {offsets = [0, 48], sizes = [4, 16], strides = [1, 1]} : vector<4x64xf32> to vector<4x16xf32>
    %246 = arith.negf %245 : vector<4x16xf32>
    %247 = math.exp %246 : vector<4x16xf32>
    %cst_67 = arith.constant 1.000000e+00 : f32
    %248 = vector.broadcast %cst_67 : f32 to vector<4x16xf32>
    %249 = arith.addf %248, %247 : vector<4x16xf32>
    %250 = arith.divf %248, %249 : vector<4x16xf32>
    %251 = arith.mulf %242, %187 : vector<4x16xf32>
    %252 = arith.mulf %236, %244 : vector<4x16xf32>
    %253 = arith.addf %251, %252 : vector<4x16xf32>
    %254 = math.tanh %253 : vector<4x16xf32>
    %255 = arith.mulf %250, %254 : vector<4x16xf32>
    %256 = vector.extract_strided_slice %85 {offsets = [0, 1], sizes = [4, 1], strides = [1, 1]} : vector<4x8xf32> to vector<4x1xf32>
    %257 = vector.extract_strided_slice %85 {offsets = [0, 6], sizes = [4, 1], strides = [1, 1]} : vector<4x8xf32> to vector<4x1xf32>
    %258 = vector.broadcast %256 : vector<4x1xf32> to vector<4x16xf32>
    %259 = arith.mulf %258, %230 : vector<4x16xf32>
    %cst_68 = arith.constant 1.000000e+00 : f32
    %260 = vector.broadcast %cst_68 : f32 to vector<4x1xf32>
    %261 = arith.subf %260, %256 : vector<4x1xf32>
    %262 = vector.broadcast %261 : vector<4x1xf32> to vector<4x16xf32>
    %263 = arith.mulf %262, %166 : vector<4x16xf32>
    %264 = arith.addf %259, %263 : vector<4x16xf32>
    %265 = vector.broadcast %256 : vector<4x1xf32> to vector<4x16xf32>
    %266 = arith.mulf %265, %228 : vector<4x16xf32>
    %cst_69 = arith.constant 1.000000e+00 : f32
    %267 = vector.broadcast %cst_69 : f32 to vector<4x1xf32>
    %268 = arith.subf %267, %256 : vector<4x1xf32>
    %269 = vector.broadcast %268 : vector<4x1xf32> to vector<4x16xf32>
    %270 = arith.mulf %269, %173 : vector<4x16xf32>
    %271 = arith.addf %266, %270 : vector<4x16xf32>
    %272 = vector.broadcast %257 : vector<4x1xf32> to vector<4x16xf32>
    %273 = arith.mulf %272, %255 : vector<4x16xf32>
    %cst_70 = arith.constant 1.000000e+00 : f32
    %274 = vector.broadcast %cst_70 : f32 to vector<4x1xf32>
    %275 = arith.subf %274, %257 : vector<4x1xf32>
    %276 = vector.broadcast %275 : vector<4x1xf32> to vector<4x16xf32>
    %277 = arith.mulf %276, %180 : vector<4x16xf32>
    %278 = arith.addf %273, %277 : vector<4x16xf32>
    %279 = vector.broadcast %257 : vector<4x1xf32> to vector<4x16xf32>
    %280 = arith.mulf %279, %253 : vector<4x16xf32>
    %cst_71 = arith.constant 1.000000e+00 : f32
    %281 = vector.broadcast %cst_71 : f32 to vector<4x1xf32>
    %282 = arith.subf %281, %257 : vector<4x1xf32>
    %283 = vector.broadcast %282 : vector<4x1xf32> to vector<4x16xf32>
    %284 = arith.mulf %283, %187 : vector<4x16xf32>
    %285 = arith.addf %280, %284 : vector<4x16xf32>
    %286 = arith.addf %188, %264 : vector<4x16xf32>
    %287 = arith.addf %189, %278 : vector<4x16xf32>
    %288 = arith.maximumf %190, %264 : vector<4x16xf32>
    %289 = arith.maximumf %191, %278 : vector<4x16xf32>
    %290 = vector.extract_strided_slice %75 {offsets = [2, 0], sizes = [1, 64], strides = [1, 1]} : vector<32x64xf32> to vector<1x64xf32>
    %291 = vector.extract_strided_slice %75 {offsets = [10, 0], sizes = [1, 64], strides = [1, 1]} : vector<32x64xf32> to vector<1x64xf32>
    %292 = vector.extract_strided_slice %75 {offsets = [18, 0], sizes = [1, 64], strides = [1, 1]} : vector<32x64xf32> to vector<1x64xf32>
    %293 = vector.extract_strided_slice %75 {offsets = [26, 0], sizes = [1, 64], strides = [1, 1]} : vector<32x64xf32> to vector<1x64xf32>
    %294 = tpu.concatenate %290, %291, %292, %293 in 0 : vector<1x64xf32>, vector<1x64xf32>, vector<1x64xf32>, vector<1x64xf32> -> vector<4x64xf32>
    %cst_72 = arith.constant dense<0.000000e+00> : vector<4x64xf32>
    %295 = tpu.matmul %264, %83, %cst_72 {dimension_numbers = #tpu.dot_dimension_numbers<[1], [0], [0], [1], [0, 0, 1, 1], [], []>} : vector<4x16xf32>, vector<16x64xf32>, vector<4x64xf32> -> vector<4x64xf32>
    %296 = arith.addf %294, %295 : vector<4x64xf32>
    %297 = vector.extract_strided_slice %82 {offsets = [5, 0], sizes = [1, 64], strides = [1, 1]} : vector<32x64xf32> to vector<1x64xf32>
    %298 = vector.extract_strided_slice %82 {offsets = [13, 0], sizes = [1, 64], strides = [1, 1]} : vector<32x64xf32> to vector<1x64xf32>
    %299 = vector.extract_strided_slice %82 {offsets = [21, 0], sizes = [1, 64], strides = [1, 1]} : vector<32x64xf32> to vector<1x64xf32>
    %300 = vector.extract_strided_slice %82 {offsets = [29, 0], sizes = [1, 64], strides = [1, 1]} : vector<32x64xf32> to vector<1x64xf32>
    %301 = tpu.concatenate %297, %298, %299, %300 in 0 : vector<1x64xf32>, vector<1x64xf32>, vector<1x64xf32>, vector<1x64xf32> -> vector<4x64xf32>
    %cst_73 = arith.constant dense<0.000000e+00> : vector<4x64xf32>
    %302 = tpu.matmul %278, %84, %cst_73 {dimension_numbers = #tpu.dot_dimension_numbers<[1], [0], [0], [1], [0, 0, 1, 1], [], []>} : vector<4x16xf32>, vector<16x64xf32>, vector<4x64xf32> -> vector<4x64xf32>
    %303 = arith.addf %301, %302 : vector<4x64xf32>
    %304 = vector.extract_strided_slice %296 {offsets = [0, 0], sizes = [4, 16], strides = [1, 1]} : vector<4x64xf32> to vector<4x16xf32>
    %305 = arith.negf %304 : vector<4x16xf32>
    %306 = math.exp %305 : vector<4x16xf32>
    %cst_74 = arith.constant 1.000000e+00 : f32
    %307 = vector.broadcast %cst_74 : f32 to vector<4x16xf32>
    %308 = arith.addf %307, %306 : vector<4x16xf32>
    %309 = arith.divf %307, %308 : vector<4x16xf32>
    %310 = vector.extract_strided_slice %296 {offsets = [0, 16], sizes = [4, 16], strides = [1, 1]} : vector<4x64xf32> to vector<4x16xf32>
    %311 = arith.negf %310 : vector<4x16xf32>
    %312 = math.exp %311 : vector<4x16xf32>
    %cst_75 = arith.constant 1.000000e+00 : f32
    %313 = vector.broadcast %cst_75 : f32 to vector<4x16xf32>
    %314 = arith.addf %313, %312 : vector<4x16xf32>
    %315 = arith.divf %313, %314 : vector<4x16xf32>
    %316 = vector.extract_strided_slice %296 {offsets = [0, 32], sizes = [4, 16], strides = [1, 1]} : vector<4x64xf32> to vector<4x16xf32>
    %317 = math.tanh %316 : vector<4x16xf32>
    %318 = vector.extract_strided_slice %296 {offsets = [0, 48], sizes = [4, 16], strides = [1, 1]} : vector<4x64xf32> to vector<4x16xf32>
    %319 = arith.negf %318 : vector<4x16xf32>
    %320 = math.exp %319 : vector<4x16xf32>
    %cst_76 = arith.constant 1.000000e+00 : f32
    %321 = vector.broadcast %cst_76 : f32 to vector<4x16xf32>
    %322 = arith.addf %321, %320 : vector<4x16xf32>
    %323 = arith.divf %321, %322 : vector<4x16xf32>
    %324 = arith.mulf %315, %271 : vector<4x16xf32>
    %325 = arith.mulf %309, %317 : vector<4x16xf32>
    %326 = arith.addf %324, %325 : vector<4x16xf32>
    %327 = math.tanh %326 : vector<4x16xf32>
    %328 = arith.mulf %323, %327 : vector<4x16xf32>
    %329 = vector.extract_strided_slice %303 {offsets = [0, 0], sizes = [4, 16], strides = [1, 1]} : vector<4x64xf32> to vector<4x16xf32>
    %330 = arith.negf %329 : vector<4x16xf32>
    %331 = math.exp %330 : vector<4x16xf32>
    %cst_77 = arith.constant 1.000000e+00 : f32
    %332 = vector.broadcast %cst_77 : f32 to vector<4x16xf32>
    %333 = arith.addf %332, %331 : vector<4x16xf32>
    %334 = arith.divf %332, %333 : vector<4x16xf32>
    %335 = vector.extract_strided_slice %303 {offsets = [0, 16], sizes = [4, 16], strides = [1, 1]} : vector<4x64xf32> to vector<4x16xf32>
    %336 = arith.negf %335 : vector<4x16xf32>
    %337 = math.exp %336 : vector<4x16xf32>
    %cst_78 = arith.constant 1.000000e+00 : f32
    %338 = vector.broadcast %cst_78 : f32 to vector<4x16xf32>
    %339 = arith.addf %338, %337 : vector<4x16xf32>
    %340 = arith.divf %338, %339 : vector<4x16xf32>
    %341 = vector.extract_strided_slice %303 {offsets = [0, 32], sizes = [4, 16], strides = [1, 1]} : vector<4x64xf32> to vector<4x16xf32>
    %342 = math.tanh %341 : vector<4x16xf32>
    %343 = vector.extract_strided_slice %303 {offsets = [0, 48], sizes = [4, 16], strides = [1, 1]} : vector<4x64xf32> to vector<4x16xf32>
    %344 = arith.negf %343 : vector<4x16xf32>
    %345 = math.exp %344 : vector<4x16xf32>
    %cst_79 = arith.constant 1.000000e+00 : f32
    %346 = vector.broadcast %cst_79 : f32 to vector<4x16xf32>
    %347 = arith.addf %346, %345 : vector<4x16xf32>
    %348 = arith.divf %346, %347 : vector<4x16xf32>
    %349 = arith.mulf %340, %285 : vector<4x16xf32>
    %350 = arith.mulf %334, %342 : vector<4x16xf32>
    %351 = arith.addf %349, %350 : vector<4x16xf32>
    %352 = math.tanh %351 : vector<4x16xf32>
    %353 = arith.mulf %348, %352 : vector<4x16xf32>
    %354 = vector.extract_strided_slice %85 {offsets = [0, 2], sizes = [4, 1], strides = [1, 1]} : vector<4x8xf32> to vector<4x1xf32>
    %355 = vector.extract_strided_slice %85 {offsets = [0, 5], sizes = [4, 1], strides = [1, 1]} : vector<4x8xf32> to vector<4x1xf32>
    %356 = vector.broadcast %354 : vector<4x1xf32> to vector<4x16xf32>
    %357 = arith.mulf %356, %328 : vector<4x16xf32>
    %cst_80 = arith.constant 1.000000e+00 : f32
    %358 = vector.broadcast %cst_80 : f32 to vector<4x1xf32>
    %359 = arith.subf %358, %354 : vector<4x1xf32>
    %360 = vector.broadcast %359 : vector<4x1xf32> to vector<4x16xf32>
    %361 = arith.mulf %360, %264 : vector<4x16xf32>
    %362 = arith.addf %357, %361 : vector<4x16xf32>
    %363 = vector.broadcast %354 : vector<4x1xf32> to vector<4x16xf32>
    %364 = arith.mulf %363, %326 : vector<4x16xf32>
    %cst_81 = arith.constant 1.000000e+00 : f32
    %365 = vector.broadcast %cst_81 : f32 to vector<4x1xf32>
    %366 = arith.subf %365, %354 : vector<4x1xf32>
    %367 = vector.broadcast %366 : vector<4x1xf32> to vector<4x16xf32>
    %368 = arith.mulf %367, %271 : vector<4x16xf32>
    %369 = arith.addf %364, %368 : vector<4x16xf32>
    %370 = vector.broadcast %355 : vector<4x1xf32> to vector<4x16xf32>
    %371 = arith.mulf %370, %353 : vector<4x16xf32>
    %cst_82 = arith.constant 1.000000e+00 : f32
    %372 = vector.broadcast %cst_82 : f32 to vector<4x1xf32>
    %373 = arith.subf %372, %355 : vector<4x1xf32>
    %374 = vector.broadcast %373 : vector<4x1xf32> to vector<4x16xf32>
    %375 = arith.mulf %374, %278 : vector<4x16xf32>
    %376 = arith.addf %371, %375 : vector<4x16xf32>
    %377 = vector.broadcast %355 : vector<4x1xf32> to vector<4x16xf32>
    %378 = arith.mulf %377, %351 : vector<4x16xf32>
    %cst_83 = arith.constant 1.000000e+00 : f32
    %379 = vector.broadcast %cst_83 : f32 to vector<4x1xf32>
    %380 = arith.subf %379, %355 : vector<4x1xf32>
    %381 = vector.broadcast %380 : vector<4x1xf32> to vector<4x16xf32>
    %382 = arith.mulf %381, %285 : vector<4x16xf32>
    %383 = arith.addf %378, %382 : vector<4x16xf32>
    %384 = arith.addf %286, %362 : vector<4x16xf32>
    %385 = arith.addf %287, %376 : vector<4x16xf32>
    %386 = arith.maximumf %288, %362 : vector<4x16xf32>
    %387 = arith.maximumf %289, %376 : vector<4x16xf32>
    %388 = vector.extract_strided_slice %75 {offsets = [3, 0], sizes = [1, 64], strides = [1, 1]} : vector<32x64xf32> to vector<1x64xf32>
    %389 = vector.extract_strided_slice %75 {offsets = [11, 0], sizes = [1, 64], strides = [1, 1]} : vector<32x64xf32> to vector<1x64xf32>
    %390 = vector.extract_strided_slice %75 {offsets = [19, 0], sizes = [1, 64], strides = [1, 1]} : vector<32x64xf32> to vector<1x64xf32>
    %391 = vector.extract_strided_slice %75 {offsets = [27, 0], sizes = [1, 64], strides = [1, 1]} : vector<32x64xf32> to vector<1x64xf32>
    %392 = tpu.concatenate %388, %389, %390, %391 in 0 : vector<1x64xf32>, vector<1x64xf32>, vector<1x64xf32>, vector<1x64xf32> -> vector<4x64xf32>
    %cst_84 = arith.constant dense<0.000000e+00> : vector<4x64xf32>
    %393 = tpu.matmul %362, %83, %cst_84 {dimension_numbers = #tpu.dot_dimension_numbers<[1], [0], [0], [1], [0, 0, 1, 1], [], []>} : vector<4x16xf32>, vector<16x64xf32>, vector<4x64xf32> -> vector<4x64xf32>
    %394 = arith.addf %392, %393 : vector<4x64xf32>
    %395 = vector.extract_strided_slice %82 {offsets = [4, 0], sizes = [1, 64], strides = [1, 1]} : vector<32x64xf32> to vector<1x64xf32>
    %396 = vector.extract_strided_slice %82 {offsets = [12, 0], sizes = [1, 64], strides = [1, 1]} : vector<32x64xf32> to vector<1x64xf32>
    %397 = vector.extract_strided_slice %82 {offsets = [20, 0], sizes = [1, 64], strides = [1, 1]} : vector<32x64xf32> to vector<1x64xf32>
    %398 = vector.extract_strided_slice %82 {offsets = [28, 0], sizes = [1, 64], strides = [1, 1]} : vector<32x64xf32> to vector<1x64xf32>
    %399 = tpu.concatenate %395, %396, %397, %398 in 0 : vector<1x64xf32>, vector<1x64xf32>, vector<1x64xf32>, vector<1x64xf32> -> vector<4x64xf32>
    %cst_85 = arith.constant dense<0.000000e+00> : vector<4x64xf32>
    %400 = tpu.matmul %376, %84, %cst_85 {dimension_numbers = #tpu.dot_dimension_numbers<[1], [0], [0], [1], [0, 0, 1, 1], [], []>} : vector<4x16xf32>, vector<16x64xf32>, vector<4x64xf32> -> vector<4x64xf32>
    %401 = arith.addf %399, %400 : vector<4x64xf32>
    %402 = vector.extract_strided_slice %394 {offsets = [0, 0], sizes = [4, 16], strides = [1, 1]} : vector<4x64xf32> to vector<4x16xf32>
    %403 = arith.negf %402 : vector<4x16xf32>
    %404 = math.exp %403 : vector<4x16xf32>
    %cst_86 = arith.constant 1.000000e+00 : f32
    %405 = vector.broadcast %cst_86 : f32 to vector<4x16xf32>
    %406 = arith.addf %405, %404 : vector<4x16xf32>
    %407 = arith.divf %405, %406 : vector<4x16xf32>
    %408 = vector.extract_strided_slice %394 {offsets = [0, 16], sizes = [4, 16], strides = [1, 1]} : vector<4x64xf32> to vector<4x16xf32>
    %409 = arith.negf %408 : vector<4x16xf32>
    %410 = math.exp %409 : vector<4x16xf32>
    %cst_87 = arith.constant 1.000000e+00 : f32
    %411 = vector.broadcast %cst_87 : f32 to vector<4x16xf32>
    %412 = arith.addf %411, %410 : vector<4x16xf32>
    %413 = arith.divf %411, %412 : vector<4x16xf32>
    %414 = vector.extract_strided_slice %394 {offsets = [0, 32], sizes = [4, 16], strides = [1, 1]} : vector<4x64xf32> to vector<4x16xf32>
    %415 = math.tanh %414 : vector<4x16xf32>
    %416 = vector.extract_strided_slice %394 {offsets = [0, 48], sizes = [4, 16], strides = [1, 1]} : vector<4x64xf32> to vector<4x16xf32>
    %417 = arith.negf %416 : vector<4x16xf32>
    %418 = math.exp %417 : vector<4x16xf32>
    %cst_88 = arith.constant 1.000000e+00 : f32
    %419 = vector.broadcast %cst_88 : f32 to vector<4x16xf32>
    %420 = arith.addf %419, %418 : vector<4x16xf32>
    %421 = arith.divf %419, %420 : vector<4x16xf32>
    %422 = arith.mulf %413, %369 : vector<4x16xf32>
    %423 = arith.mulf %407, %415 : vector<4x16xf32>
    %424 = arith.addf %422, %423 : vector<4x16xf32>
    %425 = math.tanh %424 : vector<4x16xf32>
    %426 = arith.mulf %421, %425 : vector<4x16xf32>
    %427 = vector.extract_strided_slice %401 {offsets = [0, 0], sizes = [4, 16], strides = [1, 1]} : vector<4x64xf32> to vector<4x16xf32>
    %428 = arith.negf %427 : vector<4x16xf32>
    %429 = math.exp %428 : vector<4x16xf32>
    %cst_89 = arith.constant 1.000000e+00 : f32
    %430 = vector.broadcast %cst_89 : f32 to vector<4x16xf32>
    %431 = arith.addf %430, %429 : vector<4x16xf32>
    %432 = arith.divf %430, %431 : vector<4x16xf32>
    %433 = vector.extract_strided_slice %401 {offsets = [0, 16], sizes = [4, 16], strides = [1, 1]} : vector<4x64xf32> to vector<4x16xf32>
    %434 = arith.negf %433 : vector<4x16xf32>
    %435 = math.exp %434 : vector<4x16xf32>
    %cst_90 = arith.constant 1.000000e+00 : f32
    %436 = vector.broadcast %cst_90 : f32 to vector<4x16xf32>
    %437 = arith.addf %436, %435 : vector<4x16xf32>
    %438 = arith.divf %436, %437 : vector<4x16xf32>
    %439 = vector.extract_strided_slice %401 {offsets = [0, 32], sizes = [4, 16], strides = [1, 1]} : vector<4x64xf32> to vector<4x16xf32>
    %440 = math.tanh %439 : vector<4x16xf32>
    %441 = vector.extract_strided_slice %401 {offsets = [0, 48], sizes = [4, 16], strides = [1, 1]} : vector<4x64xf32> to vector<4x16xf32>
    %442 = arith.negf %441 : vector<4x16xf32>
    %443 = math.exp %442 : vector<4x16xf32>
    %cst_91 = arith.constant 1.000000e+00 : f32
    %444 = vector.broadcast %cst_91 : f32 to vector<4x16xf32>
    %445 = arith.addf %444, %443 : vector<4x16xf32>
    %446 = arith.divf %444, %445 : vector<4x16xf32>
    %447 = arith.mulf %438, %383 : vector<4x16xf32>
    %448 = arith.mulf %432, %440 : vector<4x16xf32>
    %449 = arith.addf %447, %448 : vector<4x16xf32>
    %450 = math.tanh %449 : vector<4x16xf32>
    %451 = arith.mulf %446, %450 : vector<4x16xf32>
    %452 = vector.extract_strided_slice %85 {offsets = [0, 3], sizes = [4, 1], strides = [1, 1]} : vector<4x8xf32> to vector<4x1xf32>
    %453 = vector.extract_strided_slice %85 {offsets = [0, 4], sizes = [4, 1], strides = [1, 1]} : vector<4x8xf32> to vector<4x1xf32>
    %454 = vector.broadcast %452 : vector<4x1xf32> to vector<4x16xf32>
    %455 = arith.mulf %454, %426 : vector<4x16xf32>
    %cst_92 = arith.constant 1.000000e+00 : f32
    %456 = vector.broadcast %cst_92 : f32 to vector<4x1xf32>
    %457 = arith.subf %456, %452 : vector<4x1xf32>
    %458 = vector.broadcast %457 : vector<4x1xf32> to vector<4x16xf32>
    %459 = arith.mulf %458, %362 : vector<4x16xf32>
    %460 = arith.addf %455, %459 : vector<4x16xf32>
    %461 = vector.broadcast %452 : vector<4x1xf32> to vector<4x16xf32>
    %462 = arith.mulf %461, %424 : vector<4x16xf32>
    %cst_93 = arith.constant 1.000000e+00 : f32
    %463 = vector.broadcast %cst_93 : f32 to vector<4x1xf32>
    %464 = arith.subf %463, %452 : vector<4x1xf32>
    %465 = vector.broadcast %464 : vector<4x1xf32> to vector<4x16xf32>
    %466 = arith.mulf %465, %369 : vector<4x16xf32>
    %467 = arith.addf %462, %466 : vector<4x16xf32>
    %468 = vector.broadcast %453 : vector<4x1xf32> to vector<4x16xf32>
    %469 = arith.mulf %468, %451 : vector<4x16xf32>
    %cst_94 = arith.constant 1.000000e+00 : f32
    %470 = vector.broadcast %cst_94 : f32 to vector<4x1xf32>
    %471 = arith.subf %470, %453 : vector<4x1xf32>
    %472 = vector.broadcast %471 : vector<4x1xf32> to vector<4x16xf32>
    %473 = arith.mulf %472, %376 : vector<4x16xf32>
    %474 = arith.addf %469, %473 : vector<4x16xf32>
    %475 = vector.broadcast %453 : vector<4x1xf32> to vector<4x16xf32>
    %476 = arith.mulf %475, %449 : vector<4x16xf32>
    %cst_95 = arith.constant 1.000000e+00 : f32
    %477 = vector.broadcast %cst_95 : f32 to vector<4x1xf32>
    %478 = arith.subf %477, %453 : vector<4x1xf32>
    %479 = vector.broadcast %478 : vector<4x1xf32> to vector<4x16xf32>
    %480 = arith.mulf %479, %383 : vector<4x16xf32>
    %481 = arith.addf %476, %480 : vector<4x16xf32>
    %482 = arith.addf %384, %460 : vector<4x16xf32>
    %483 = arith.addf %385, %474 : vector<4x16xf32>
    %484 = arith.maximumf %386, %460 : vector<4x16xf32>
    %485 = arith.maximumf %387, %474 : vector<4x16xf32>
    %486 = vector.extract_strided_slice %75 {offsets = [4, 0], sizes = [1, 64], strides = [1, 1]} : vector<32x64xf32> to vector<1x64xf32>
    %487 = vector.extract_strided_slice %75 {offsets = [12, 0], sizes = [1, 64], strides = [1, 1]} : vector<32x64xf32> to vector<1x64xf32>
    %488 = vector.extract_strided_slice %75 {offsets = [20, 0], sizes = [1, 64], strides = [1, 1]} : vector<32x64xf32> to vector<1x64xf32>
    %489 = vector.extract_strided_slice %75 {offsets = [28, 0], sizes = [1, 64], strides = [1, 1]} : vector<32x64xf32> to vector<1x64xf32>
    %490 = tpu.concatenate %486, %487, %488, %489 in 0 : vector<1x64xf32>, vector<1x64xf32>, vector<1x64xf32>, vector<1x64xf32> -> vector<4x64xf32>
    %cst_96 = arith.constant dense<0.000000e+00> : vector<4x64xf32>
    %491 = tpu.matmul %460, %83, %cst_96 {dimension_numbers = #tpu.dot_dimension_numbers<[1], [0], [0], [1], [0, 0, 1, 1], [], []>} : vector<4x16xf32>, vector<16x64xf32>, vector<4x64xf32> -> vector<4x64xf32>
    %492 = arith.addf %490, %491 : vector<4x64xf32>
    %493 = vector.extract_strided_slice %82 {offsets = [3, 0], sizes = [1, 64], strides = [1, 1]} : vector<32x64xf32> to vector<1x64xf32>
    %494 = vector.extract_strided_slice %82 {offsets = [11, 0], sizes = [1, 64], strides = [1, 1]} : vector<32x64xf32> to vector<1x64xf32>
    %495 = vector.extract_strided_slice %82 {offsets = [19, 0], sizes = [1, 64], strides = [1, 1]} : vector<32x64xf32> to vector<1x64xf32>
    %496 = vector.extract_strided_slice %82 {offsets = [27, 0], sizes = [1, 64], strides = [1, 1]} : vector<32x64xf32> to vector<1x64xf32>
    %497 = tpu.concatenate %493, %494, %495, %496 in 0 : vector<1x64xf32>, vector<1x64xf32>, vector<1x64xf32>, vector<1x64xf32> -> vector<4x64xf32>
    %cst_97 = arith.constant dense<0.000000e+00> : vector<4x64xf32>
    %498 = tpu.matmul %474, %84, %cst_97 {dimension_numbers = #tpu.dot_dimension_numbers<[1], [0], [0], [1], [0, 0, 1, 1], [], []>} : vector<4x16xf32>, vector<16x64xf32>, vector<4x64xf32> -> vector<4x64xf32>
    %499 = arith.addf %497, %498 : vector<4x64xf32>
    %500 = vector.extract_strided_slice %492 {offsets = [0, 0], sizes = [4, 16], strides = [1, 1]} : vector<4x64xf32> to vector<4x16xf32>
    %501 = arith.negf %500 : vector<4x16xf32>
    %502 = math.exp %501 : vector<4x16xf32>
    %cst_98 = arith.constant 1.000000e+00 : f32
    %503 = vector.broadcast %cst_98 : f32 to vector<4x16xf32>
    %504 = arith.addf %503, %502 : vector<4x16xf32>
    %505 = arith.divf %503, %504 : vector<4x16xf32>
    %506 = vector.extract_strided_slice %492 {offsets = [0, 16], sizes = [4, 16], strides = [1, 1]} : vector<4x64xf32> to vector<4x16xf32>
    %507 = arith.negf %506 : vector<4x16xf32>
    %508 = math.exp %507 : vector<4x16xf32>
    %cst_99 = arith.constant 1.000000e+00 : f32
    %509 = vector.broadcast %cst_99 : f32 to vector<4x16xf32>
    %510 = arith.addf %509, %508 : vector<4x16xf32>
    %511 = arith.divf %509, %510 : vector<4x16xf32>
    %512 = vector.extract_strided_slice %492 {offsets = [0, 32], sizes = [4, 16], strides = [1, 1]} : vector<4x64xf32> to vector<4x16xf32>
    %513 = math.tanh %512 : vector<4x16xf32>
    %514 = vector.extract_strided_slice %492 {offsets = [0, 48], sizes = [4, 16], strides = [1, 1]} : vector<4x64xf32> to vector<4x16xf32>
    %515 = arith.negf %514 : vector<4x16xf32>
    %516 = math.exp %515 : vector<4x16xf32>
    %cst_100 = arith.constant 1.000000e+00 : f32
    %517 = vector.broadcast %cst_100 : f32 to vector<4x16xf32>
    %518 = arith.addf %517, %516 : vector<4x16xf32>
    %519 = arith.divf %517, %518 : vector<4x16xf32>
    %520 = arith.mulf %511, %467 : vector<4x16xf32>
    %521 = arith.mulf %505, %513 : vector<4x16xf32>
    %522 = arith.addf %520, %521 : vector<4x16xf32>
    %523 = math.tanh %522 : vector<4x16xf32>
    %524 = arith.mulf %519, %523 : vector<4x16xf32>
    %525 = vector.extract_strided_slice %499 {offsets = [0, 0], sizes = [4, 16], strides = [1, 1]} : vector<4x64xf32> to vector<4x16xf32>
    %526 = arith.negf %525 : vector<4x16xf32>
    %527 = math.exp %526 : vector<4x16xf32>
    %cst_101 = arith.constant 1.000000e+00 : f32
    %528 = vector.broadcast %cst_101 : f32 to vector<4x16xf32>
    %529 = arith.addf %528, %527 : vector<4x16xf32>
    %530 = arith.divf %528, %529 : vector<4x16xf32>
    %531 = vector.extract_strided_slice %499 {offsets = [0, 16], sizes = [4, 16], strides = [1, 1]} : vector<4x64xf32> to vector<4x16xf32>
    %532 = arith.negf %531 : vector<4x16xf32>
    %533 = math.exp %532 : vector<4x16xf32>
    %cst_102 = arith.constant 1.000000e+00 : f32
    %534 = vector.broadcast %cst_102 : f32 to vector<4x16xf32>
    %535 = arith.addf %534, %533 : vector<4x16xf32>
    %536 = arith.divf %534, %535 : vector<4x16xf32>
    %537 = vector.extract_strided_slice %499 {offsets = [0, 32], sizes = [4, 16], strides = [1, 1]} : vector<4x64xf32> to vector<4x16xf32>
    %538 = math.tanh %537 : vector<4x16xf32>
    %539 = vector.extract_strided_slice %499 {offsets = [0, 48], sizes = [4, 16], strides = [1, 1]} : vector<4x64xf32> to vector<4x16xf32>
    %540 = arith.negf %539 : vector<4x16xf32>
    %541 = math.exp %540 : vector<4x16xf32>
    %cst_103 = arith.constant 1.000000e+00 : f32
    %542 = vector.broadcast %cst_103 : f32 to vector<4x16xf32>
    %543 = arith.addf %542, %541 : vector<4x16xf32>
    %544 = arith.divf %542, %543 : vector<4x16xf32>
    %545 = arith.mulf %536, %481 : vector<4x16xf32>
    %546 = arith.mulf %530, %538 : vector<4x16xf32>
    %547 = arith.addf %545, %546 : vector<4x16xf32>
    %548 = math.tanh %547 : vector<4x16xf32>
    %549 = arith.mulf %544, %548 : vector<4x16xf32>
    %550 = vector.extract_strided_slice %85 {offsets = [0, 4], sizes = [4, 1], strides = [1, 1]} : vector<4x8xf32> to vector<4x1xf32>
    %551 = vector.extract_strided_slice %85 {offsets = [0, 3], sizes = [4, 1], strides = [1, 1]} : vector<4x8xf32> to vector<4x1xf32>
    %552 = vector.broadcast %550 : vector<4x1xf32> to vector<4x16xf32>
    %553 = arith.mulf %552, %524 : vector<4x16xf32>
    %cst_104 = arith.constant 1.000000e+00 : f32
    %554 = vector.broadcast %cst_104 : f32 to vector<4x1xf32>
    %555 = arith.subf %554, %550 : vector<4x1xf32>
    %556 = vector.broadcast %555 : vector<4x1xf32> to vector<4x16xf32>
    %557 = arith.mulf %556, %460 : vector<4x16xf32>
    %558 = arith.addf %553, %557 : vector<4x16xf32>
    %559 = vector.broadcast %550 : vector<4x1xf32> to vector<4x16xf32>
    %560 = arith.mulf %559, %522 : vector<4x16xf32>
    %cst_105 = arith.constant 1.000000e+00 : f32
    %561 = vector.broadcast %cst_105 : f32 to vector<4x1xf32>
    %562 = arith.subf %561, %550 : vector<4x1xf32>
    %563 = vector.broadcast %562 : vector<4x1xf32> to vector<4x16xf32>
    %564 = arith.mulf %563, %467 : vector<4x16xf32>
    %565 = arith.addf %560, %564 : vector<4x16xf32>
    %566 = vector.broadcast %551 : vector<4x1xf32> to vector<4x16xf32>
    %567 = arith.mulf %566, %549 : vector<4x16xf32>
    %cst_106 = arith.constant 1.000000e+00 : f32
    %568 = vector.broadcast %cst_106 : f32 to vector<4x1xf32>
    %569 = arith.subf %568, %551 : vector<4x1xf32>
    %570 = vector.broadcast %569 : vector<4x1xf32> to vector<4x16xf32>
    %571 = arith.mulf %570, %474 : vector<4x16xf32>
    %572 = arith.addf %567, %571 : vector<4x16xf32>
    %573 = vector.broadcast %551 : vector<4x1xf32> to vector<4x16xf32>
    %574 = arith.mulf %573, %547 : vector<4x16xf32>
    %cst_107 = arith.constant 1.000000e+00 : f32
    %575 = vector.broadcast %cst_107 : f32 to vector<4x1xf32>
    %576 = arith.subf %575, %551 : vector<4x1xf32>
    %577 = vector.broadcast %576 : vector<4x1xf32> to vector<4x16xf32>
    %578 = arith.mulf %577, %481 : vector<4x16xf32>
    %579 = arith.addf %574, %578 : vector<4x16xf32>
    %580 = arith.addf %482, %558 : vector<4x16xf32>
    %581 = arith.addf %483, %572 : vector<4x16xf32>
    %582 = arith.maximumf %484, %558 : vector<4x16xf32>
    %583 = arith.maximumf %485, %572 : vector<4x16xf32>
    %584 = vector.extract_strided_slice %75 {offsets = [5, 0], sizes = [1, 64], strides = [1, 1]} : vector<32x64xf32> to vector<1x64xf32>
    %585 = vector.extract_strided_slice %75 {offsets = [13, 0], sizes = [1, 64], strides = [1, 1]} : vector<32x64xf32> to vector<1x64xf32>
    %586 = vector.extract_strided_slice %75 {offsets = [21, 0], sizes = [1, 64], strides = [1, 1]} : vector<32x64xf32> to vector<1x64xf32>
    %587 = vector.extract_strided_slice %75 {offsets = [29, 0], sizes = [1, 64], strides = [1, 1]} : vector<32x64xf32> to vector<1x64xf32>
    %588 = tpu.concatenate %584, %585, %586, %587 in 0 : vector<1x64xf32>, vector<1x64xf32>, vector<1x64xf32>, vector<1x64xf32> -> vector<4x64xf32>
    %cst_108 = arith.constant dense<0.000000e+00> : vector<4x64xf32>
    %589 = tpu.matmul %558, %83, %cst_108 {dimension_numbers = #tpu.dot_dimension_numbers<[1], [0], [0], [1], [0, 0, 1, 1], [], []>} : vector<4x16xf32>, vector<16x64xf32>, vector<4x64xf32> -> vector<4x64xf32>
    %590 = arith.addf %588, %589 : vector<4x64xf32>
    %591 = vector.extract_strided_slice %82 {offsets = [2, 0], sizes = [1, 64], strides = [1, 1]} : vector<32x64xf32> to vector<1x64xf32>
    %592 = vector.extract_strided_slice %82 {offsets = [10, 0], sizes = [1, 64], strides = [1, 1]} : vector<32x64xf32> to vector<1x64xf32>
    %593 = vector.extract_strided_slice %82 {offsets = [18, 0], sizes = [1, 64], strides = [1, 1]} : vector<32x64xf32> to vector<1x64xf32>
    %594 = vector.extract_strided_slice %82 {offsets = [26, 0], sizes = [1, 64], strides = [1, 1]} : vector<32x64xf32> to vector<1x64xf32>
    %595 = tpu.concatenate %591, %592, %593, %594 in 0 : vector<1x64xf32>, vector<1x64xf32>, vector<1x64xf32>, vector<1x64xf32> -> vector<4x64xf32>
    %cst_109 = arith.constant dense<0.000000e+00> : vector<4x64xf32>
    %596 = tpu.matmul %572, %84, %cst_109 {dimension_numbers = #tpu.dot_dimension_numbers<[1], [0], [0], [1], [0, 0, 1, 1], [], []>} : vector<4x16xf32>, vector<16x64xf32>, vector<4x64xf32> -> vector<4x64xf32>
    %597 = arith.addf %595, %596 : vector<4x64xf32>
    %598 = vector.extract_strided_slice %590 {offsets = [0, 0], sizes = [4, 16], strides = [1, 1]} : vector<4x64xf32> to vector<4x16xf32>
    %599 = arith.negf %598 : vector<4x16xf32>
    %600 = math.exp %599 : vector<4x16xf32>
    %cst_110 = arith.constant 1.000000e+00 : f32
    %601 = vector.broadcast %cst_110 : f32 to vector<4x16xf32>
    %602 = arith.addf %601, %600 : vector<4x16xf32>
    %603 = arith.divf %601, %602 : vector<4x16xf32>
    %604 = vector.extract_strided_slice %590 {offsets = [0, 16], sizes = [4, 16], strides = [1, 1]} : vector<4x64xf32> to vector<4x16xf32>
    %605 = arith.negf %604 : vector<4x16xf32>
    %606 = math.exp %605 : vector<4x16xf32>
    %cst_111 = arith.constant 1.000000e+00 : f32
    %607 = vector.broadcast %cst_111 : f32 to vector<4x16xf32>
    %608 = arith.addf %607, %606 : vector<4x16xf32>
    %609 = arith.divf %607, %608 : vector<4x16xf32>
    %610 = vector.extract_strided_slice %590 {offsets = [0, 32], sizes = [4, 16], strides = [1, 1]} : vector<4x64xf32> to vector<4x16xf32>
    %611 = math.tanh %610 : vector<4x16xf32>
    %612 = vector.extract_strided_slice %590 {offsets = [0, 48], sizes = [4, 16], strides = [1, 1]} : vector<4x64xf32> to vector<4x16xf32>
    %613 = arith.negf %612 : vector<4x16xf32>
    %614 = math.exp %613 : vector<4x16xf32>
    %cst_112 = arith.constant 1.000000e+00 : f32
    %615 = vector.broadcast %cst_112 : f32 to vector<4x16xf32>
    %616 = arith.addf %615, %614 : vector<4x16xf32>
    %617 = arith.divf %615, %616 : vector<4x16xf32>
    %618 = arith.mulf %609, %565 : vector<4x16xf32>
    %619 = arith.mulf %603, %611 : vector<4x16xf32>
    %620 = arith.addf %618, %619 : vector<4x16xf32>
    %621 = math.tanh %620 : vector<4x16xf32>
    %622 = arith.mulf %617, %621 : vector<4x16xf32>
    %623 = vector.extract_strided_slice %597 {offsets = [0, 0], sizes = [4, 16], strides = [1, 1]} : vector<4x64xf32> to vector<4x16xf32>
    %624 = arith.negf %623 : vector<4x16xf32>
    %625 = math.exp %624 : vector<4x16xf32>
    %cst_113 = arith.constant 1.000000e+00 : f32
    %626 = vector.broadcast %cst_113 : f32 to vector<4x16xf32>
    %627 = arith.addf %626, %625 : vector<4x16xf32>
    %628 = arith.divf %626, %627 : vector<4x16xf32>
    %629 = vector.extract_strided_slice %597 {offsets = [0, 16], sizes = [4, 16], strides = [1, 1]} : vector<4x64xf32> to vector<4x16xf32>
    %630 = arith.negf %629 : vector<4x16xf32>
    %631 = math.exp %630 : vector<4x16xf32>
    %cst_114 = arith.constant 1.000000e+00 : f32
    %632 = vector.broadcast %cst_114 : f32 to vector<4x16xf32>
    %633 = arith.addf %632, %631 : vector<4x16xf32>
    %634 = arith.divf %632, %633 : vector<4x16xf32>
    %635 = vector.extract_strided_slice %597 {offsets = [0, 32], sizes = [4, 16], strides = [1, 1]} : vector<4x64xf32> to vector<4x16xf32>
    %636 = math.tanh %635 : vector<4x16xf32>
    %637 = vector.extract_strided_slice %597 {offsets = [0, 48], sizes = [4, 16], strides = [1, 1]} : vector<4x64xf32> to vector<4x16xf32>
    %638 = arith.negf %637 : vector<4x16xf32>
    %639 = math.exp %638 : vector<4x16xf32>
    %cst_115 = arith.constant 1.000000e+00 : f32
    %640 = vector.broadcast %cst_115 : f32 to vector<4x16xf32>
    %641 = arith.addf %640, %639 : vector<4x16xf32>
    %642 = arith.divf %640, %641 : vector<4x16xf32>
    %643 = arith.mulf %634, %579 : vector<4x16xf32>
    %644 = arith.mulf %628, %636 : vector<4x16xf32>
    %645 = arith.addf %643, %644 : vector<4x16xf32>
    %646 = math.tanh %645 : vector<4x16xf32>
    %647 = arith.mulf %642, %646 : vector<4x16xf32>
    %648 = vector.extract_strided_slice %85 {offsets = [0, 5], sizes = [4, 1], strides = [1, 1]} : vector<4x8xf32> to vector<4x1xf32>
    %649 = vector.extract_strided_slice %85 {offsets = [0, 2], sizes = [4, 1], strides = [1, 1]} : vector<4x8xf32> to vector<4x1xf32>
    %650 = vector.broadcast %648 : vector<4x1xf32> to vector<4x16xf32>
    %651 = arith.mulf %650, %622 : vector<4x16xf32>
    %cst_116 = arith.constant 1.000000e+00 : f32
    %652 = vector.broadcast %cst_116 : f32 to vector<4x1xf32>
    %653 = arith.subf %652, %648 : vector<4x1xf32>
    %654 = vector.broadcast %653 : vector<4x1xf32> to vector<4x16xf32>
    %655 = arith.mulf %654, %558 : vector<4x16xf32>
    %656 = arith.addf %651, %655 : vector<4x16xf32>
    %657 = vector.broadcast %648 : vector<4x1xf32> to vector<4x16xf32>
    %658 = arith.mulf %657, %620 : vector<4x16xf32>
    %cst_117 = arith.constant 1.000000e+00 : f32
    %659 = vector.broadcast %cst_117 : f32 to vector<4x1xf32>
    %660 = arith.subf %659, %648 : vector<4x1xf32>
    %661 = vector.broadcast %660 : vector<4x1xf32> to vector<4x16xf32>
    %662 = arith.mulf %661, %565 : vector<4x16xf32>
    %663 = arith.addf %658, %662 : vector<4x16xf32>
    %664 = vector.broadcast %649 : vector<4x1xf32> to vector<4x16xf32>
    %665 = arith.mulf %664, %647 : vector<4x16xf32>
    %cst_118 = arith.constant 1.000000e+00 : f32
    %666 = vector.broadcast %cst_118 : f32 to vector<4x1xf32>
    %667 = arith.subf %666, %649 : vector<4x1xf32>
    %668 = vector.broadcast %667 : vector<4x1xf32> to vector<4x16xf32>
    %669 = arith.mulf %668, %572 : vector<4x16xf32>
    %670 = arith.addf %665, %669 : vector<4x16xf32>
    %671 = vector.broadcast %649 : vector<4x1xf32> to vector<4x16xf32>
    %672 = arith.mulf %671, %645 : vector<4x16xf32>
    %cst_119 = arith.constant 1.000000e+00 : f32
    %673 = vector.broadcast %cst_119 : f32 to vector<4x1xf32>
    %674 = arith.subf %673, %649 : vector<4x1xf32>
    %675 = vector.broadcast %674 : vector<4x1xf32> to vector<4x16xf32>
    %676 = arith.mulf %675, %579 : vector<4x16xf32>
    %677 = arith.addf %672, %676 : vector<4x16xf32>
    %678 = arith.addf %580, %656 : vector<4x16xf32>
    %679 = arith.addf %581, %670 : vector<4x16xf32>
    %680 = arith.maximumf %582, %656 : vector<4x16xf32>
    %681 = arith.maximumf %583, %670 : vector<4x16xf32>
    %682 = vector.extract_strided_slice %75 {offsets = [6, 0], sizes = [1, 64], strides = [1, 1]} : vector<32x64xf32> to vector<1x64xf32>
    %683 = vector.extract_strided_slice %75 {offsets = [14, 0], sizes = [1, 64], strides = [1, 1]} : vector<32x64xf32> to vector<1x64xf32>
    %684 = vector.extract_strided_slice %75 {offsets = [22, 0], sizes = [1, 64], strides = [1, 1]} : vector<32x64xf32> to vector<1x64xf32>
    %685 = vector.extract_strided_slice %75 {offsets = [30, 0], sizes = [1, 64], strides = [1, 1]} : vector<32x64xf32> to vector<1x64xf32>
    %686 = tpu.concatenate %682, %683, %684, %685 in 0 : vector<1x64xf32>, vector<1x64xf32>, vector<1x64xf32>, vector<1x64xf32> -> vector<4x64xf32>
    %cst_120 = arith.constant dense<0.000000e+00> : vector<4x64xf32>
    %687 = tpu.matmul %656, %83, %cst_120 {dimension_numbers = #tpu.dot_dimension_numbers<[1], [0], [0], [1], [0, 0, 1, 1], [], []>} : vector<4x16xf32>, vector<16x64xf32>, vector<4x64xf32> -> vector<4x64xf32>
    %688 = arith.addf %686, %687 : vector<4x64xf32>
    %689 = vector.extract_strided_slice %82 {offsets = [1, 0], sizes = [1, 64], strides = [1, 1]} : vector<32x64xf32> to vector<1x64xf32>
    %690 = vector.extract_strided_slice %82 {offsets = [9, 0], sizes = [1, 64], strides = [1, 1]} : vector<32x64xf32> to vector<1x64xf32>
    %691 = vector.extract_strided_slice %82 {offsets = [17, 0], sizes = [1, 64], strides = [1, 1]} : vector<32x64xf32> to vector<1x64xf32>
    %692 = vector.extract_strided_slice %82 {offsets = [25, 0], sizes = [1, 64], strides = [1, 1]} : vector<32x64xf32> to vector<1x64xf32>
    %693 = tpu.concatenate %689, %690, %691, %692 in 0 : vector<1x64xf32>, vector<1x64xf32>, vector<1x64xf32>, vector<1x64xf32> -> vector<4x64xf32>
    %cst_121 = arith.constant dense<0.000000e+00> : vector<4x64xf32>
    %694 = tpu.matmul %670, %84, %cst_121 {dimension_numbers = #tpu.dot_dimension_numbers<[1], [0], [0], [1], [0, 0, 1, 1], [], []>} : vector<4x16xf32>, vector<16x64xf32>, vector<4x64xf32> -> vector<4x64xf32>
    %695 = arith.addf %693, %694 : vector<4x64xf32>
    %696 = vector.extract_strided_slice %688 {offsets = [0, 0], sizes = [4, 16], strides = [1, 1]} : vector<4x64xf32> to vector<4x16xf32>
    %697 = arith.negf %696 : vector<4x16xf32>
    %698 = math.exp %697 : vector<4x16xf32>
    %cst_122 = arith.constant 1.000000e+00 : f32
    %699 = vector.broadcast %cst_122 : f32 to vector<4x16xf32>
    %700 = arith.addf %699, %698 : vector<4x16xf32>
    %701 = arith.divf %699, %700 : vector<4x16xf32>
    %702 = vector.extract_strided_slice %688 {offsets = [0, 16], sizes = [4, 16], strides = [1, 1]} : vector<4x64xf32> to vector<4x16xf32>
    %703 = arith.negf %702 : vector<4x16xf32>
    %704 = math.exp %703 : vector<4x16xf32>
    %cst_123 = arith.constant 1.000000e+00 : f32
    %705 = vector.broadcast %cst_123 : f32 to vector<4x16xf32>
    %706 = arith.addf %705, %704 : vector<4x16xf32>
    %707 = arith.divf %705, %706 : vector<4x16xf32>
    %708 = vector.extract_strided_slice %688 {offsets = [0, 32], sizes = [4, 16], strides = [1, 1]} : vector<4x64xf32> to vector<4x16xf32>
    %709 = math.tanh %708 : vector<4x16xf32>
    %710 = vector.extract_strided_slice %688 {offsets = [0, 48], sizes = [4, 16], strides = [1, 1]} : vector<4x64xf32> to vector<4x16xf32>
    %711 = arith.negf %710 : vector<4x16xf32>
    %712 = math.exp %711 : vector<4x16xf32>
    %cst_124 = arith.constant 1.000000e+00 : f32
    %713 = vector.broadcast %cst_124 : f32 to vector<4x16xf32>
    %714 = arith.addf %713, %712 : vector<4x16xf32>
    %715 = arith.divf %713, %714 : vector<4x16xf32>
    %716 = arith.mulf %707, %663 : vector<4x16xf32>
    %717 = arith.mulf %701, %709 : vector<4x16xf32>
    %718 = arith.addf %716, %717 : vector<4x16xf32>
    %719 = math.tanh %718 : vector<4x16xf32>
    %720 = arith.mulf %715, %719 : vector<4x16xf32>
    %721 = vector.extract_strided_slice %695 {offsets = [0, 0], sizes = [4, 16], strides = [1, 1]} : vector<4x64xf32> to vector<4x16xf32>
    %722 = arith.negf %721 : vector<4x16xf32>
    %723 = math.exp %722 : vector<4x16xf32>
    %cst_125 = arith.constant 1.000000e+00 : f32
    %724 = vector.broadcast %cst_125 : f32 to vector<4x16xf32>
    %725 = arith.addf %724, %723 : vector<4x16xf32>
    %726 = arith.divf %724, %725 : vector<4x16xf32>
    %727 = vector.extract_strided_slice %695 {offsets = [0, 16], sizes = [4, 16], strides = [1, 1]} : vector<4x64xf32> to vector<4x16xf32>
    %728 = arith.negf %727 : vector<4x16xf32>
    %729 = math.exp %728 : vector<4x16xf32>
    %cst_126 = arith.constant 1.000000e+00 : f32
    %730 = vector.broadcast %cst_126 : f32 to vector<4x16xf32>
    %731 = arith.addf %730, %729 : vector<4x16xf32>
    %732 = arith.divf %730, %731 : vector<4x16xf32>
    %733 = vector.extract_strided_slice %695 {offsets = [0, 32], sizes = [4, 16], strides = [1, 1]} : vector<4x64xf32> to vector<4x16xf32>
    %734 = math.tanh %733 : vector<4x16xf32>
    %735 = vector.extract_strided_slice %695 {offsets = [0, 48], sizes = [4, 16], strides = [1, 1]} : vector<4x64xf32> to vector<4x16xf32>
    %736 = arith.negf %735 : vector<4x16xf32>
    %737 = math.exp %736 : vector<4x16xf32>
    %cst_127 = arith.constant 1.000000e+00 : f32
    %738 = vector.broadcast %cst_127 : f32 to vector<4x16xf32>
    %739 = arith.addf %738, %737 : vector<4x16xf32>
    %740 = arith.divf %738, %739 : vector<4x16xf32>
    %741 = arith.mulf %732, %677 : vector<4x16xf32>
    %742 = arith.mulf %726, %734 : vector<4x16xf32>
    %743 = arith.addf %741, %742 : vector<4x16xf32>
    %744 = math.tanh %743 : vector<4x16xf32>
    %745 = arith.mulf %740, %744 : vector<4x16xf32>
    %746 = vector.extract_strided_slice %85 {offsets = [0, 6], sizes = [4, 1], strides = [1, 1]} : vector<4x8xf32> to vector<4x1xf32>
    %747 = vector.extract_strided_slice %85 {offsets = [0, 1], sizes = [4, 1], strides = [1, 1]} : vector<4x8xf32> to vector<4x1xf32>
    %748 = vector.broadcast %746 : vector<4x1xf32> to vector<4x16xf32>
    %749 = arith.mulf %748, %720 : vector<4x16xf32>
    %cst_128 = arith.constant 1.000000e+00 : f32
    %750 = vector.broadcast %cst_128 : f32 to vector<4x1xf32>
    %751 = arith.subf %750, %746 : vector<4x1xf32>
    %752 = vector.broadcast %751 : vector<4x1xf32> to vector<4x16xf32>
    %753 = arith.mulf %752, %656 : vector<4x16xf32>
    %754 = arith.addf %749, %753 : vector<4x16xf32>
    %755 = vector.broadcast %746 : vector<4x1xf32> to vector<4x16xf32>
    %756 = arith.mulf %755, %718 : vector<4x16xf32>
    %cst_129 = arith.constant 1.000000e+00 : f32
    %757 = vector.broadcast %cst_129 : f32 to vector<4x1xf32>
    %758 = arith.subf %757, %746 : vector<4x1xf32>
    %759 = vector.broadcast %758 : vector<4x1xf32> to vector<4x16xf32>
    %760 = arith.mulf %759, %663 : vector<4x16xf32>
    %761 = arith.addf %756, %760 : vector<4x16xf32>
    %762 = vector.broadcast %747 : vector<4x1xf32> to vector<4x16xf32>
    %763 = arith.mulf %762, %745 : vector<4x16xf32>
    %cst_130 = arith.constant 1.000000e+00 : f32
    %764 = vector.broadcast %cst_130 : f32 to vector<4x1xf32>
    %765 = arith.subf %764, %747 : vector<4x1xf32>
    %766 = vector.broadcast %765 : vector<4x1xf32> to vector<4x16xf32>
    %767 = arith.mulf %766, %670 : vector<4x16xf32>
    %768 = arith.addf %763, %767 : vector<4x16xf32>
    %769 = vector.broadcast %747 : vector<4x1xf32> to vector<4x16xf32>
    %770 = arith.mulf %769, %743 : vector<4x16xf32>
    %cst_131 = arith.constant 1.000000e+00 : f32
    %771 = vector.broadcast %cst_131 : f32 to vector<4x1xf32>
    %772 = arith.subf %771, %747 : vector<4x1xf32>
    %773 = vector.broadcast %772 : vector<4x1xf32> to vector<4x16xf32>
    %774 = arith.mulf %773, %677 : vector<4x16xf32>
    %775 = arith.addf %770, %774 : vector<4x16xf32>
    %776 = arith.addf %678, %754 : vector<4x16xf32>
    %777 = arith.addf %679, %768 : vector<4x16xf32>
    %778 = arith.maximumf %680, %754 : vector<4x16xf32>
    %779 = arith.maximumf %681, %768 : vector<4x16xf32>
    %780 = vector.extract_strided_slice %75 {offsets = [7, 0], sizes = [1, 64], strides = [1, 1]} : vector<32x64xf32> to vector<1x64xf32>
    %781 = vector.extract_strided_slice %75 {offsets = [15, 0], sizes = [1, 64], strides = [1, 1]} : vector<32x64xf32> to vector<1x64xf32>
    %782 = vector.extract_strided_slice %75 {offsets = [23, 0], sizes = [1, 64], strides = [1, 1]} : vector<32x64xf32> to vector<1x64xf32>
    %783 = vector.extract_strided_slice %75 {offsets = [31, 0], sizes = [1, 64], strides = [1, 1]} : vector<32x64xf32> to vector<1x64xf32>
    %784 = tpu.concatenate %780, %781, %782, %783 in 0 : vector<1x64xf32>, vector<1x64xf32>, vector<1x64xf32>, vector<1x64xf32> -> vector<4x64xf32>
    %cst_132 = arith.constant dense<0.000000e+00> : vector<4x64xf32>
    %785 = tpu.matmul %754, %83, %cst_132 {dimension_numbers = #tpu.dot_dimension_numbers<[1], [0], [0], [1], [0, 0, 1, 1], [], []>} : vector<4x16xf32>, vector<16x64xf32>, vector<4x64xf32> -> vector<4x64xf32>
    %786 = arith.addf %784, %785 : vector<4x64xf32>
    %787 = vector.extract_strided_slice %82 {offsets = [0, 0], sizes = [1, 64], strides = [1, 1]} : vector<32x64xf32> to vector<1x64xf32>
    %788 = vector.extract_strided_slice %82 {offsets = [8, 0], sizes = [1, 64], strides = [1, 1]} : vector<32x64xf32> to vector<1x64xf32>
    %789 = vector.extract_strided_slice %82 {offsets = [16, 0], sizes = [1, 64], strides = [1, 1]} : vector<32x64xf32> to vector<1x64xf32>
    %790 = vector.extract_strided_slice %82 {offsets = [24, 0], sizes = [1, 64], strides = [1, 1]} : vector<32x64xf32> to vector<1x64xf32>
    %791 = tpu.concatenate %787, %788, %789, %790 in 0 : vector<1x64xf32>, vector<1x64xf32>, vector<1x64xf32>, vector<1x64xf32> -> vector<4x64xf32>
    %cst_133 = arith.constant dense<0.000000e+00> : vector<4x64xf32>
    %792 = tpu.matmul %768, %84, %cst_133 {dimension_numbers = #tpu.dot_dimension_numbers<[1], [0], [0], [1], [0, 0, 1, 1], [], []>} : vector<4x16xf32>, vector<16x64xf32>, vector<4x64xf32> -> vector<4x64xf32>
    %793 = arith.addf %791, %792 : vector<4x64xf32>
    %794 = vector.extract_strided_slice %786 {offsets = [0, 0], sizes = [4, 16], strides = [1, 1]} : vector<4x64xf32> to vector<4x16xf32>
    %795 = arith.negf %794 : vector<4x16xf32>
    %796 = math.exp %795 : vector<4x16xf32>
    %cst_134 = arith.constant 1.000000e+00 : f32
    %797 = vector.broadcast %cst_134 : f32 to vector<4x16xf32>
    %798 = arith.addf %797, %796 : vector<4x16xf32>
    %799 = arith.divf %797, %798 : vector<4x16xf32>
    %800 = vector.extract_strided_slice %786 {offsets = [0, 16], sizes = [4, 16], strides = [1, 1]} : vector<4x64xf32> to vector<4x16xf32>
    %801 = arith.negf %800 : vector<4x16xf32>
    %802 = math.exp %801 : vector<4x16xf32>
    %cst_135 = arith.constant 1.000000e+00 : f32
    %803 = vector.broadcast %cst_135 : f32 to vector<4x16xf32>
    %804 = arith.addf %803, %802 : vector<4x16xf32>
    %805 = arith.divf %803, %804 : vector<4x16xf32>
    %806 = vector.extract_strided_slice %786 {offsets = [0, 32], sizes = [4, 16], strides = [1, 1]} : vector<4x64xf32> to vector<4x16xf32>
    %807 = math.tanh %806 : vector<4x16xf32>
    %808 = vector.extract_strided_slice %786 {offsets = [0, 48], sizes = [4, 16], strides = [1, 1]} : vector<4x64xf32> to vector<4x16xf32>
    %809 = arith.negf %808 : vector<4x16xf32>
    %810 = math.exp %809 : vector<4x16xf32>
    %cst_136 = arith.constant 1.000000e+00 : f32
    %811 = vector.broadcast %cst_136 : f32 to vector<4x16xf32>
    %812 = arith.addf %811, %810 : vector<4x16xf32>
    %813 = arith.divf %811, %812 : vector<4x16xf32>
    %814 = arith.mulf %805, %761 : vector<4x16xf32>
    %815 = arith.mulf %799, %807 : vector<4x16xf32>
    %816 = arith.addf %814, %815 : vector<4x16xf32>
    %817 = math.tanh %816 : vector<4x16xf32>
    %818 = arith.mulf %813, %817 : vector<4x16xf32>
    %819 = vector.extract_strided_slice %793 {offsets = [0, 0], sizes = [4, 16], strides = [1, 1]} : vector<4x64xf32> to vector<4x16xf32>
    %820 = arith.negf %819 : vector<4x16xf32>
    %821 = math.exp %820 : vector<4x16xf32>
    %cst_137 = arith.constant 1.000000e+00 : f32
    %822 = vector.broadcast %cst_137 : f32 to vector<4x16xf32>
    %823 = arith.addf %822, %821 : vector<4x16xf32>
    %824 = arith.divf %822, %823 : vector<4x16xf32>
    %825 = vector.extract_strided_slice %793 {offsets = [0, 16], sizes = [4, 16], strides = [1, 1]} : vector<4x64xf32> to vector<4x16xf32>
    %826 = arith.negf %825 : vector<4x16xf32>
    %827 = math.exp %826 : vector<4x16xf32>
    %cst_138 = arith.constant 1.000000e+00 : f32
    %828 = vector.broadcast %cst_138 : f32 to vector<4x16xf32>
    %829 = arith.addf %828, %827 : vector<4x16xf32>
    %830 = arith.divf %828, %829 : vector<4x16xf32>
    %831 = vector.extract_strided_slice %793 {offsets = [0, 32], sizes = [4, 16], strides = [1, 1]} : vector<4x64xf32> to vector<4x16xf32>
    %832 = math.tanh %831 : vector<4x16xf32>
    %833 = vector.extract_strided_slice %793 {offsets = [0, 48], sizes = [4, 16], strides = [1, 1]} : vector<4x64xf32> to vector<4x16xf32>
    %834 = arith.negf %833 : vector<4x16xf32>
    %835 = math.exp %834 : vector<4x16xf32>
    %cst_139 = arith.constant 1.000000e+00 : f32
    %836 = vector.broadcast %cst_139 : f32 to vector<4x16xf32>
    %837 = arith.addf %836, %835 : vector<4x16xf32>
    %838 = arith.divf %836, %837 : vector<4x16xf32>
    %839 = arith.mulf %830, %775 : vector<4x16xf32>
    %840 = arith.mulf %824, %832 : vector<4x16xf32>
    %841 = arith.addf %839, %840 : vector<4x16xf32>
    %842 = math.tanh %841 : vector<4x16xf32>
    %843 = arith.mulf %838, %842 : vector<4x16xf32>
    %844 = vector.extract_strided_slice %85 {offsets = [0, 7], sizes = [4, 1], strides = [1, 1]} : vector<4x8xf32> to vector<4x1xf32>
    %845 = vector.extract_strided_slice %85 {offsets = [0, 0], sizes = [4, 1], strides = [1, 1]} : vector<4x8xf32> to vector<4x1xf32>
    %846 = vector.broadcast %844 : vector<4x1xf32> to vector<4x16xf32>
    %847 = arith.mulf %846, %818 : vector<4x16xf32>
    %cst_140 = arith.constant 1.000000e+00 : f32
    %848 = vector.broadcast %cst_140 : f32 to vector<4x1xf32>
    %849 = arith.subf %848, %844 : vector<4x1xf32>
    %850 = vector.broadcast %849 : vector<4x1xf32> to vector<4x16xf32>
    %851 = arith.mulf %850, %754 : vector<4x16xf32>
    %852 = arith.addf %847, %851 : vector<4x16xf32>
    %853 = vector.broadcast %845 : vector<4x1xf32> to vector<4x16xf32>
    %854 = arith.mulf %853, %843 : vector<4x16xf32>
    %cst_141 = arith.constant 1.000000e+00 : f32
    %855 = vector.broadcast %cst_141 : f32 to vector<4x1xf32>
    %856 = arith.subf %855, %845 : vector<4x1xf32>
    %857 = vector.broadcast %856 : vector<4x1xf32> to vector<4x16xf32>
    %858 = arith.mulf %857, %768 : vector<4x16xf32>
    %859 = arith.addf %854, %858 : vector<4x16xf32>
    %860 = arith.addf %776, %852 : vector<4x16xf32>
    %861 = arith.addf %777, %859 : vector<4x16xf32>
    %862 = arith.maximumf %778, %852 : vector<4x16xf32>
    %863 = arith.maximumf %779, %859 : vector<4x16xf32>
    %cst_142 = arith.constant 1.250000e-01 : f32
    %864 = vector.broadcast %cst_142 : f32 to vector<4x16xf32>
    %865 = arith.mulf %860, %864 : vector<4x16xf32>
    %cst_143 = arith.constant 1.250000e-01 : f32
    %866 = vector.broadcast %cst_143 : f32 to vector<4x16xf32>
    %867 = arith.mulf %861, %866 : vector<4x16xf32>
    %868 = tpu.concatenate %865, %867, %862, %863 in 1 : vector<4x16xf32>, vector<4x16xf32>, vector<4x16xf32>, vector<4x16xf32> -> vector<4x64xf32>
    %869 = vector.extract_strided_slice %868 {offsets = [0, 0], sizes = [2, 64], strides = [1, 1]} : vector<4x64xf32> to vector<2x64xf32>
    %870 = vector.extract_strided_slice %868 {offsets = [2, 0], sizes = [2, 64], strides = [1, 1]} : vector<4x64xf32> to vector<2x64xf32>
    %871 = tpu.concatenate %869, %870 in 1 : vector<2x64xf32>, vector<2x64xf32> -> vector<2x128xf32>
    %c0_144 = arith.constant 0 : index
    %c0_145 = arith.constant 0 : index
    %872 = vector.load %arg12[%c0_144, %c0_145] : memref<128x32xf32, #tpu.memory_space<vmem>>, vector<128x32xf32>
    %873 = arith.truncf %871 : vector<2x128xf32> to vector<2x128xbf16>
    %874 = arith.truncf %872 : vector<128x32xf32> to vector<128x32xbf16>
    %cst_146 = arith.constant dense<0.000000e+00> : vector<2x32xf32>
    %875 = tpu.matmul %873, %874, %cst_146 {dimension_numbers = #tpu.dot_dimension_numbers<[1], [0], [0], [1], [0, 0, 1, 1], [], []>} : vector<2x128xbf16>, vector<128x32xbf16>, vector<2x32xf32> -> vector<2x32xf32>
    %c0_147 = arith.constant 0 : index
    %c0_148 = arith.constant 0 : index
    %876 = vector.load %arg13[%c0_147, %c0_148] : memref<1x32xf32, #tpu.memory_space<vmem>>, vector<1x32xf32>
    %877 = vector.broadcast %876 : vector<1x32xf32> to vector<2x32xf32>
    %878 = arith.addf %875, %877 : vector<2x32xf32>
    %879 = math.tanh %878 : vector<2x32xf32>
    %c0_149 = arith.constant 0 : index
    %c0_150 = arith.constant 0 : index
    %880 = vector.load %arg14[%c0_149, %c0_150] : memref<32x32xf32, #tpu.memory_space<vmem>>, vector<32x32xf32>
    %881 = arith.truncf %879 : vector<2x32xf32> to vector<2x32xbf16>
    %882 = arith.truncf %880 : vector<32x32xf32> to vector<32x32xbf16>
    %cst_151 = arith.constant dense<0.000000e+00> : vector<2x32xf32>
    %883 = tpu.matmul %881, %882, %cst_151 {dimension_numbers = #tpu.dot_dimension_numbers<[1], [0], [0], [1], [0, 0, 1, 1], [], []>} : vector<2x32xbf16>, vector<32x32xbf16>, vector<2x32xf32> -> vector<2x32xf32>
    %c0_152 = arith.constant 0 : index
    %c0_153 = arith.constant 0 : index
    %884 = vector.load %arg15[%c0_152, %c0_153] : memref<1x32xf32, #tpu.memory_space<vmem>>, vector<1x32xf32>
    %885 = vector.broadcast %884 : vector<1x32xf32> to vector<2x32xf32>
    %886 = arith.addf %883, %885 : vector<2x32xf32>
    %887 = math.tanh %886 : vector<2x32xf32>
    %c0_154 = arith.constant 0 : index
    %c0_155 = arith.constant 0 : index
    %888 = vector.load %arg16[%c0_154, %c0_155] : memref<32x4xf32, #tpu.memory_space<vmem>>, vector<32x4xf32>
    %889 = arith.truncf %887 : vector<2x32xf32> to vector<2x32xbf16>
    %890 = arith.truncf %888 : vector<32x4xf32> to vector<32x4xbf16>
    %cst_156 = arith.constant dense<0.000000e+00> : vector<2x4xf32>
    %891 = tpu.matmul %889, %890, %cst_156 {dimension_numbers = #tpu.dot_dimension_numbers<[1], [0], [0], [1], [0, 0, 1, 1], [], []>} : vector<2x32xbf16>, vector<32x4xbf16>, vector<2x4xf32> -> vector<2x4xf32>
    %c0_157 = arith.constant 0 : index
    %c0_158 = arith.constant 0 : index
    %892 = vector.load %arg17[%c0_157, %c0_158] : memref<1x4xf32, #tpu.memory_space<vmem>>, vector<1x4xf32>
    %893 = vector.broadcast %892 : vector<1x4xf32> to vector<2x4xf32>
    %894 = arith.addf %891, %893 : vector<2x4xf32>
    %c0_159 = arith.constant 0 : index
    %c0_160 = arith.constant 0 : index
    %895 = vector.load %arg18[%c0_159, %c0_160] : memref<2x4xf32, #tpu.memory_space<vmem>>, vector<2x4xf32>
    tpu.vector_store %arg18[%c0_159, %c0_160], %894 {strides = array<i32>} : memref<2x4xf32, #tpu.memory_space<vmem>>, vector<2x4xf32>,
    return
  }
}

</mosaic_0001>

<llo_original>
// kernel: sent_matcher_forward.1
$region0: #{sent_matcher_forward.1}
  #allocation0 [shape = 'u32[]', space=smem, size = 0x4, offset = 0x4, fixed_abs, tag = 'smem constant byte address 0x4 - core index']
  #allocation1 [shape = 'u32[72,128]{1,0:T(1,128)}', space=vmem, size = 0x9000, scoped, tag = 'internal scratch']
  %s0 = inlined_call_operand.vmem [shape: f32[4,8,32], index: 0, kind: input, shape index: {}]
  %s1 = inlined_call_operand.vmem [shape: f32[4,1,8], index: 1, kind: input, shape index: {}]
  %s2 = inlined_call_operand.vmem [shape: f32[2,8,1], index: 2, kind: input, shape index: {}]
  %s3 = inlined_call_operand.vmem [shape: f32[4,8], index: 3, kind: input, shape index: {}]
  %s4 = inlined_call_operand.vmem [shape: f32[32,32], index: 4, kind: input, shape index: {}]
  %s5 = inlined_call_operand.vmem [shape: f32[1,32], index: 5, kind: input, shape index: {}]
  %s6 = inlined_call_operand.vmem [shape: f32[128,64], index: 6, kind: input, shape index: {}]
  %s7 = inlined_call_operand.vmem [shape: f32[16,64], index: 7, kind: input, shape index: {}]
  %s8 = inlined_call_operand.vmem [shape: f32[1,64], index: 8, kind: input, shape index: {}]
  %s9 = inlined_call_operand.vmem [shape: f32[128,64], index: 9, kind: input, shape index: {}]
  %s10 = inlined_call_operand.vmem [shape: f32[16,64], index: 10, kind: input, shape index: {}]
  %s11 = inlined_call_operand.vmem [shape: f32[1,64], index: 11, kind: input, shape index: {}]
  %s12 = inlined_call_operand.vmem [shape: f32[128,32], index: 12, kind: input, shape index: {}]
  %s13 = inlined_call_operand.vmem [shape: f32[1,32], index: 13, kind: input, shape index: {}]
  %s14 = inlined_call_operand.vmem [shape: f32[32,32], index: 14, kind: input, shape index: {}]
  %s15 = inlined_call_operand.vmem [shape: f32[1,32], index: 15, kind: input, shape index: {}]
  %s16 = inlined_call_operand.vmem [shape: f32[32,4], index: 16, kind: input, shape index: {}]
  %s17 = inlined_call_operand.vmem [shape: f32[1,4], index: 17, kind: input, shape index: {}]
  %s18 = inlined_call_operand.hbm [shape: f32[2,4], index: 18, kind: output, shape index: {}]
  %s19 = sld [smem:[#allocation0]]
  $region82: #{sent_matcher_forward.1} parent=0
    _
  %s21 = ssub.s32 1, %s19
  %s22 = scalar_select 0, %s21, %s19
  $region1: #{sent_matcher_forward.1} parent=0
    #allocation2 [shape = 'u8[1024]{0}', space=vmem, size = 0x400, scoped, tag = 'output window, operand 0, single buffered']
    #allocation3 [shape = 's32[1]{0}', space=sflag, size = 0x4, scoped, tag = 'scoped memory for sent_matcher_forward.1']
    %23 = vsyncpa [#allocation3], 0
    // Predicated region
    $region2: #{sent_matcher_forward.1} parent=1 // pred_check
      _
    $region3: #{sent_matcher_forward.1} parent=1 // pred_check_branch
      %25 = sbr.rel (0) target = $region5
    $region4: #{sent_matcher_forward.1} parent=1 // pred_region
      _
    $region5: #{sent_matcher_forward.1} parent=1 // pred_fallthru
      _
    // Predicated region
    $region6: #{sent_matcher_forward.1} parent=1 // pred_check
      _
    $region7: #{sent_matcher_forward.1} parent=1 // pred_check_branch
      %27 = sbr.rel (0) target = $region9
    $region8: #{sent_matcher_forward.1} parent=1 // pred_region
      _
    $region9: #{sent_matcher_forward.1} parent=1 // pred_fallthru
      _
    // Predicated region
    $region10: #{sent_matcher_forward.1} parent=1 // pred_check
      _
    $region11: #{sent_matcher_forward.1} parent=1 // pred_check_branch
      %29 = sbr.rel (0) target = $region13
    $region12: #{sent_matcher_forward.1} parent=1 // pred_region
      _
    $region13: #{sent_matcher_forward.1} parent=1 // pred_fallthru
      _
    // Predicated region
    $region14: #{sent_matcher_forward.1} parent=1 // pred_check
      _
    $region15: #{sent_matcher_forward.1} parent=1 // pred_check_branch
      %31 = sbr.rel (0) target = $region17
    $region16: #{sent_matcher_forward.1} parent=1 // pred_region
      _
    $region17: #{sent_matcher_forward.1} parent=1 // pred_fallthru
      _
    // Predicated region
    $region18: #{sent_matcher_forward.1} parent=1 // pred_check
      _
    $region19: #{sent_matcher_forward.1} parent=1 // pred_check_branch
      %33 = sbr.rel (0) target = $region21
    $region20: #{sent_matcher_forward.1} parent=1 // pred_region
      _
    $region21: #{sent_matcher_forward.1} parent=1 // pred_fallthru
      _
    // Predicated region
    $region22: #{sent_matcher_forward.1} parent=1 // pred_check
      _
    $region23: #{sent_matcher_forward.1} parent=1 // pred_check_branch
      %35 = sbr.rel (0) target = $region25
    $region24: #{sent_matcher_forward.1} parent=1 // pred_region
      _
    $region25: #{sent_matcher_forward.1} parent=1 // pred_fallthru
      _
    // Predicated region
    $region26: #{sent_matcher_forward.1} parent=1 // pred_check
      _
    $region27: #{sent_matcher_forward.1} parent=1 // pred_check_branch
      %37 = sbr.rel (0) target = $region29
    $region28: #{sent_matcher_forward.1} parent=1 // pred_region
      _
    $region29: #{sent_matcher_forward.1} parent=1 // pred_fallthru
      _
    // Predicated region
    $region30: #{sent_matcher_forward.1} parent=1 // pred_check
      _
    $region31: #{sent_matcher_forward.1} parent=1 // pred_check_branch
      %39 = sbr.rel (0) target = $region33
    $region32: #{sent_matcher_forward.1} parent=1 // pred_region
      _
    $region33: #{sent_matcher_forward.1} parent=1 // pred_fallthru
      _
    // Predicated region
    $region34: #{sent_matcher_forward.1} parent=1 // pred_check
      _
    $region35: #{sent_matcher_forward.1} parent=1 // pred_check_branch
      %41 = sbr.rel (0) target = $region37
    $region36: #{sent_matcher_forward.1} parent=1 // pred_region
      _
    $region37: #{sent_matcher_forward.1} parent=1 // pred_fallthru
      _
    // Predicated region
    $region38: #{sent_matcher_forward.1} parent=1 // pred_check
      _
    $region39: #{sent_matcher_forward.1} parent=1 // pred_check_branch
      %43 = sbr.rel (0) target = $region41
    $region40: #{sent_matcher_forward.1} parent=1 // pred_region
      _
    $region41: #{sent_matcher_forward.1} parent=1 // pred_fallthru
      _
    // Predicated region
    $region42: #{sent_matcher_forward.1} parent=1 // pred_check
      _
    $region43: #{sent_matcher_forward.1} parent=1 // pred_check_branch
      %45 = sbr.rel (0) target = $region45
    $region44: #{sent_matcher_forward.1} parent=1 // pred_region
      _
    $region45: #{sent_matcher_forward.1} parent=1 // pred_fallthru
      _
    // Predicated region
    $region46: #{sent_matcher_forward.1} parent=1 // pred_check
      _
    $region47: #{sent_matcher_forward.1} parent=1 // pred_check_branch
      %47 = sbr.rel (0) target = $region49
    $region48: #{sent_matcher_forward.1} parent=1 // pred_region
      _
    $region49: #{sent_matcher_forward.1} parent=1 // pred_fallthru
      _
    // Predicated region
    $region50: #{sent_matcher_forward.1} parent=1 // pred_check
      _
    $region51: #{sent_matcher_forward.1} parent=1 // pred_check_branch
      %49 = sbr.rel (0) target = $region53
    $region52: #{sent_matcher_forward.1} parent=1 // pred_region
      _
    $region53: #{sent_matcher_forward.1} parent=1 // pred_fallthru
      _
    // Predicated region
    $region54: #{sent_matcher_forward.1} parent=1 // pred_check
      _
    $region55: #{sent_matcher_forward.1} parent=1 // pred_check_branch
      %51 = sbr.rel (0) target = $region57
    $region56: #{sent_matcher_forward.1} parent=1 // pred_region
      _
    $region57: #{sent_matcher_forward.1} parent=1 // pred_fallthru
      _
    // Predicated region
    $region58: #{sent_matcher_forward.1} parent=1 // pred_check
      _
    $region59: #{sent_matcher_forward.1} parent=1 // pred_check_branch
      %53 = sbr.rel (0) target = $region61
    $region60: #{sent_matcher_forward.1} parent=1 // pred_region
      _
    $region61: #{sent_matcher_forward.1} parent=1 // pred_fallthru
      _
    // Predicated region
    $region62: #{sent_matcher_forward.1} parent=1 // pred_check
      _
    $region63: #{sent_matcher_forward.1} parent=1 // pred_check_branch
      %55 = sbr.rel (0) target = $region65
    $region64: #{sent_matcher_forward.1} parent=1 // pred_region
      _
    $region65: #{sent_matcher_forward.1} parent=1 // pred_fallthru
      _
    // Predicated region
    $region66: #{sent_matcher_forward.1} parent=1 // pred_check
      _
    $region67: #{sent_matcher_forward.1} parent=1 // pred_check_branch
      %57 = sbr.rel (0) target = $region69
    $region68: #{sent_matcher_forward.1} parent=1 // pred_region
      _
    $region69: #{sent_matcher_forward.1} parent=1 // pred_fallthru
      _
    // Predicated region
    $region70: #{sent_matcher_forward.1} parent=1 // pred_check
      _
    $region71: #{sent_matcher_forward.1} parent=1 // pred_check_branch
      %59 = sbr.rel (0) target = $region73
    $region72: #{sent_matcher_forward.1} parent=1 // pred_region
      _
    $region73: #{sent_matcher_forward.1} parent=1 // pred_fallthru
      _
    %v61 = vld [vmem:[%s0] sm:$0xff]
    %v62 = vld [vmem:[%s0 + $0x8] sm:$0xff]
    %v63 = vld [vmem:[%s0 + $0x10] sm:$0xff]
    %v64 = vld [vmem:[%s0 + $0x18] sm:$0xff]
    %v65 = vld [vmem:[%s1] sm:$0x1]
    %v66 = vld [vmem:[%s1 + $0x1] sm:$0x1]
    %v67 = vld [vmem:[%s1 + $0x2] sm:$0x1]
    %v68 = vld [vmem:[%s1 + $0x3] sm:$0x1]
    %v69 = vpack.c.bf16 %v61, %v61
    %v70 = vpack.c.bf16 %v62, %v62
    %v71 = vpack.c.bf16 %v63, %v63
    %v72 = vpack.c.bf16 %v64, %v64
    %vm73 = vcmask 261120
    %v75 = vsel %vm73, %v69, 0
    %77 = vmatpush.bf16.xpose.msra.mxu0 0
    %78 = vmatpush.bf16.xpose.msra.mxu0 0
    %79 = vmatpush.bf16.xpose.msra.mxu0 0
    %80 = vmatpush.bf16.xpose.msra.mxu0 0
    %81 = vmatpush.bf16.xpose.msra.mxu0 0
    %82 = vmatpush.bf16.xpose.msra.mxu0 0
    %83 = vmatpush.bf16.xpose.msra.mxu0 0
    %84 = vmatpush.bf16.xpose.msra.mxu0 %v75
    %85 = vmatmul.bf16.gmra.mxu0 %v75
    %v86 = vpop.f32.mrf.mxu0
    %v87 = vadd.f32 0.0, %v86
    %v88 = vpop.f32.mrf.mxu0
    %89 = vdwg.mxu0
    %v91 = vsel %vm73, %v70, 0
    %93 = vmatpush.bf16.xpose.msra.mxu0 0
    %94 = vmatpush.bf16.xpose.msra.mxu0 0
    %95 = vmatpush.bf16.xpose.msra.mxu0 0
    %96 = vmatpush.bf16.xpose.msra.mxu0 0
    %97 = vmatpush.bf16.xpose.msra.mxu0 0
    %98 = vmatpush.bf16.xpose.msra.mxu0 0
    %99 = vmatpush.bf16.xpose.msra.mxu0 0
    %100 = vmatpush.bf16.xpose.msra.mxu0 %v91
    %101 = vmatmul.bf16.gmra.mxu0 %v91
    %v102 = vpop.f32.mrf.mxu0
    %v103 = vadd.f32 0.0, %v102
    %v104 = vpop.f32.mrf.mxu0
    %105 = vdwg.mxu0
    %v107 = vsel %vm73, %v71, 0
    %109 = vmatpush.bf16.xpose.msra.mxu0 0
    %110 = vmatpush.bf16.xpose.msra.mxu0 0
    %111 = vmatpush.bf16.xpose.msra.mxu0 0
    %112 = vmatpush.bf16.xpose.msra.mxu0 0
    %113 = vmatpush.bf16.xpose.msra.mxu0 0
    %114 = vmatpush.bf16.xpose.msra.mxu0 0
    %115 = vmatpush.bf16.xpose.msra.mxu0 0
    %116 = vmatpush.bf16.xpose.msra.mxu0 %v107
    %117 = vmatmul.bf16.gmra.mxu0 %v107
    %v118 = vpop.f32.mrf.mxu0
    %v119 = vadd.f32 0.0, %v118
    %v120 = vpop.f32.mrf.mxu0
    %121 = vdwg.mxu0
    %v123 = vsel %vm73, %v72, 0
    %125 = vmatpush.bf16.xpose.msra.mxu0 0
    %126 = vmatpush.bf16.xpose.msra.mxu0 0
    %127 = vmatpush.bf16.xpose.msra.mxu0 0
    %128 = vmatpush.bf16.xpose.msra.mxu0 0
    %129 = vmatpush.bf16.xpose.msra.mxu0 0
    %130 = vmatpush.bf16.xpose.msra.mxu0 0
    %131 = vmatpush.bf16.xpose.msra.mxu0 0
    %132 = vmatpush.bf16.xpose.msra.mxu0 %v123
    %133 = vmatmul.bf16.gmra.mxu0 %v123
    %v134 = vpop.f32.mrf.mxu0
    %v135 = vadd.f32 0.0, %v134
    %v136 = vpop.f32.mrf.mxu0
    %137 = vdwg.mxu0
    %v138 = vmul.f32 %v87, 0.17677669
    %v139 = vmul.f32 %v103, 0.17677669
    %v140 = vmul.f32 %v119, 0.17677669
    %v141 = vmul.f32 %v135, 0.17677669
    %v146 = vperm.slane %v65, 0
    %v147 = vperm.slane %v66, 0
    %v148 = vperm.slane %v67, 0
    %v149 = vperm.slane %v68, 0
    %v154 = vadd.f32 %v138, %v146
    %v155 = vadd.f32 %v139, %v147
    %v156 = vadd.f32 %v140, %v148
    %v157 = vadd.f32 %v141, %v149
    %vm158 = vcmask 64512
    %v159 = vsel %vm158, %v154, -inf
    %160 = vmax.xlane.f32.xlu0 %v159
    %v161 = vpop.xlane.xlu0 %160
    %v162 = vsel %vm158, %v155, -inf
    %163 = vmax.xlane.f32.xlu0 %v162
    %v164 = vpop.xlane.xlu0 %163
    %v165 = vsel %vm158, %v156, -inf
    %166 = vmax.xlane.f32.xlu0 %v165
    %v167 = vpop.xlane.xlu0 %166
    %v168 = vsel %vm158, %v157, -inf
    %169 = vmax.xlane.f32.xlu0 %v168
    %v170 = vpop.xlane.xlu0 %169
    %v171 = vsub.f32 %v154, %v161
    %v172 = vsub.f32 %v155, %v164
    %v173 = vsub.f32 %v156, %v167
    %v174 = vsub.f32 %v157, %v170
    %v175 = vmul.f32 %v171, 1.442695
    %v176 = vpow.pop %v175
    %v177 = vmul.f32 %v172, 1.442695
    %v178 = vpow.pop %v177
    %v179 = vmul.f32 %v173, 1.442695
    %v180 = vpow.pop %v179
    %v181 = vmul.f32 %v174, 1.442695
    %v182 = vpow.pop %v181
    %v183 = vsel %vm158, %v176, 0.0
    %184 = vadd.xlane.f32.xlu0 %v183
    %v185 = vpop.xlane.xlu0 %184
    %v186 = vsel %vm158, %v178, 0.0
    %187 = vadd.xlane.f32.xlu0 %v186
    %v188 = vpop.xlane.xlu0 %187
    %v189 = vsel %vm158, %v180, 0.0
    %190 = vadd.xlane.f32.xlu0 %v189
    %v191 = vpop.xlane.xlu0 %190
    %v192 = vsel %vm158, %v182, 0.0
    %193 = vadd.xlane.f32.xlu0 %v192
    %v194 = vpop.xlane.xlu0 %193
    %v195 = vrcp.pop %v185
    %v196 = vmul.f32 %v185, %v195
    %v197 = vsub.f32 1.0, %v196
    %v198 = vmul.f32 %v195, %v197
    %v199 = vadd.f32 %v195, %v198
    %vm200 = vweird.f32 %v185
    %vm201 = vweird.f32 %v195
    %vm202 = vmor %vm200, %vm201
    %v203 = vsel %vm202, %v195, %v199
    %v204 = vand.u32 2147483647, %v185
    %vm205 = vcmp.eq.f32.partialorder %v204, 8.507059e+37
    %v206 = vand.u32 %v185, 2147483648
    %v207 = vor.u32 1.1754944e-38, %v206
    %v208 = vsel %vm205, %v207, %v203
    %v209 = vmul.f32 %v176, %v208
    %v210 = vrcp.pop %v188
    %v211 = vmul.f32 %v188, %v210
    %v212 = vsub.f32 1.0, %v211
    %v213 = vmul.f32 %v210, %v212
    %v214 = vadd.f32 %v210, %v213
    %vm215 = vweird.f32 %v188
    %vm216 = vweird.f32 %v210
    %vm217 = vmor %vm215, %vm216
    %v218 = vsel %vm217, %v210, %v214
    %v219 = vand.u32 2147483647, %v188
    %vm220 = vcmp.eq.f32.partialorder %v219, 8.507059e+37
    %v221 = vand.u32 %v188, 2147483648
    %v222 = vor.u32 1.1754944e-38, %v221
    %v223 = vsel %vm220, %v222, %v218
    %v224 = vmul.f32 %v178, %v223
    %v225 = vrcp.pop %v191
    %v226 = vmul.f32 %v191, %v225
    %v227 = vsub.f32 1.0, %v226
    %v228 = vmul.f32 %v225, %v227
    %v229 = vadd.f32 %v225, %v228
    %vm230 = vweird.f32 %v191
    %vm231 = vweird.f32 %v225
    %vm232 = vmor %vm230, %vm231
    %v233 = vsel %vm232, %v225, %v229
    %v234 = vand.u32 2147483647, %v191
    %vm235 = vcmp.eq.f32.partialorder %v234, 8.507059e+37
    %v236 = vand.u32 %v191, 2147483648
    %v237 = vor.u32 1.1754944e-38, %v236
    %v238 = vsel %vm235, %v237, %v233
    %v239 = vmul.f32 %v180, %v238
    %v240 = vrcp.pop %v194
    %v241 = vmul.f32 %v194, %v240
    %v242 = vsub.f32 1.0, %v241
    %v243 = vmul.f32 %v240, %v242
    %v244 = vadd.f32 %v240, %v243
    %vm245 = vweird.f32 %v194
    %vm246 = vweird.f32 %v240
    %vm247 = vmor %vm245, %vm246
    %v248 = vsel %vm247, %v240, %v244
    %v249 = vand.u32 2147483647, %v194
    %vm250 = vcmp.eq.f32.partialorder %v249, 8.507059e+37
    %v251 = vand.u32 %v194, 2147483648
    %v252 = vor.u32 1.1754944e-38, %v251
    %v253 = vsel %vm250, %v252, %v248
    %v254 = vmul.f32 %v182, %v253
    %v255 = vpack.c.bf16 %v209, %v209
    %v256 = vpack.c.bf16 %v224, %v224
    %v257 = vpack.c.bf16 %v239, %v239
    %v258 = vpack.c.bf16 %v254, %v254
    %v260 = vsel %vm158, %v255, 0
    %vm262 = vcmask 1043456
    %v263 = vsel %vm262, %v69, 0
    %265 = vmatpush.bf16.msra.mxu0 0
    %266 = vmatpush.bf16.msra.mxu0 0
    %267 = vmatpush.bf16.msra.mxu0 0
    %268 = vmatpush.bf16.msra.mxu0 0
    %269 = vmatpush.bf16.msra.mxu0 0
    %270 = vmatpush.bf16.msra.mxu0 0
    %271 = vmatpush.bf16.msra.mxu0 0
    %272 = vmatpush.bf16.msra.mxu0 %v263
    %273 = vmatmul.bf16.gmra.mxu0 %v260
    %v274 = vpop.f32.mrf.mxu0
    %v275 = vadd.f32 0.0, %v274
    %v276 = vpop.f32.mrf.mxu0
    %277 = vdwg.mxu0
    %v279 = vsel %vm158, %v256, 0
    %v281 = vsel %vm262, %v70, 0
    %283 = vmatpush.bf16.msra.mxu0 0
    %284 = vmatpush.bf16.msra.mxu0 0
    %285 = vmatpush.bf16.msra.mxu0 0
    %286 = vmatpush.bf16.msra.mxu0 0
    %287 = vmatpush.bf16.msra.mxu0 0
    %288 = vmatpush.bf16.msra.mxu0 0
    %289 = vmatpush.bf16.msra.mxu0 0
    %290 = vmatpush.bf16.msra.mxu0 %v281
    %291 = vmatmul.bf16.gmra.mxu0 %v279
    %v292 = vpop.f32.mrf.mxu0
    %v293 = vadd.f32 0.0, %v292
    %v294 = vpop.f32.mrf.mxu0
    %295 = vdwg.mxu0
    %v297 = vsel %vm158, %v257, 0
    %v299 = vsel %vm262, %v71, 0
    %301 = vmatpush.bf16.msra.mxu0 0
    %302 = vmatpush.bf16.msra.mxu0 0
    %303 = vmatpush.bf16.msra.mxu0 0
    %304 = vmatpush.bf16.msra.mxu0 0
    %305 = vmatpush.bf16.msra.mxu0 0
    %306 = vmatpush.bf16.msra.mxu0 0
    %307 = vmatpush.bf16.msra.mxu0 0
    %308 = vmatpush.bf16.msra.mxu0 %v299
    %309 = vmatmul.bf16.gmra.mxu0 %v297
    %v310 = vpop.f32.mrf.mxu0
    %v311 = vadd.f32 0.0, %v310
    %v312 = vpop.f32.mrf.mxu0
    %313 = vdwg.mxu0
    %v315 = vsel %vm158, %v258, 0
    %v317 = vsel %vm262, %v72, 0
    %319 = vmatpush.bf16.msra.mxu0 0
    %320 = vmatpush.bf16.msra.mxu0 0
    %321 = vmatpush.bf16.msra.mxu0 0
    %322 = vmatpush.bf16.msra.mxu0 0
    %323 = vmatpush.bf16.msra.mxu0 0
    %324 = vmatpush.bf16.msra.mxu0 0
    %325 = vmatpush.bf16.msra.mxu0 0
    %326 = vmatpush.bf16.msra.mxu0 %v317
    %327 = vmatmul.bf16.gmra.mxu0 %v315
    %v328 = vpop.f32.mrf.mxu0
    %v329 = vadd.f32 0.0, %v328
    %v330 = vpop.f32.mrf.mxu0
    %331 = vdwg.mxu0
    %v332 = vadd.f32 %v61, %v275
    %v333 = vadd.f32 %v62, %v293
    %v334 = vadd.f32 %v63, %v311
    %v335 = vadd.f32 %v64, %v329
    %v336 = vld [vmem:[%s4] sm:$0xff]
    %v337 = vld [vmem:[%s4 + $0x8] sm:$0xff]
    %v338 = vld [vmem:[%s4 + $0x10] sm:$0xff]
    %v339 = vld [vmem:[%s4 + $0x18] sm:$0xff]
    %v340 = vpack.c.bf16 %v333, %v332
    %v341 = vpack.c.bf16 %v335, %v334
    %v342 = vpack.c.bf16 %v337, %v336
    %v343 = vpack.c.bf16 %v339, %v338
    %v344 = vld [vmem:[%s5] sm:$0x1]
    %v346 = vperm.slane %v344, 0
    %v349 = vsel %vm73, %v340, 0
    %v352 = vsel %vm73, %v341, 0
    %354 = vmatpush.bf16.msra.mxu0 0
    %355 = vmatpush.bf16.msra.mxu0 0
    %356 = vmatpush.bf16.msra.mxu0 0
    %357 = vmatpush.bf16.msra.mxu0 0
    %358 = vmatpush.bf16.msra.mxu0 0
    %359 = vmatpush.bf16.msra.mxu0 0
    %360 = vmatpush.bf16.msra.mxu0 %v343
    %361 = vmatpush.bf16.msra.mxu0 %v342
    %362 = vmatmul.bf16.gmra.mxu0 %v349
    %v363 = vpop.f32.mrf.mxu0
    %v364 = vadd.f32 %v346, %v363
    %v365 = vpop.f32.mrf.mxu0
    %v366 = vadd.f32 %v346, %v365
    %367 = vmatmul.bf16.gmra.mxu0 %v352
    %v368 = vpop.f32.mrf.mxu0
    %v369 = vadd.f32 %v346, %v368
    %v370 = vpop.f32.mrf.mxu0
    %v371 = vadd.f32 %v346, %v370
    %372 = vdwg.mxu0
    %v373 = vtanh.pop %v364
    %v374 = vtanh.pop %v366
    %v375 = vtanh.pop %v369
    %v376 = vtanh.pop %v371
    %v377 = vadd.f32 %v332, %v373
    %v378 = vadd.f32 %v333, %v374
    %v379 = vadd.f32 %v334, %v375
    %v380 = vadd.f32 %v335, %v376
    %v381 = vpack.c.bf16 %v377, %v377
    %v382 = vpack.c.bf16 %v378, %v378
    %v383 = vpack.c.bf16 %v379, %v379
    %v384 = vpack.c.bf16 %v380, %v380
    %v386 = vsel %vm73, %v381, 0
    %v389 = vsel %vm73, %v383, 0
    %391 = vmatpush.bf16.xpose.msra.mxu0 0
    %392 = vmatpush.bf16.xpose.msra.mxu0 0
    %393 = vmatpush.bf16.xpose.msra.mxu0 0
    %394 = vmatpush.bf16.xpose.msra.mxu0 0
    %395 = vmatpush.bf16.xpose.msra.mxu0 0
    %396 = vmatpush.bf16.xpose.msra.mxu0 0
    %397 = vmatpush.bf16.xpose.msra.mxu0 0
    %398 = vmatpush.bf16.xpose.msra.mxu0 %v389
    %399 = vmatmul.bf16.gmra.mxu0 %v386
    %v400 = vpop.f32.mrf.mxu0
    %v401 = vadd.f32 0.0, %v400
    %v402 = vpop.f32.mrf.mxu0
    %403 = vdwg.mxu0
    %v405 = vsel %vm73, %v382, 0
    %v408 = vsel %vm73, %v384, 0
    %410 = vmatpush.bf16.xpose.msra.mxu0 0
    %411 = vmatpush.bf16.xpose.msra.mxu0 0
    %412 = vmatpush.bf16.xpose.msra.mxu0 0
    %413 = vmatpush.bf16.xpose.msra.mxu0 0
    %414 = vmatpush.bf16.xpose.msra.mxu0 0
    %415 = vmatpush.bf16.xpose.msra.mxu0 0
    %416 = vmatpush.bf16.xpose.msra.mxu0 0
    %417 = vmatpush.bf16.xpose.msra.mxu0 %v408
    %418 = vmatmul.bf16.gmra.mxu0 %v405
    %v419 = vpop.f32.mrf.mxu0
    %v420 = vadd.f32 0.0, %v419
    %v421 = vpop.f32.mrf.mxu0
    %422 = vdwg.mxu0
    %v423 = vadd.f32 %v401, %v148
    %v424 = vadd.f32 %v420, %v149
    %v425 = vsel %vm158, %v423, -inf
    %426 = vmax.xlane.f32.xlu0 %v425
    %v427 = vpop.xlane.xlu0 %426
    %v428 = vsel %vm158, %v424, -inf
    %429 = vmax.xlane.f32.xlu0 %v428
    %v430 = vpop.xlane.xlu0 %429
    %v431 = vsub.f32 %v423, %v427
    %v432 = vsub.f32 %v424, %v430
    %v433 = vmul.f32 %v431, 1.442695
    %v434 = vpow.pop %v433
    %v435 = vmul.f32 %v432, 1.442695
    %v436 = vpow.pop %v435
    %v437 = vsel %vm158, %v434, 0.0
    %438 = vadd.xlane.f32.xlu0 %v437
    %v439 = vpop.xlane.xlu0 %438
    %v440 = vsel %vm158, %v436, 0.0
    %441 = vadd.xlane.f32.xlu0 %v440
    %v442 = vpop.xlane.xlu0 %441
    %v443 = vrcp.pop %v439
    %v444 = vmul.f32 %v439, %v443
    %v445 = vsub.f32 1.0, %v444
    %v446 = vmul.f32 %v443, %v445
    %v447 = vadd.f32 %v443, %v446
    %vm448 = vweird.f32 %v439
    %vm449 = vweird.f32 %v443
    %vm450 = vmor %vm448, %vm449
    %v451 = vsel %vm450, %v443, %v447
    %v452 = vand.u32 2147483647, %v439
    %vm453 = vcmp.eq.f32.partialorder %v452, 8.507059e+37
    %v454 = vand.u32 %v439, 2147483648
    %v455 = vor.u32 1.1754944e-38, %v454
    %v456 = vsel %vm453, %v455, %v451
    %v457 = vmul.f32 %v434, %v456
    %v458 = vrcp.pop %v442
    %v459 = vmul.f32 %v442, %v458
    %v460 = vsub.f32 1.0, %v459
    %v461 = vmul.f32 %v458, %v460
    %v462 = vadd.f32 %v458, %v461
    %vm463 = vweird.f32 %v442
    %vm464 = vweird.f32 %v458
    %vm465 = vmor %vm463, %vm464
    %v466 = vsel %vm465, %v458, %v462
    %v467 = vand.u32 2147483647, %v442
    %vm468 = vcmp.eq.f32.partialorder %v467, 8.507059e+37
    %v469 = vand.u32 %v442, 2147483648
    %v470 = vor.u32 1.1754944e-38, %v469
    %v471 = vsel %vm468, %v470, %v466
    %v472 = vmul.f32 %v436, %v471
    %v473 = vpack.c.bf16 %v457, %v457
    %v474 = vpack.c.bf16 %v472, %v472
    %v476 = vsel %vm158, %v473, 0
    %v478 = vsel %vm262, %v383, 0
    %480 = vmatpush.bf16.msra.mxu0 0
    %481 = vmatpush.bf16.msra.mxu0 0
    %482 = vmatpush.bf16.msra.mxu0 0
    %483 = vmatpush.bf16.msra.mxu0 0
    %484 = vmatpush.bf16.msra.mxu0 0
    %485 = vmatpush.bf16.msra.mxu0 0
    %486 = vmatpush.bf16.msra.mxu0 0
    %487 = vmatpush.bf16.msra.mxu0 %v478
    %488 = vmatmul.bf16.gmra.mxu0 %v476
    %v489 = vpop.f32.mrf.mxu0
    %v490 = vadd.f32 0.0, %v489
    %v491 = vpop.f32.mrf.mxu0
    %492 = vdwg.mxu0
    %v494 = vsel %vm158, %v474, 0
    %v496 = vsel %vm262, %v384, 0
    %498 = vmatpush.bf16.msra.mxu0 0
    %499 = vmatpush.bf16.msra.mxu0 0
    %500 = vmatpush.bf16.msra.mxu0 0
    %501 = vmatpush.bf16.msra.mxu0 0
    %502 = vmatpush.bf16.msra.mxu0 0
    %503 = vmatpush.bf16.msra.mxu0 0
    %504 = vmatpush.bf16.msra.mxu0 0
    %505 = vmatpush.bf16.msra.mxu0 %v496
    %506 = vmatmul.bf16.gmra.mxu0 %v494
    %v507 = vpop.f32.mrf.mxu0
    %v508 = vadd.f32 0.0, %v507
    %v509 = vpop.f32.mrf.mxu0
    %510 = vdwg.mxu0
    %v511 = vld [vmem:[%s2] sm:$0xff]
    %v512 = vld [vmem:[%s2 + $0x8] sm:$0xff]
    %514 = vset.pattern.permute.xlu0 0
    %515 = vperm.xlu0 %514, %v511
    %v516 = vpop.permute.xlu0 %515
    %519 = vset.pattern.permute.xlu0 0
    %520 = vperm.xlu0 %519, %v512
    %v521 = vpop.permute.xlu0 %520
    %v523 = vadd.f32 %v401, %v516
    %v524 = vadd.f32 %v420, %v521
    %v525 = vsel %vm158, %v523, -inf
    %v526 = vrot.slane %v525, 4
    %v527 = vmax.f32 %v525, %v526
    %v528 = vrot.slane %v527, 2
    %v529 = vmax.f32 %v527, %v528
    %v530 = vrot.slane %v529, 1
    %v531 = vmax.f32 %v529, %v530
    %v532 = vsel %vm158, %v524, -inf
    %v533 = vrot.slane %v532, 4
    %v534 = vmax.f32 %v532, %v533
    %v535 = vrot.slane %v534, 2
    %v536 = vmax.f32 %v534, %v535
    %v537 = vrot.slane %v536, 1
    %v538 = vmax.f32 %v536, %v537
    %v539 = vsub.f32 %v523, %v531
    %v540 = vsub.f32 %v524, %v538
    %v541 = vmul.f32 %v539, 1.442695
    %v542 = vpow.pop %v541
    %v543 = vmul.f32 %v540, 1.442695
    %v544 = vpow.pop %v543
    %v545 = vsel %vm158, %v542, 0.0
    %v546 = vrot.slane %v545, 4
    %v547 = vadd.f32 %v545, %v546
    %v548 = vrot.slane %v547, 2
    %v549 = vadd.f32 %v547, %v548
    %v550 = vrot.slane %v549, 1
    %v551 = vadd.f32 %v549, %v550
    %v552 = vsel %vm158, %v544, 0.0
    %v553 = vrot.slane %v552, 4
    %v554 = vadd.f32 %v552, %v553
    %v555 = vrot.slane %v554, 2
    %v556 = vadd.f32 %v554, %v555
    %v557 = vrot.slane %v556, 1
    %v558 = vadd.f32 %v556, %v557
    %v559 = vrcp.pop %v551
    %v560 = vmul.f32 %v551, %v559
    %v561 = vsub.f32 1.0, %v560
    %v562 = vmul.f32 %v559, %v561
    %v563 = vadd.f32 %v559, %v562
    %vm564 = vweird.f32 %v551
    %vm565 = vweird.f32 %v559
    %vm566 = vmor %vm564, %vm565
    %v567 = vsel %vm566, %v559, %v563
    %v568 = vand.u32 2147483647, %v551
    %vm569 = vcmp.eq.f32.partialorder %v568, 8.507059e+37
    %v570 = vand.u32 %v551, 2147483648
    %v571 = vor.u32 1.1754944e-38, %v570
    %v572 = vsel %vm569, %v571, %v567
    %v573 = vmul.f32 %v542, %v572
    %v574 = vrcp.pop %v558
    %v575 = vmul.f32 %v558, %v574
    %v576 = vsub.f32 1.0, %v575
    %v577 = vmul.f32 %v574, %v576
    %v578 = vadd.f32 %v574, %v577
    %vm579 = vweird.f32 %v558
    %vm580 = vweird.f32 %v574
    %vm581 = vmor %vm579, %vm580
    %v582 = vsel %vm581, %v574, %v578
    %v583 = vand.u32 2147483647, %v558
    %vm584 = vcmp.eq.f32.partialorder %v583, 8.507059e+37
    %v585 = vand.u32 %v558, 2147483648
    %v586 = vor.u32 1.1754944e-38, %v585
    %v587 = vsel %vm584, %v586, %v582
    %v588 = vmul.f32 %v544, %v587
    %v589 = vpack.c.bf16 %v573, %v573
    %v590 = vpack.c.bf16 %v588, %v588
    %591 = vxpose.xlu0.c.b16.start [1/8] %v589, 128
    %592 = vxpose.xlu0.c.b16.cont [2/8] 0, 128
    %593 = vxpose.xlu0.c.b16.cont [3/8] 0, 128
    %594 = vxpose.xlu0.c.b16.cont [4/8] 0, 128
    %595 = vxpose.xlu0.c.b16.cont [5/8] 0, 128
    %596 = vxpose.xlu0.c.b16.cont [6/8] 0, 128
    %597 = vxpose.xlu0.c.b16.cont [7/8] 0, 128
    %598 = vxpose.xlu0.c.b16.end [8/8] 0, 128
    %v599 = vpop.trf.xlu0
    %v600 = vpop.trf.xlu0
    %v601 = vpop.trf.xlu0
    %v602 = vpop.trf.xlu0
    %v603 = vpop.trf.xlu0
    %v604 = vpop.trf.xlu0
    %v605 = vpop.trf.xlu0
    %v606 = vpop.trf.xlu0
    %v608 = vsel %vm158, %v599, 0
    %v610 = vsel %vm262, %v381, 0
    %612 = vmatpush.bf16.msra.mxu0 0
    %613 = vmatpush.bf16.msra.mxu0 0
    %614 = vmatpush.bf16.msra.mxu0 0
    %615 = vmatpush.bf16.msra.mxu0 0
    %616 = vmatpush.bf16.msra.mxu0 0
    %617 = vmatpush.bf16.msra.mxu0 0
    %618 = vmatpush.bf16.msra.mxu0 0
    %619 = vmatpush.bf16.msra.mxu0 %v610
    %620 = vmatmul.bf16.gmra.mxu0 %v608
    %v621 = vpop.f32.mrf.mxu0
    %v622 = vadd.f32 0.0, %v621
    %v623 = vpop.f32.mrf.mxu0
    %624 = vdwg.mxu0
    %625 = vxpose.xlu0.c.b16.start [1/8] %v590, 128
    %626 = vxpose.xlu0.c.b16.cont [2/8] 0, 128
    %627 = vxpose.xlu0.c.b16.cont [3/8] 0, 128
    %628 = vxpose.xlu0.c.b16.cont [4/8] 0, 128
    %629 = vxpose.xlu0.c.b16.cont [5/8] 0, 128
    %630 = vxpose.xlu0.c.b16.cont [6/8] 0, 128
    %631 = vxpose.xlu0.c.b16.cont [7/8] 0, 128
    %632 = vxpose.xlu0.c.b16.end [8/8] 0, 128
    %v633 = vpop.trf.xlu0
    %v634 = vpop.trf.xlu0
    %v635 = vpop.trf.xlu0
    %v636 = vpop.trf.xlu0
    %v637 = vpop.trf.xlu0
    %v638 = vpop.trf.xlu0
    %v639 = vpop.trf.xlu0
    %v640 = vpop.trf.xlu0
    %v642 = vsel %vm158, %v633, 0
    %v644 = vsel %vm262, %v382, 0
    %646 = vmatpush.bf16.msra.mxu0 0
    %647 = vmatpush.bf16.msra.mxu0 0
    %648 = vmatpush.bf16.msra.mxu0 0
    %649 = vmatpush.bf16.msra.mxu0 0
    %650 = vmatpush.bf16.msra.mxu0 0
    %651 = vmatpush.bf16.msra.mxu0 0
    %652 = vmatpush.bf16.msra.mxu0 0
    %653 = vmatpush.bf16.msra.mxu0 %v644
    %654 = vmatmul.bf16.gmra.mxu0 %v642
    %v655 = vpop.f32.mrf.mxu0
    %v656 = vadd.f32 0.0, %v655
    %v657 = vpop.f32.mrf.mxu0
    %658 = vdwg.mxu0
    %v659 = vsub.f32 %v377, %v490
    %v660 = vsub.f32 %v378, %v508
    %v661 = vsub.f32 %v379, %v622
    %v662 = vsub.f32 %v380, %v656
    %v663 = vmul.f32 %v377, %v490
    %v664 = vmul.f32 %v378, %v508
    %v665 = vmul.f32 %v379, %v622
    %v666 = vmul.f32 %v380, %v656
    %671 = vrot.lane.b32.xlu0 %v490, 32
    %v672 = vpop.permute.xlu0 %671
    %673 = vrot.lane.b32.xlu0 %v508, 32
    %v674 = vpop.permute.xlu0 %673
    %675 = vrot.lane.b32.xlu0 %v622, 32
    %v676 = vpop.permute.xlu0 %675
    %677 = vrot.lane.b32.xlu0 %v656, 32
    %v678 = vpop.permute.xlu0 %677
    %687 = vrot.lane.b32.xlu0 %v659, 64
    %v688 = vpop.permute.xlu0 %687
    %689 = vrot.lane.b32.xlu0 %v660, 64
    %v690 = vpop.permute.xlu0 %689
    %691 = vrot.lane.b32.xlu0 %v661, 64
    %v692 = vpop.permute.xlu0 %691
    %693 = vrot.lane.b32.xlu0 %v662, 64
    %v694 = vpop.permute.xlu0 %693
    %703 = vrot.lane.b32.xlu0 %v663, 96
    %v704 = vpop.permute.xlu0 %703
    %705 = vrot.lane.b32.xlu0 %v664, 96
    %v706 = vpop.permute.xlu0 %705
    %707 = vrot.lane.b32.xlu0 %v665, 96
    %v708 = vpop.permute.xlu0 %707
    %709 = vrot.lane.b32.xlu0 %v666, 96
    %v710 = vpop.permute.xlu0 %709
    %v715 = vsel %vm73, %v377, %v672
    %v716 = vsel %vm73, %v378, %v674
    %v717 = vsel %vm73, %v379, %v676
    %v718 = vsel %vm73, %v380, %v678
    %vm719 = vcmask 523264
    %v720 = vsel %vm719, %v715, %v688
    %v721 = vsel %vm719, %v716, %v690
    %v722 = vsel %vm719, %v717, %v692
    %v723 = vsel %vm719, %v718, %v694
    %vm724 = vcmask 785408
    %v725 = vsel %vm724, %v720, %v704
    %v726 = vsel %vm724, %v721, %v706
    %v727 = vsel %vm724, %v722, %v708
    %v728 = vsel %vm724, %v723, %v710
    %v729 = vld [vmem:[%s6] sm:$0xff]
    %v730 = vld [vmem:[%s6 + $0x8] sm:$0xff]
    %v731 = vld [vmem:[%s6 + $0x10] sm:$0xff]
    %v732 = vld [vmem:[%s6 + $0x18] sm:$0xff]
    %v733 = vld [vmem:[%s6 + $0x20] sm:$0xff]
    %v734 = vld [vmem:[%s6 + $0x28] sm:$0xff]
    %v735 = vld [vmem:[%s6 + $0x30] sm:$0xff]
    %v736 = vld [vmem:[%s6 + $0x38] sm:$0xff]
    %v737 = vld [vmem:[%s6 + $0x40] sm:$0xff]
    %v738 = vld [vmem:[%s6 + $0x48] sm:$0xff]
    %v739 = vld [vmem:[%s6 + $0x50] sm:$0xff]
    %v740 = vld [vmem:[%s6 + $0x58] sm:$0xff]
    %v741 = vld [vmem:[%s6 + $0x60] sm:$0xff]
    %v742 = vld [vmem:[%s6 + $0x68] sm:$0xff]
    %v743 = vld [vmem:[%s6 + $0x70] sm:$0xff]
    %v744 = vld [vmem:[%s6 + $0x78] sm:$0xff]
    %v745 = vpack.c.bf16 %v726, %v725
    %v746 = vpack.c.bf16 %v728, %v727
    %v747 = vpack.c.bf16 %v730, %v729
    %v748 = vpack.c.bf16 %v732, %v731
    %v749 = vpack.c.bf16 %v734, %v733
    %v750 = vpack.c.bf16 %v736, %v735
    %v751 = vpack.c.bf16 %v738, %v737
    %v752 = vpack.c.bf16 %v740, %v739
    %v753 = vpack.c.bf16 %v742, %v741
    %v754 = vpack.c.bf16 %v744, %v743
    %v755 = vld [vmem:[%s8] sm:$0x1]
    %v757 = vperm.slane %v755, 0
    %759 = vmatpush.bf16.msra.mxu0 %v754
    %760 = vmatpush.bf16.msra.mxu0 %v753
    %761 = vmatpush.bf16.msra.mxu0 %v752
    %762 = vmatpush.bf16.msra.mxu0 %v751
    %763 = vmatpush.bf16.msra.mxu0 %v750
    %764 = vmatpush.bf16.msra.mxu0 %v749
    %765 = vmatpush.bf16.msra.mxu0 %v748
    %766 = vmatpush.bf16.msra.mxu0 %v747
    %767 = vmatmul.bf16.gmra.mxu0 %v745
    %v768 = vpop.f32.mrf.mxu0
    %v769 = vadd.f32 %v757, %v768
    %v770 = vpop.f32.mrf.mxu0
    %v771 = vadd.f32 %v757, %v770
    %772 = vmatmul.bf16.gmra.mxu0 %v746
    %v773 = vpop.f32.mrf.mxu0
    %v774 = vadd.f32 %v757, %v773
    %v775 = vpop.f32.mrf.mxu0
    %v776 = vadd.f32 %v757, %v775
    %777 = vdwg.mxu0
    %v778 = vld [vmem:[%s9] sm:$0xff]
    %v779 = vld [vmem:[%s9 + $0x8] sm:$0xff]
    %v780 = vld [vmem:[%s9 + $0x10] sm:$0xff]
    %v781 = vld [vmem:[%s9 + $0x18] sm:$0xff]
    %v782 = vld [vmem:[%s9 + $0x20] sm:$0xff]
    %v783 = vld [vmem:[%s9 + $0x28] sm:$0xff]
    %v784 = vld [vmem:[%s9 + $0x30] sm:$0xff]
    %v785 = vld [vmem:[%s9 + $0x38] sm:$0xff]
    %v786 = vld [vmem:[%s9 + $0x40] sm:$0xff]
    %v787 = vld [vmem:[%s9 + $0x48] sm:$0xff]
    %v788 = vld [vmem:[%s9 + $0x50] sm:$0xff]
    %v789 = vld [vmem:[%s9 + $0x58] sm:$0xff]
    %v790 = vld [vmem:[%s9 + $0x60] sm:$0xff]
    %v791 = vld [vmem:[%s9 + $0x68] sm:$0xff]
    %v792 = vld [vmem:[%s9 + $0x70] sm:$0xff]
    %v793 = vld [vmem:[%s9 + $0x78] sm:$0xff]
    %v794 = vpack.c.bf16 %v779, %v778
    %v795 = vpack.c.bf16 %v781, %v780
    %v796 = vpack.c.bf16 %v783, %v782
    %v797 = vpack.c.bf16 %v785, %v784
    %v798 = vpack.c.bf16 %v787, %v786
    %v799 = vpack.c.bf16 %v789, %v788
    %v800 = vpack.c.bf16 %v791, %v790
    %v801 = vpack.c.bf16 %v793, %v792
    %v802 = vld [vmem:[%s11] sm:$0x1]
    %v804 = vperm.slane %v802, 0
    %806 = vmatpush.bf16.msra.mxu0 %v801
    %807 = vmatpush.bf16.msra.mxu0 %v800
    %808 = vmatpush.bf16.msra.mxu0 %v799
    %809 = vmatpush.bf16.msra.mxu0 %v798
    %810 = vmatpush.bf16.msra.mxu0 %v797
    %811 = vmatpush.bf16.msra.mxu0 %v796
    %812 = vmatpush.bf16.msra.mxu0 %v795
    %813 = vmatpush.bf16.msra.mxu0 %v794
    %814 = vmatmul.bf16.gmra.mxu0 %v745
    %v815 = vpop.f32.mrf.mxu0
    %v816 = vadd.f32 %v804, %v815
    %v817 = vpop.f32.mrf.mxu0
    %v818 = vadd.f32 %v804, %v817
    %819 = vmatmul.bf16.gmra.mxu0 %v746
    %v820 = vpop.f32.mrf.mxu0
    %v821 = vadd.f32 %v804, %v820
    %v822 = vpop.f32.mrf.mxu0
    %v823 = vadd.f32 %v804, %v822
    %824 = vdwg.mxu0
    %v825 = vld [vmem:[%s7] sm:$0xff]
    %v826 = vld [vmem:[%s7 + $0x8] sm:$0xff]
    %v827 = vld [vmem:[%s10] sm:$0xff]
    %v828 = vld [vmem:[%s10 + $0x8] sm:$0xff]
    %v829 = vld [vmem:[%s3] sm:$0xf]
    %v831 = vrot.slane %v771, 7
    %v834 = vrot.slane %v774, 6
    %v837 = vrot.slane %v776, 5
    %vm839 = vcmask 1040384
    %v840 = vsel %vm839, %v769, %v831
    %vm841 = vcmask 1041408
    %v842 = vsel %vm841, %v840, %v834
    %vm843 = vcmask 1042432
    %v844 = vsel %vm843, %v842, %v837
    %vm845 = vcmask 130048
    %v847 = vsel %vm845, 0.0, 0
    %849 = vmatpush.msra.mxu0 0.0
    %850 = vmatpush.msra.mxu0 0.0
    %851 = vmatpush.msra.mxu0 0.0
    %852 = vmatpush.msra.mxu0 0.0
    %853 = vmatpush.msra.mxu0 0.0
    %854 = vmatpush.msra.mxu0 0.0
    %855 = vmatpush.msra.mxu0 0.0
    %856 = vmatpush.msra.mxu0 0.0
    %857 = vmatpush.msra.mxu0 0.0
    %858 = vmatpush.msra.mxu0 0.0
    %859 = vmatpush.msra.mxu0 0.0
    %860 = vmatpush.msra.mxu0 0.0
    %861 = vmatpush.msra.mxu0 0.0
    %862 = vmatpush.msra.mxu0 0.0
    %863 = vmatpush.msra.mxu0 %v826
    %864 = vmatpush.msra.mxu0 %v825
    %865 = vmatmul.f32.gmra.mxu0 %v847
    %v866 = vpop.f32.mrf.mxu0
    %v867 = vadd.f32 0.0, %v866
    %868 = vdwg.mxu0
    %v869 = vadd.f32 %v844, %v867
    %v871 = vrot.slane %v816, 7
    %v874 = vrot.slane %v818, 6
    %v877 = vrot.slane %v821, 5
    %v880 = vrot.slane %v823, 4
    %v882 = vsel %vm839, %v871, %v874
    %v883 = vsel %vm841, %v882, %v877
    %v884 = vsel %vm843, %v883, %v880
    %885 = vmatpush.msra.mxu0 0.0
    %886 = vmatpush.msra.mxu0 0.0
    %887 = vmatpush.msra.mxu0 0.0
    %888 = vmatpush.msra.mxu0 0.0
    %889 = vmatpush.msra.mxu0 0.0
    %890 = vmatpush.msra.mxu0 0.0
    %891 = vmatpush.msra.mxu0 0.0
    %892 = vmatpush.msra.mxu0 0.0
    %893 = vmatpush.msra.mxu0 0.0
    %894 = vmatpush.msra.mxu0 0.0
    %895 = vmatpush.msra.mxu0 0.0
    %896 = vmatpush.msra.mxu0 0.0
    %897 = vmatpush.msra.mxu0 0.0
    %898 = vmatpush.msra.mxu0 0.0
    %899 = vmatpush.msra.mxu0 %v828
    %900 = vmatpush.msra.mxu0 %v827
    %901 = vmatmul.f32.gmra.mxu0 %v847
    %v902 = vpop.f32.mrf.mxu0
    %v903 = vadd.f32 0.0, %v902
    %904 = vdwg.mxu0
    %v905 = vadd.f32 %v884, %v903
    %v906 = vxor.u32 %v869, 2147483648
    %v907 = vmul.f32 %v906, 1.442695
    %v908 = vpow.pop %v907
    %v909 = vadd.f32 %v908, 1.0
    %v910 = vrcp.pop %v909
    %v911 = vmul.f32 %v909, %v910
    %v912 = vsub.f32 1.0, %v911
    %v913 = vmul.f32 %v910, %v912
    %v914 = vadd.f32 %v910, %v913
    %vm915 = vweird.f32 %v909
    %vm916 = vweird.f32 %v910
    %vm917 = vmor %vm915, %vm916
    %v918 = vsel %vm917, %v910, %v914
    %v919 = vand.u32 2147483647, %v909
    %vm920 = vcmp.eq.f32.partialorder %v919, 8.507059e+37
    %v921 = vand.u32 %v909, 2147483648
    %v922 = vor.u32 1.1754944e-38, %v921
    %v923 = vsel %vm920, %v922, %v918
    %v924 = vmul.f32 1.0, %v923
    %v925 = vtanh.pop %v869
    %v926 = vmul.f32 %v924, 0.0
    %928 = vrot.lane.b32.xlu0 %v925, 96
    %v929 = vpop.permute.xlu0 %928
    %v931 = vmul.f32 %v924, %v929
    %933 = vrot.lane.b32.xlu0 %v931, 16
    %v934 = vpop.permute.xlu0 %933
    %v936 = vadd.f32 %v926, %v934
    %v937 = vtanh.pop %v936
    %939 = vrot.lane.b32.xlu0 %v937, 32
    %v940 = vpop.permute.xlu0 %939
    %v942 = vmul.f32 %v924, %v940
    %v943 = vxor.u32 %v905, 2147483648
    %v944 = vmul.f32 %v943, 1.442695
    %v945 = vpow.pop %v944
    %v946 = vadd.f32 %v945, 1.0
    %v947 = vrcp.pop %v946
    %v948 = vmul.f32 %v946, %v947
    %v949 = vsub.f32 1.0, %v948
    %v950 = vmul.f32 %v947, %v949
    %v951 = vadd.f32 %v947, %v950
    %vm952 = vweird.f32 %v946
    %vm953 = vweird.f32 %v947
    %vm954 = vmor %vm952, %vm953
    %v955 = vsel %vm954, %v947, %v951
    %v956 = vand.u32 2147483647, %v946
    %vm957 = vcmp.eq.f32.partialorder %v956, 8.507059e+37
    %v958 = vand.u32 %v946, 2147483648
    %v959 = vor.u32 1.1754944e-38, %v958
    %v960 = vsel %vm957, %v959, %v955
    %v961 = vmul.f32 1.0, %v960
    %v962 = vtanh.pop %v905
    %v963 = vmul.f32 %v961, 0.0
    %965 = vrot.lane.b32.xlu0 %v962, 96
    %v966 = vpop.permute.xlu0 %965
    %v968 = vmul.f32 %v961, %v966
    %970 = vrot.lane.b32.xlu0 %v968, 16
    %v971 = vpop.permute.xlu0 %970
    %v973 = vadd.f32 %v963, %v971
    %v974 = vtanh.pop %v973
    %976 = vrot.lane.b32.xlu0 %v974, 32
    %v977 = vpop.permute.xlu0 %976
    %v979 = vmul.f32 %v961, %v977
    %981 = vset.pattern.permute.xlu0 0
    %982 = vperm.xlu0 %981, %v829
    %v983 = vpop.permute.xlu0 %982
    %v985 = vmul.f32 %v983, %v942
    %v986 = vsub.f32 1.0, %v829
    %988 = vset.pattern.permute.xlu0 0
    %989 = vperm.xlu0 %988, %v986
    %v990 = vpop.permute.xlu0 %989
    %v992 = vmul.f32 %v990, 0.0
    %v993 = vadd.f32 %v985, %v992
    %v994 = vmul.f32 %v983, %v936
    %v995 = vadd.f32 %v994, %v992
    %996 = vset.pattern.permute.xlu0 7
    %997 = vperm.xlu0 %996, %v829
    %v998 = vpop.permute.xlu0 %997
    %v1000 = vmul.f32 %v998, %v979
    %1001 = vset.pattern.permute.xlu0 7
    %1002 = vperm.xlu0 %1001, %v986
    %v1003 = vpop.permute.xlu0 %1002
    %v1005 = vmul.f32 %v1003, 0.0
    %v1006 = vadd.f32 %v1000, %v1005
    %v1007 = vmul.f32 %v998, %v973
    %v1008 = vadd.f32 %v1007, %v1005
    %v1009 = vadd.f32 %v993, 0.0
    %v1010 = vadd.f32 %v1006, 0.0
    %v1012 = vrot.slane %v769, 1
    %v1014 = vrot.slane %v774, 7
    %v1016 = vrot.slane %v776, 6
    %v1018 = vsel %vm839, %v1012, %v771
    %v1019 = vsel %vm841, %v1018, %v1014
    %v1020 = vsel %vm843, %v1019, %v1016
    %1022 = vrot.lane.b32.xlu0 %v993, 80
    %v1023 = vpop.permute.xlu0 %1022
    %v1024 = vsel %vm845, %v1023, 0
    %1026 = vmatpush.msra.mxu0 0.0
    %1027 = vmatpush.msra.mxu0 0.0
    %1028 = vmatpush.msra.mxu0 0.0
    %1029 = vmatpush.msra.mxu0 0.0
    %1030 = vmatpush.msra.mxu0 0.0
    %1031 = vmatpush.msra.mxu0 0.0
    %1032 = vmatpush.msra.mxu0 0.0
    %1033 = vmatpush.msra.mxu0 0.0
    %1034 = vmatpush.msra.mxu0 0.0
    %1035 = vmatpush.msra.mxu0 0.0
    %1036 = vmatpush.msra.mxu0 0.0
    %1037 = vmatpush.msra.mxu0 0.0
    %1038 = vmatpush.msra.mxu0 0.0
    %1039 = vmatpush.msra.mxu0 0.0
    %1040 = vmatpush.msra.mxu0 %v826
    %1041 = vmatpush.msra.mxu0 %v825
    %1042 = vmatmul.f32.gmra.mxu0 %v1024
    %v1043 = vpop.f32.mrf.mxu0
    %v1044 = vadd.f32 0.0, %v1043
    %1045 = vdwg.mxu0
    %v1046 = vadd.f32 %v1020, %v1044
    %v1047 = vrot.slane %v816, 6
    %v1049 = vrot.slane %v818, 5
    %v1051 = vrot.slane %v821, 4
    %v1053 = vrot.slane %v823, 3
    %v1055 = vsel %vm839, %v1047, %v1049
    %v1056 = vsel %vm841, %v1055, %v1051
    %v1057 = vsel %vm843, %v1056, %v1053
    %1059 = vrot.lane.b32.xlu0 %v1006, 80
    %v1060 = vpop.permute.xlu0 %1059
    %v1061 = vsel %vm845, %v1060, 0
    %1063 = vmatpush.msra.mxu0 0.0
    %1064 = vmatpush.msra.mxu0 0.0
    %1065 = vmatpush.msra.mxu0 0.0
    %1066 = vmatpush.msra.mxu0 0.0
    %1067 = vmatpush.msra.mxu0 0.0
    %1068 = vmatpush.msra.mxu0 0.0
    %1069 = vmatpush.msra.mxu0 0.0
    %1070 = vmatpush.msra.mxu0 0.0
    %1071 = vmatpush.msra.mxu0 0.0
    %1072 = vmatpush.msra.mxu0 0.0
    %1073 = vmatpush.msra.mxu0 0.0
    %1074 = vmatpush.msra.mxu0 0.0
    %1075 = vmatpush.msra.mxu0 0.0
    %1076 = vmatpush.msra.mxu0 0.0
    %1077 = vmatpush.msra.mxu0 %v828
    %1078 = vmatpush.msra.mxu0 %v827
    %1079 = vmatmul.f32.gmra.mxu0 %v1061
    %v1080 = vpop.f32.mrf.mxu0
    %v1081 = vadd.f32 0.0, %v1080
    %1082 = vdwg.mxu0
    %v1083 = vadd.f32 %v1057, %v1081
    %v1084 = vxor.u32 %v1046, 2147483648
    %v1085 = vmul.f32 %v1084, 1.442695
    %v1086 = vpow.pop %v1085
    %v1087 = vadd.f32 %v1086, 1.0
    %v1088 = vrcp.pop %v1087
    %v1089 = vmul.f32 %v1087, %v1088
    %v1090 = vsub.f32 1.0, %v1089
    %v1091 = vmul.f32 %v1088, %v1090
    %v1092 = vadd.f32 %v1088, %v1091
    %vm1093 = vweird.f32 %v1087
    %vm1094 = vweird.f32 %v1088
    %vm1095 = vmor %vm1093, %vm1094
    %v1096 = vsel %vm1095, %v1088, %v1092
    %v1097 = vand.u32 2147483647, %v1087
    %vm1098 = vcmp.eq.f32.partialorder %v1097, 8.507059e+37
    %v1099 = vand.u32 %v1087, 2147483648
    %v1100 = vor.u32 1.1754944e-38, %v1099
    %v1101 = vsel %vm1098, %v1100, %v1096
    %v1102 = vmul.f32 1.0, %v1101
    %v1103 = vtanh.pop %v1046
    %v1104 = vmul.f32 %v1102, %v995
    %1106 = vrot.lane.b32.xlu0 %v1103, 96
    %v1107 = vpop.permute.xlu0 %1106
    %v1109 = vmul.f32 %v1102, %v1107
    %1111 = vrot.lane.b32.xlu0 %v1109, 16
    %v1112 = vpop.permute.xlu0 %1111
    %v1114 = vadd.f32 %v1104, %v1112
    %v1115 = vtanh.pop %v1114
    %1117 = vrot.lane.b32.xlu0 %v1115, 32
    %v1118 = vpop.permute.xlu0 %1117
    %v1120 = vmul.f32 %v1102, %v1118
    %v1121 = vxor.u32 %v1083, 2147483648
    %v1122 = vmul.f32 %v1121, 1.442695
    %v1123 = vpow.pop %v1122
    %v1124 = vadd.f32 %v1123, 1.0
    %v1125 = vrcp.pop %v1124
    %v1126 = vmul.f32 %v1124, %v1125
    %v1127 = vsub.f32 1.0, %v1126
    %v1128 = vmul.f32 %v1125, %v1127
    %v1129 = vadd.f32 %v1125, %v1128
    %vm1130 = vweird.f32 %v1124
    %vm1131 = vweird.f32 %v1125
    %vm1132 = vmor %vm1130, %vm1131
    %v1133 = vsel %vm1132, %v1125, %v1129
    %v1134 = vand.u32 2147483647, %v1124
    %vm1135 = vcmp.eq.f32.partialorder %v1134, 8.507059e+37
    %v1136 = vand.u32 %v1124, 2147483648
    %v1137 = vor.u32 1.1754944e-38, %v1136
    %v1138 = vsel %vm1135, %v1137, %v1133
    %v1139 = vmul.f32 1.0, %v1138
    %v1140 = vtanh.pop %v1083
    %v1141 = vmul.f32 %v1139, %v1008
    %1143 = vrot.lane.b32.xlu0 %v1140, 96
    %v1144 = vpop.permute.xlu0 %1143
    %v1146 = vmul.f32 %v1139, %v1144
    %1148 = vrot.lane.b32.xlu0 %v1146, 16
    %v1149 = vpop.permute.xlu0 %1148
    %v1151 = vadd.f32 %v1141, %v1149
    %v1152 = vtanh.pop %v1151
    %1154 = vrot.lane.b32.xlu0 %v1152, 32
    %v1155 = vpop.permute.xlu0 %1154
    %v1157 = vmul.f32 %v1139, %v1155
    %1158 = vset.pattern.permute.xlu0 1
    %1159 = vperm.xlu0 %1158, %v829
    %v1160 = vpop.permute.xlu0 %1159
    %v1162 = vmul.f32 %v1160, %v1120
    %1163 = vset.pattern.permute.xlu0 1
    %1164 = vperm.xlu0 %1163, %v986
    %v1165 = vpop.permute.xlu0 %1164
    %v1167 = vmul.f32 %v1165, %v993
    %v1168 = vadd.f32 %v1162, %v1167
    %v1169 = vmul.f32 %v1160, %v1114
    %v1170 = vmul.f32 %v1165, %v995
    %v1171 = vadd.f32 %v1169, %v1170
    %1172 = vset.pattern.permute.xlu0 6
    %1173 = vperm.xlu0 %1172, %v829
    %v1174 = vpop.permute.xlu0 %1173
    %v1176 = vmul.f32 %v1174, %v1157
    %1177 = vset.pattern.permute.xlu0 6
    %1178 = vperm.xlu0 %1177, %v986
    %v1179 = vpop.permute.xlu0 %1178
    %v1181 = vmul.f32 %v1179, %v1006
    %v1182 = vadd.f32 %v1176, %v1181
    %v1183 = vmul.f32 %v1174, %v1151
    %v1184 = vmul.f32 %v1179, %v1008
    %v1185 = vadd.f32 %v1183, %v1184
    %v1186 = vadd.f32 %v1009, %v1168
    %v1187 = vadd.f32 %v1010, %v1182
    %v1188 = vmax.f32 %v993, %v1168
    %v1189 = vmax.f32 %v1006, %v1182
    %v1190 = vrot.slane %v769, 2
    %v1192 = vrot.slane %v771, 1
    %v1194 = vrot.slane %v776, 7
    %v1196 = vsel %vm839, %v1190, %v1192
    %v1197 = vsel %vm841, %v1196, %v774
    %v1198 = vsel %vm843, %v1197, %v1194
    %1200 = vrot.lane.b32.xlu0 %v1168, 80
    %v1201 = vpop.permute.xlu0 %1200
    %v1202 = vsel %vm845, %v1201, 0
    %1204 = vmatpush.msra.mxu0 0.0
    %1205 = vmatpush.msra.mxu0 0.0
    %1206 = vmatpush.msra.mxu0 0.0
    %1207 = vmatpush.msra.mxu0 0.0
    %1208 = vmatpush.msra.mxu0 0.0
    %1209 = vmatpush.msra.mxu0 0.0
    %1210 = vmatpush.msra.mxu0 0.0
    %1211 = vmatpush.msra.mxu0 0.0
    %1212 = vmatpush.msra.mxu0 0.0
    %1213 = vmatpush.msra.mxu0 0.0
    %1214 = vmatpush.msra.mxu0 0.0
    %1215 = vmatpush.msra.mxu0 0.0
    %1216 = vmatpush.msra.mxu0 0.0
    %1217 = vmatpush.msra.mxu0 0.0
    %1218 = vmatpush.msra.mxu0 %v826
    %1219 = vmatpush.msra.mxu0 %v825
    %1220 = vmatmul.f32.gmra.mxu0 %v1202
    %v1221 = vpop.f32.mrf.mxu0
    %v1222 = vadd.f32 0.0, %v1221
    %1223 = vdwg.mxu0
    %v1224 = vadd.f32 %v1198, %v1222
    %v1225 = vrot.slane %v816, 5
    %v1227 = vrot.slane %v818, 4
    %v1229 = vrot.slane %v821, 3
    %v1231 = vrot.slane %v823, 2
    %v1233 = vsel %vm839, %v1225, %v1227
    %v1234 = vsel %vm841, %v1233, %v1229
    %v1235 = vsel %vm843, %v1234, %v1231
    %1237 = vrot.lane.b32.xlu0 %v1182, 80
    %v1238 = vpop.permute.xlu0 %1237
    %v1239 = vsel %vm845, %v1238, 0
    %1241 = vmatpush.msra.mxu0 0.0
    %1242 = vmatpush.msra.mxu0 0.0
    %1243 = vmatpush.msra.mxu0 0.0
    %1244 = vmatpush.msra.mxu0 0.0
    %1245 = vmatpush.msra.mxu0 0.0
    %1246 = vmatpush.msra.mxu0 0.0
    %1247 = vmatpush.msra.mxu0 0.0
    %1248 = vmatpush.msra.mxu0 0.0
    %1249 = vmatpush.msra.mxu0 0.0
    %1250 = vmatpush.msra.mxu0 0.0
    %1251 = vmatpush.msra.mxu0 0.0
    %1252 = vmatpush.msra.mxu0 0.0
    %1253 = vmatpush.msra.mxu0 0.0
    %1254 = vmatpush.msra.mxu0 0.0
    %1255 = vmatpush.msra.mxu0 %v828
    %1256 = vmatpush.msra.mxu0 %v827
    %1257 = vmatmul.f32.gmra.mxu0 %v1239
    %v1258 = vpop.f32.mrf.mxu0
    %v1259 = vadd.f32 0.0, %v1258
    %1260 = vdwg.mxu0
    %v1261 = vadd.f32 %v1235, %v1259
    %v1262 = vxor.u32 %v1224, 2147483648
    %v1263 = vmul.f32 %v1262, 1.442695
    %v1264 = vpow.pop %v1263
    %v1265 = vadd.f32 %v1264, 1.0
    %v1266 = vrcp.pop %v1265
    %v1267 = vmul.f32 %v1265, %v1266
    %v1268 = vsub.f32 1.0, %v1267
    %v1269 = vmul.f32 %v1266, %v1268
    %v1270 = vadd.f32 %v1266, %v1269
    %vm1271 = vweird.f32 %v1265
    %vm1272 = vweird.f32 %v1266
    %vm1273 = vmor %vm1271, %vm1272
    %v1274 = vsel %vm1273, %v1266, %v1270
    %v1275 = vand.u32 2147483647, %v1265
    %vm1276 = vcmp.eq.f32.partialorder %v1275, 8.507059e+37
    %v1277 = vand.u32 %v1265, 2147483648
    %v1278 = vor.u32 1.1754944e-38, %v1277
    %v1279 = vsel %vm1276, %v1278, %v1274
    %v1280 = vmul.f32 1.0, %v1279
    %v1281 = vtanh.pop %v1224
    %v1282 = vmul.f32 %v1280, %v1171
    %1284 = vrot.lane.b32.xlu0 %v1281, 96
    %v1285 = vpop.permute.xlu0 %1284
    %v1287 = vmul.f32 %v1280, %v1285
    %1289 = vrot.lane.b32.xlu0 %v1287, 16
    %v1290 = vpop.permute.xlu0 %1289
    %v1292 = vadd.f32 %v1282, %v1290
    %v1293 = vtanh.pop %v1292
    %1295 = vrot.lane.b32.xlu0 %v1293, 32
    %v1296 = vpop.permute.xlu0 %1295
    %v1298 = vmul.f32 %v1280, %v1296
    %v1299 = vxor.u32 %v1261, 2147483648
    %v1300 = vmul.f32 %v1299, 1.442695
    %v1301 = vpow.pop %v1300
    %v1302 = vadd.f32 %v1301, 1.0
    %v1303 = vrcp.pop %v1302
    %v1304 = vmul.f32 %v1302, %v1303
    %v1305 = vsub.f32 1.0, %v1304
    %v1306 = vmul.f32 %v1303, %v1305
    %v1307 = vadd.f32 %v1303, %v1306
    %vm1308 = vweird.f32 %v1302
    %vm1309 = vweird.f32 %v1303
    %vm1310 = vmor %vm1308, %vm1309
    %v1311 = vsel %vm1310, %v1303, %v1307
    %v1312 = vand.u32 2147483647, %v1302
    %vm1313 = vcmp.eq.f32.partialorder %v1312, 8.507059e+37
    %v1314 = vand.u32 %v1302, 2147483648
    %v1315 = vor.u32 1.1754944e-38, %v1314
    %v1316 = vsel %vm1313, %v1315, %v1311
    %v1317 = vmul.f32 1.0, %v1316
    %v1318 = vtanh.pop %v1261
    %v1319 = vmul.f32 %v1317, %v1185
    %1321 = vrot.lane.b32.xlu0 %v1318, 96
    %v1322 = vpop.permute.xlu0 %1321
    %v1324 = vmul.f32 %v1317, %v1322
    %1326 = vrot.lane.b32.xlu0 %v1324, 16
    %v1327 = vpop.permute.xlu0 %1326
    %v1329 = vadd.f32 %v1319, %v1327
    %v1330 = vtanh.pop %v1329
    %1332 = vrot.lane.b32.xlu0 %v1330, 32
    %v1333 = vpop.permute.xlu0 %1332
    %v1335 = vmul.f32 %v1317, %v1333
    %1336 = vset.pattern.permute.xlu0 2
    %1337 = vperm.xlu0 %1336, %v829
    %v1338 = vpop.permute.xlu0 %1337
    %v1340 = vmul.f32 %v1338, %v1298
    %1341 = vset.pattern.permute.xlu0 2
    %1342 = vperm.xlu0 %1341, %v986
    %v1343 = vpop.permute.xlu0 %1342
    %v1345 = vmul.f32 %v1343, %v1168
    %v1346 = vadd.f32 %v1340, %v1345
    %v1347 = vmul.f32 %v1338, %v1292
    %v1348 = vmul.f32 %v1343, %v1171
    %v1349 = vadd.f32 %v1347, %v1348
    %1350 = vset.pattern.permute.xlu0 5
    %1351 = vperm.xlu0 %1350, %v829
    %v1352 = vpop.permute.xlu0 %1351
    %v1354 = vmul.f32 %v1352, %v1335
    %1355 = vset.pattern.permute.xlu0 5
    %1356 = vperm.xlu0 %1355, %v986
    %v1357 = vpop.permute.xlu0 %1356
    %v1359 = vmul.f32 %v1357, %v1182
    %v1360 = vadd.f32 %v1354, %v1359
    %v1361 = vmul.f32 %v1352, %v1329
    %v1362 = vmul.f32 %v1357, %v1185
    %v1363 = vadd.f32 %v1361, %v1362
    %v1364 = vadd.f32 %v1186, %v1346
    %v1365 = vadd.f32 %v1187, %v1360
    %v1366 = vmax.f32 %v1188, %v1346
    %v1367 = vmax.f32 %v1189, %v1360
    %v1368 = vrot.slane %v769, 3
    %v1370 = vrot.slane %v771, 2
    %v1372 = vrot.slane %v774, 1
    %v1374 = vsel %vm839, %v1368, %v1370
    %v1375 = vsel %vm841, %v1374, %v1372
    %v1376 = vsel %vm843, %v1375, %v776
    %1378 = vrot.lane.b32.xlu0 %v1346, 80
    %v1379 = vpop.permute.xlu0 %1378
    %v1380 = vsel %vm845, %v1379, 0
    %1382 = vmatpush.msra.mxu0 0.0
    %1383 = vmatpush.msra.mxu0 0.0
    %1384 = vmatpush.msra.mxu0 0.0
    %1385 = vmatpush.msra.mxu0 0.0
    %1386 = vmatpush.msra.mxu0 0.0
    %1387 = vmatpush.msra.mxu0 0.0
    %1388 = vmatpush.msra.mxu0 0.0
    %1389 = vmatpush.msra.mxu0 0.0
    %1390 = vmatpush.msra.mxu0 0.0
    %1391 = vmatpush.msra.mxu0 0.0
    %1392 = vmatpush.msra.mxu0 0.0
    %1393 = vmatpush.msra.mxu0 0.0
    %1394 = vmatpush.msra.mxu0 0.0
    %1395 = vmatpush.msra.mxu0 0.0
    %1396 = vmatpush.msra.mxu0 %v826
    %1397 = vmatpush.msra.mxu0 %v825
    %1398 = vmatmul.f32.gmra.mxu0 %v1380
    %v1399 = vpop.f32.mrf.mxu0
    %v1400 = vadd.f32 0.0, %v1399
    %1401 = vdwg.mxu0
    %v1402 = vadd.f32 %v1376, %v1400
    %v1403 = vrot.slane %v816, 4
    %v1405 = vrot.slane %v818, 3
    %v1407 = vrot.slane %v821, 2
    %v1409 = vrot.slane %v823, 1
    %v1411 = vsel %vm839, %v1403, %v1405
    %v1412 = vsel %vm841, %v1411, %v1407
    %v1413 = vsel %vm843, %v1412, %v1409
    %1415 = vrot.lane.b32.xlu0 %v1360, 80
    %v1416 = vpop.permute.xlu0 %1415
    %v1417 = vsel %vm845, %v1416, 0
    %1419 = vmatpush.msra.mxu0 0.0
    %1420 = vmatpush.msra.mxu0 0.0
    %1421 = vmatpush.msra.mxu0 0.0
    %1422 = vmatpush.msra.mxu0 0.0
    %1423 = vmatpush.msra.mxu0 0.0
    %1424 = vmatpush.msra.mxu0 0.0
    %1425 = vmatpush.msra.mxu0 0.0
    %1426 = vmatpush.msra.mxu0 0.0
    %1427 = vmatpush.msra.mxu0 0.0
    %1428 = vmatpush.msra.mxu0 0.0
    %1429 = vmatpush.msra.mxu0 0.0
    %1430 = vmatpush.msra.mxu0 0.0
    %1431 = vmatpush.msra.mxu0 0.0
    %1432 = vmatpush.msra.mxu0 0.0
    %1433 = vmatpush.msra.mxu0 %v828
    %1434 = vmatpush.msra.mxu0 %v827
    %1435 = vmatmul.f32.gmra.mxu0 %v1417
    %v1436 = vpop.f32.mrf.mxu0
    %v1437 = vadd.f32 0.0, %v1436
    %1438 = vdwg.mxu0
    %v1439 = vadd.f32 %v1413, %v1437
    %v1440 = vxor.u32 %v1402, 2147483648
    %v1441 = vmul.f32 %v1440, 1.442695
    %v1442 = vpow.pop %v1441
    %v1443 = vadd.f32 %v1442, 1.0
    %v1444 = vrcp.pop %v1443
    %v1445 = vmul.f32 %v1443, %v1444
    %v1446 = vsub.f32 1.0, %v1445
    %v1447 = vmul.f32 %v1444, %v1446
    %v1448 = vadd.f32 %v1444, %v1447
    %vm1449 = vweird.f32 %v1443
    %vm1450 = vweird.f32 %v1444
    %vm1451 = vmor %vm1449, %vm1450
    %v1452 = vsel %vm1451, %v1444, %v1448
    %v1453 = vand.u32 2147483647, %v1443
    %vm1454 = vcmp.eq.f32.partialorder %v1453, 8.507059e+37
    %v1455 = vand.u32 %v1443, 2147483648
    %v1456 = vor.u32 1.1754944e-38, %v1455
    %v1457 = vsel %vm1454, %v1456, %v1452
    %v1458 = vmul.f32 1.0, %v1457
    %v1459 = vtanh.pop %v1402
    %v1460 = vmul.f32 %v1458, %v1349
    %1462 = vrot.lane.b32.xlu0 %v1459, 96
    %v1463 = vpop.permute.xlu0 %1462
    %v1465 = vmul.f32 %v1458, %v1463
    %1467 = vrot.lane.b32.xlu0 %v1465, 16
    %v1468 = vpop.permute.xlu0 %1467
    %v1470 = vadd.f32 %v1460, %v1468
    %v1471 = vtanh.pop %v1470
    %1473 = vrot.lane.b32.xlu0 %v1471, 32
    %v1474 = vpop.permute.xlu0 %1473
    %v1476 = vmul.f32 %v1458, %v1474
    %v1477 = vxor.u32 %v1439, 2147483648
    %v1478 = vmul.f32 %v1477, 1.442695
    %v1479 = vpow.pop %v1478
    %v1480 = vadd.f32 %v1479, 1.0
    %v1481 = vrcp.pop %v1480
    %v1482 = vmul.f32 %v1480, %v1481
    %v1483 = vsub.f32 1.0, %v1482
    %v1484 = vmul.f32 %v1481, %v1483
    %v1485 = vadd.f32 %v1481, %v1484
    %vm1486 = vweird.f32 %v1480
    %vm1487 = vweird.f32 %v1481
    %vm1488 = vmor %vm1486, %vm1487
    %v1489 = vsel %vm1488, %v1481, %v1485
    %v1490 = vand.u32 2147483647, %v1480
    %vm1491 = vcmp.eq.f32.partialorder %v1490, 8.507059e+37
    %v1492 = vand.u32 %v1480, 2147483648
    %v1493 = vor.u32 1.1754944e-38, %v1492
    %v1494 = vsel %vm1491, %v1493, %v1489
    %v1495 = vmul.f32 1.0, %v1494
    %v1496 = vtanh.pop %v1439
    %v1497 = vmul.f32 %v1495, %v1363
    %1499 = vrot.lane.b32.xlu0 %v1496, 96
    %v1500 = vpop.permute.xlu0 %1499
    %v1502 = vmul.f32 %v1495, %v1500
    %1504 = vrot.lane.b32.xlu0 %v1502, 16
    %v1505 = vpop.permute.xlu0 %1504
    %v1507 = vadd.f32 %v1497, %v1505
    %v1508 = vtanh.pop %v1507
    %1510 = vrot.lane.b32.xlu0 %v1508, 32
    %v1511 = vpop.permute.xlu0 %1510
    %v1513 = vmul.f32 %v1495, %v1511
    %1514 = vset.pattern.permute.xlu0 3
    %1515 = vperm.xlu0 %1514, %v829
    %v1516 = vpop.permute.xlu0 %1515
    %v1518 = vmul.f32 %v1516, %v1476
    %1519 = vset.pattern.permute.xlu0 3
    %1520 = vperm.xlu0 %1519, %v986
    %v1521 = vpop.permute.xlu0 %1520
    %v1523 = vmul.f32 %v1521, %v1346
    %v1524 = vadd.f32 %v1518, %v1523
    %v1525 = vmul.f32 %v1516, %v1470
    %v1526 = vmul.f32 %v1521, %v1349
    %v1527 = vadd.f32 %v1525, %v1526
    %1528 = vset.pattern.permute.xlu0 4
    %1529 = vperm.xlu0 %1528, %v829
    %v1530 = vpop.permute.xlu0 %1529
    %v1532 = vmul.f32 %v1530, %v1513
    %1533 = vset.pattern.permute.xlu0 4
    %1534 = vperm.xlu0 %1533, %v986
    %v1535 = vpop.permute.xlu0 %1534
    %v1537 = vmul.f32 %v1535, %v1360
    %v1538 = vadd.f32 %v1532, %v1537
    %v1539 = vmul.f32 %v1530, %v1507
    %v1540 = vmul.f32 %v1535, %v1363
    %v1541 = vadd.f32 %v1539, %v1540
    %v1542 = vadd.f32 %v1364, %v1524
    %v1543 = vadd.f32 %v1365, %v1538
    %v1544 = vmax.f32 %v1366, %v1524
    %v1545 = vmax.f32 %v1367, %v1538
    %v1546 = vrot.slane %v769, 4
    %v1548 = vrot.slane %v771, 3
    %v1550 = vrot.slane %v774, 2
    %v1552 = vrot.slane %v776, 1
    %v1554 = vsel %vm839, %v1546, %v1548
    %v1555 = vsel %vm841, %v1554, %v1550
    %v1556 = vsel %vm843, %v1555, %v1552
    %1558 = vrot.lane.b32.xlu0 %v1524, 80
    %v1559 = vpop.permute.xlu0 %1558
    %v1560 = vsel %vm845, %v1559, 0
    %1562 = vmatpush.msra.mxu0 0.0
    %1563 = vmatpush.msra.mxu0 0.0
    %1564 = vmatpush.msra.mxu0 0.0
    %1565 = vmatpush.msra.mxu0 0.0
    %1566 = vmatpush.msra.mxu0 0.0
    %1567 = vmatpush.msra.mxu0 0.0
    %1568 = vmatpush.msra.mxu0 0.0
    %1569 = vmatpush.msra.mxu0 0.0
    %1570 = vmatpush.msra.mxu0 0.0
    %1571 = vmatpush.msra.mxu0 0.0
    %1572 = vmatpush.msra.mxu0 0.0
    %1573 = vmatpush.msra.mxu0 0.0
    %1574 = vmatpush.msra.mxu0 0.0
    %1575 = vmatpush.msra.mxu0 0.0
    %1576 = vmatpush.msra.mxu0 %v826
    %1577 = vmatpush.msra.mxu0 %v825
    %1578 = vmatmul.f32.gmra.mxu0 %v1560
    %v1579 = vpop.f32.mrf.mxu0
    %v1580 = vadd.f32 0.0, %v1579
    %1581 = vdwg.mxu0
    %v1582 = vadd.f32 %v1556, %v1580
    %v1583 = vrot.slane %v816, 3
    %v1585 = vrot.slane %v818, 2
    %v1587 = vrot.slane %v821, 1
    %v1589 = vsel %vm839, %v1583, %v1585
    %v1590 = vsel %vm841, %v1589, %v1587
    %v1591 = vsel %vm843, %v1590, %v823
    %1593 = vrot.lane.b32.xlu0 %v1538, 80
    %v1594 = vpop.permute.xlu0 %1593
    %v1595 = vsel %vm845, %v1594, 0
    %1597 = vmatpush.msra.mxu0 0.0
    %1598 = vmatpush.msra.mxu0 0.0
    %1599 = vmatpush.msra.mxu0 0.0
    %1600 = vmatpush.msra.mxu0 0.0
    %1601 = vmatpush.msra.mxu0 0.0
    %1602 = vmatpush.msra.mxu0 0.0
    %1603 = vmatpush.msra.mxu0 0.0
    %1604 = vmatpush.msra.mxu0 0.0
    %1605 = vmatpush.msra.mxu0 0.0
    %1606 = vmatpush.msra.mxu0 0.0
    %1607 = vmatpush.msra.mxu0 0.0
    %1608 = vmatpush.msra.mxu0 0.0
    %1609 = vmatpush.msra.mxu0 0.0
    %1610 = vmatpush.msra.mxu0 0.0
    %1611 = vmatpush.msra.mxu0 %v828
    %1612 = vmatpush.msra.mxu0 %v827
    %1613 = vmatmul.f32.gmra.mxu0 %v1595
    %v1614 = vpop.f32.mrf.mxu0
    %v1615 = vadd.f32 0.0, %v1614
    %1616 = vdwg.mxu0
    %v1617 = vadd.f32 %v1591, %v1615
    %v1618 = vxor.u32 %v1582, 2147483648
    %v1619 = vmul.f32 %v1618, 1.442695
    %v1620 = vpow.pop %v1619
    %v1621 = vadd.f32 %v1620, 1.0
    %v1622 = vrcp.pop %v1621
    %v1623 = vmul.f32 %v1621, %v1622
    %v1624 = vsub.f32 1.0, %v1623
    %v1625 = vmul.f32 %v1622, %v1624
    %v1626 = vadd.f32 %v1622, %v1625
    %vm1627 = vweird.f32 %v1621
    %vm1628 = vweird.f32 %v1622
    %vm1629 = vmor %vm1627, %vm1628
    %v1630 = vsel %vm1629, %v1622, %v1626
    %v1631 = vand.u32 2147483647, %v1621
    %vm1632 = vcmp.eq.f32.partialorder %v1631, 8.507059e+37
    %v1633 = vand.u32 %v1621, 2147483648
    %v1634 = vor.u32 1.1754944e-38, %v1633
    %v1635 = vsel %vm1632, %v1634, %v1630
    %v1636 = vmul.f32 1.0, %v1635
    %v1637 = vtanh.pop %v1582
    %v1638 = vmul.f32 %v1636, %v1527
    %1640 = vrot.lane.b32.xlu0 %v1637, 96
    %v1641 = vpop.permute.xlu0 %1640
    %v1643 = vmul.f32 %v1636, %v1641
    %1645 = vrot.lane.b32.xlu0 %v1643, 16
    %v1646 = vpop.permute.xlu0 %1645
    %v1648 = vadd.f32 %v1638, %v1646
    %v1649 = vtanh.pop %v1648
    %1651 = vrot.lane.b32.xlu0 %v1649, 32
    %v1652 = vpop.permute.xlu0 %1651
    %v1654 = vmul.f32 %v1636, %v1652
    %v1655 = vxor.u32 %v1617, 2147483648
    %v1656 = vmul.f32 %v1655, 1.442695
    %v1657 = vpow.pop %v1656
    %v1658 = vadd.f32 %v1657, 1.0
    %v1659 = vrcp.pop %v1658
    %v1660 = vmul.f32 %v1658, %v1659
    %v1661 = vsub.f32 1.0, %v1660
    %v1662 = vmul.f32 %v1659, %v1661
    %v1663 = vadd.f32 %v1659, %v1662
    %vm1664 = vweird.f32 %v1658
    %vm1665 = vweird.f32 %v1659
    %vm1666 = vmor %vm1664, %vm1665
    %v1667 = vsel %vm1666, %v1659, %v1663
    %v1668 = vand.u32 2147483647, %v1658
    %vm1669 = vcmp.eq.f32.partialorder %v1668, 8.507059e+37
    %v1670 = vand.u32 %v1658, 2147483648
    %v1671 = vor.u32 1.1754944e-38, %v1670
    %v1672 = vsel %vm1669, %v1671, %v1667
    %v1673 = vmul.f32 1.0, %v1672
    %v1674 = vtanh.pop %v1617
    %v1675 = vmul.f32 %v1673, %v1541
    %1677 = vrot.lane.b32.xlu0 %v1674, 96
    %v1678 = vpop.permute.xlu0 %1677
    %v1680 = vmul.f32 %v1673, %v1678
    %1682 = vrot.lane.b32.xlu0 %v1680, 16
    %v1683 = vpop.permute.xlu0 %1682
    %v1685 = vadd.f32 %v1675, %v1683
    %v1686 = vtanh.pop %v1685
    %1688 = vrot.lane.b32.xlu0 %v1686, 32
    %v1689 = vpop.permute.xlu0 %1688
    %v1691 = vmul.f32 %v1673, %v1689
    %v1692 = vmul.f32 %v1530, %v1654
    %v1693 = vmul.f32 %v1535, %v1524
    %v1694 = vadd.f32 %v1692, %v1693
    %v1695 = vmul.f32 %v1530, %v1648
    %v1696 = vmul.f32 %v1535, %v1527
    %v1697 = vadd.f32 %v1695, %v1696
    %v1698 = vmul.f32 %v1516, %v1691
    %v1699 = vmul.f32 %v1521, %v1538
    %v1700 = vadd.f32 %v1698, %v1699
    %v1701 = vmul.f32 %v1516, %v1685
    %v1702 = vmul.f32 %v1521, %v1541
    %v1703 = vadd.f32 %v1701, %v1702
    %v1704 = vadd.f32 %v1542, %v1694
    %v1705 = vadd.f32 %v1543, %v1700
    %v1706 = vmax.f32 %v1544, %v1694
    %v1707 = vmax.f32 %v1545, %v1700
    %v1708 = vrot.slane %v769, 5
    %v1710 = vrot.slane %v771, 4
    %v1712 = vrot.slane %v774, 3
    %v1714 = vrot.slane %v776, 2
    %v1716 = vsel %vm839, %v1708, %v1710
    %v1717 = vsel %vm841, %v1716, %v1712
    %v1718 = vsel %vm843, %v1717, %v1714
    %1720 = vrot.lane.b32.xlu0 %v1694, 80
    %v1721 = vpop.permute.xlu0 %1720
    %v1722 = vsel %vm845, %v1721, 0
    %1724 = vmatpush.msra.mxu0 0.0
    %1725 = vmatpush.msra.mxu0 0.0
    %1726 = vmatpush.msra.mxu0 0.0
    %1727 = vmatpush.msra.mxu0 0.0
    %1728 = vmatpush.msra.mxu0 0.0
    %1729 = vmatpush.msra.mxu0 0.0
    %1730 = vmatpush.msra.mxu0 0.0
    %1731 = vmatpush.msra.mxu0 0.0
    %1732 = vmatpush.msra.mxu0 0.0
    %1733 = vmatpush.msra.mxu0 0.0
    %1734 = vmatpush.msra.mxu0 0.0
    %1735 = vmatpush.msra.mxu0 0.0
    %1736 = vmatpush.msra.mxu0 0.0
    %1737 = vmatpush.msra.mxu0 0.0
    %1738 = vmatpush.msra.mxu0 %v826
    %1739 = vmatpush.msra.mxu0 %v825
    %1740 = vmatmul.f32.gmra.mxu0 %v1722
    %v1741 = vpop.f32.mrf.mxu0
    %v1742 = vadd.f32 0.0, %v1741
    %1743 = vdwg.mxu0
    %v1744 = vadd.f32 %v1718, %v1742
    %v1745 = vrot.slane %v816, 2
    %v1747 = vrot.slane %v818, 1
    %v1749 = vrot.slane %v823, 7
    %v1751 = vsel %vm839, %v1745, %v1747
    %v1752 = vsel %vm841, %v1751, %v821
    %v1753 = vsel %vm843, %v1752, %v1749
    %1755 = vrot.lane.b32.xlu0 %v1700, 80
    %v1756 = vpop.permute.xlu0 %1755
    %v1757 = vsel %vm845, %v1756, 0
    %1759 = vmatpush.msra.mxu0 0.0
    %1760 = vmatpush.msra.mxu0 0.0
    %1761 = vmatpush.msra.mxu0 0.0
    %1762 = vmatpush.msra.mxu0 0.0
    %1763 = vmatpush.msra.mxu0 0.0
    %1764 = vmatpush.msra.mxu0 0.0
    %1765 = vmatpush.msra.mxu0 0.0
    %1766 = vmatpush.msra.mxu0 0.0
    %1767 = vmatpush.msra.mxu0 0.0
    %1768 = vmatpush.msra.mxu0 0.0
    %1769 = vmatpush.msra.mxu0 0.0
    %1770 = vmatpush.msra.mxu0 0.0
    %1771 = vmatpush.msra.mxu0 0.0
    %1772 = vmatpush.msra.mxu0 0.0
    %1773 = vmatpush.msra.mxu0 %v828
    %1774 = vmatpush.msra.mxu0 %v827
    %1775 = vmatmul.f32.gmra.mxu0 %v1757
    %v1776 = vpop.f32.mrf.mxu0
    %v1777 = vadd.f32 0.0, %v1776
    %1778 = vdwg.mxu0
    %v1779 = vadd.f32 %v1753, %v1777
    %v1780 = vxor.u32 %v1744, 2147483648
    %v1781 = vmul.f32 %v1780, 1.442695
    %v1782 = vpow.pop %v1781
    %v1783 = vadd.f32 %v1782, 1.0
    %v1784 = vrcp.pop %v1783
    %v1785 = vmul.f32 %v1783, %v1784
    %v1786 = vsub.f32 1.0, %v1785
    %v1787 = vmul.f32 %v1784, %v1786
    %v1788 = vadd.f32 %v1784, %v1787
    %vm1789 = vweird.f32 %v1783
    %vm1790 = vweird.f32 %v1784
    %vm1791 = vmor %vm1789, %vm1790
    %v1792 = vsel %vm1791, %v1784, %v1788
    %v1793 = vand.u32 2147483647, %v1783
    %vm1794 = vcmp.eq.f32.partialorder %v1793, 8.507059e+37
    %v1795 = vand.u32 %v1783, 2147483648
    %v1796 = vor.u32 1.1754944e-38, %v1795
    %v1797 = vsel %vm1794, %v1796, %v1792
    %v1798 = vmul.f32 1.0, %v1797
    %v1799 = vtanh.pop %v1744
    %v1800 = vmul.f32 %v1798, %v1697
    %1802 = vrot.lane.b32.xlu0 %v1799, 96
    %v1803 = vpop.permute.xlu0 %1802
    %v1805 = vmul.f32 %v1798, %v1803
    %1807 = vrot.lane.b32.xlu0 %v1805, 16
    %v1808 = vpop.permute.xlu0 %1807
    %v1810 = vadd.f32 %v1800, %v1808
    %v1811 = vtanh.pop %v1810
    %1813 = vrot.lane.b32.xlu0 %v1811, 32
    %v1814 = vpop.permute.xlu0 %1813
    %v1816 = vmul.f32 %v1798, %v1814
    %v1817 = vxor.u32 %v1779, 2147483648
    %v1818 = vmul.f32 %v1817, 1.442695
    %v1819 = vpow.pop %v1818
    %v1820 = vadd.f32 %v1819, 1.0
    %v1821 = vrcp.pop %v1820
    %v1822 = vmul.f32 %v1820, %v1821
    %v1823 = vsub.f32 1.0, %v1822
    %v1824 = vmul.f32 %v1821, %v1823
    %v1825 = vadd.f32 %v1821, %v1824
    %vm1826 = vweird.f32 %v1820
    %vm1827 = vweird.f32 %v1821
    %vm1828 = vmor %vm1826, %vm1827
    %v1829 = vsel %vm1828, %v1821, %v1825
    %v1830 = vand.u32 2147483647, %v1820
    %vm1831 = vcmp.eq.f32.partialorder %v1830, 8.507059e+37
    %v1832 = vand.u32 %v1820, 2147483648
    %v1833 = vor.u32 1.1754944e-38, %v1832
    %v1834 = vsel %vm1831, %v1833, %v1829
    %v1835 = vmul.f32 1.0, %v1834
    %v1836 = vtanh.pop %v1779
    %v1837 = vmul.f32 %v1835, %v1703
    %1839 = vrot.lane.b32.xlu0 %v1836, 96
    %v1840 = vpop.permute.xlu0 %1839
    %v1842 = vmul.f32 %v1835, %v1840
    %1844 = vrot.lane.b32.xlu0 %v1842, 16
    %v1845 = vpop.permute.xlu0 %1844
    %v1847 = vadd.f32 %v1837, %v1845
    %v1848 = vtanh.pop %v1847
    %1850 = vrot.lane.b32.xlu0 %v1848, 32
    %v1851 = vpop.permute.xlu0 %1850
    %v1853 = vmul.f32 %v1835, %v1851
    %v1854 = vmul.f32 %v1352, %v1816
    %v1855 = vmul.f32 %v1357, %v1694
    %v1856 = vadd.f32 %v1854, %v1855
    %v1857 = vmul.f32 %v1352, %v1810
    %v1858 = vmul.f32 %v1357, %v1697
    %v1859 = vadd.f32 %v1857, %v1858
    %v1860 = vmul.f32 %v1338, %v1853
    %v1861 = vmul.f32 %v1343, %v1700
    %v1862 = vadd.f32 %v1860, %v1861
    %v1863 = vmul.f32 %v1338, %v1847
    %v1864 = vmul.f32 %v1343, %v1703
    %v1865 = vadd.f32 %v1863, %v1864
    %v1866 = vadd.f32 %v1704, %v1856
    %v1867 = vadd.f32 %v1705, %v1862
    %v1868 = vmax.f32 %v1706, %v1856
    %v1869 = vmax.f32 %v1707, %v1862
    %v1870 = vrot.slane %v769, 6
    %v1872 = vrot.slane %v771, 5
    %v1874 = vrot.slane %v774, 4
    %v1876 = vrot.slane %v776, 3
    %v1878 = vsel %vm839, %v1870, %v1872
    %v1879 = vsel %vm841, %v1878, %v1874
    %v1880 = vsel %vm843, %v1879, %v1876
    %1882 = vrot.lane.b32.xlu0 %v1856, 80
    %v1883 = vpop.permute.xlu0 %1882
    %v1884 = vsel %vm845, %v1883, 0
    %1886 = vmatpush.msra.mxu0 0.0
    %1887 = vmatpush.msra.mxu0 0.0
    %1888 = vmatpush.msra.mxu0 0.0
    %1889 = vmatpush.msra.mxu0 0.0
    %1890 = vmatpush.msra.mxu0 0.0
    %1891 = vmatpush.msra.mxu0 0.0
    %1892 = vmatpush.msra.mxu0 0.0
    %1893 = vmatpush.msra.mxu0 0.0
    %1894 = vmatpush.msra.mxu0 0.0
    %1895 = vmatpush.msra.mxu0 0.0
    %1896 = vmatpush.msra.mxu0 0.0
    %1897 = vmatpush.msra.mxu0 0.0
    %1898 = vmatpush.msra.mxu0 0.0
    %1899 = vmatpush.msra.mxu0 0.0
    %1900 = vmatpush.msra.mxu0 %v826
    %1901 = vmatpush.msra.mxu0 %v825
    %1902 = vmatmul.f32.gmra.mxu0 %v1884
    %v1903 = vpop.f32.mrf.mxu0
    %v1904 = vadd.f32 0.0, %v1903
    %1905 = vdwg.mxu0
    %v1906 = vadd.f32 %v1880, %v1904
    %v1907 = vrot.slane %v816, 1
    %v1909 = vrot.slane %v821, 7
    %v1911 = vrot.slane %v823, 6
    %v1913 = vsel %vm839, %v1907, %v818
    %v1914 = vsel %vm841, %v1913, %v1909
    %v1915 = vsel %vm843, %v1914, %v1911
    %1917 = vrot.lane.b32.xlu0 %v1862, 80
    %v1918 = vpop.permute.xlu0 %1917
    %v1919 = vsel %vm845, %v1918, 0
    %1921 = vmatpush.msra.mxu0 0.0
    %1922 = vmatpush.msra.mxu0 0.0
    %1923 = vmatpush.msra.mxu0 0.0
    %1924 = vmatpush.msra.mxu0 0.0
    %1925 = vmatpush.msra.mxu0 0.0
    %1926 = vmatpush.msra.mxu0 0.0
    %1927 = vmatpush.msra.mxu0 0.0
    %1928 = vmatpush.msra.mxu0 0.0
    %1929 = vmatpush.msra.mxu0 0.0
    %1930 = vmatpush.msra.mxu0 0.0
    %1931 = vmatpush.msra.mxu0 0.0
    %1932 = vmatpush.msra.mxu0 0.0
    %1933 = vmatpush.msra.mxu0 0.0
    %1934 = vmatpush.msra.mxu0 0.0
    %1935 = vmatpush.msra.mxu0 %v828
    %1936 = vmatpush.msra.mxu0 %v827
    %1937 = vmatmul.f32.gmra.mxu0 %v1919
    %v1938 = vpop.f32.mrf.mxu0
    %v1939 = vadd.f32 0.0, %v1938
    %1940 = vdwg.mxu0
    %v1941 = vadd.f32 %v1915, %v1939
    %v1942 = vxor.u32 %v1906, 2147483648
    %v1943 = vmul.f32 %v1942, 1.442695
    %v1944 = vpow.pop %v1943
    %v1945 = vadd.f32 %v1944, 1.0
    %v1946 = vrcp.pop %v1945
    %v1947 = vmul.f32 %v1945, %v1946
    %v1948 = vsub.f32 1.0, %v1947
    %v1949 = vmul.f32 %v1946, %v1948
    %v1950 = vadd.f32 %v1946, %v1949
    %vm1951 = vweird.f32 %v1945
    %vm1952 = vweird.f32 %v1946
    %vm1953 = vmor %vm1951, %vm1952
    %v1954 = vsel %vm1953, %v1946, %v1950
    %v1955 = vand.u32 2147483647, %v1945
    %vm1956 = vcmp.eq.f32.partialorder %v1955, 8.507059e+37
    %v1957 = vand.u32 %v1945, 2147483648
    %v1958 = vor.u32 1.1754944e-38, %v1957
    %v1959 = vsel %vm1956, %v1958, %v1954
    %v1960 = vmul.f32 1.0, %v1959
    %v1961 = vtanh.pop %v1906
    %v1962 = vmul.f32 %v1960, %v1859
    %1964 = vrot.lane.b32.xlu0 %v1961, 96
    %v1965 = vpop.permute.xlu0 %1964
    %v1967 = vmul.f32 %v1960, %v1965
    %1969 = vrot.lane.b32.xlu0 %v1967, 16
    %v1970 = vpop.permute.xlu0 %1969
    %v1972 = vadd.f32 %v1962, %v1970
    %v1973 = vtanh.pop %v1972
    %1975 = vrot.lane.b32.xlu0 %v1973, 32
    %v1976 = vpop.permute.xlu0 %1975
    %v1978 = vmul.f32 %v1960, %v1976
    %v1979 = vxor.u32 %v1941, 2147483648
    %v1980 = vmul.f32 %v1979, 1.442695
    %v1981 = vpow.pop %v1980
    %v1982 = vadd.f32 %v1981, 1.0
    %v1983 = vrcp.pop %v1982
    %v1984 = vmul.f32 %v1982, %v1983
    %v1985 = vsub.f32 1.0, %v1984
    %v1986 = vmul.f32 %v1983, %v1985
    %v1987 = vadd.f32 %v1983, %v1986
    %vm1988 = vweird.f32 %v1982
    %vm1989 = vweird.f32 %v1983
    %vm1990 = vmor %vm1988, %vm1989
    %v1991 = vsel %vm1990, %v1983, %v1987
    %v1992 = vand.u32 2147483647, %v1982
    %vm1993 = vcmp.eq.f32.partialorder %v1992, 8.507059e+37
    %v1994 = vand.u32 %v1982, 2147483648
    %v1995 = vor.u32 1.1754944e-38, %v1994
    %v1996 = vsel %vm1993, %v1995, %v1991
    %v1997 = vmul.f32 1.0, %v1996
    %v1998 = vtanh.pop %v1941
    %v1999 = vmul.f32 %v1997, %v1865
    %2001 = vrot.lane.b32.xlu0 %v1998, 96
    %v2002 = vpop.permute.xlu0 %2001
    %v2004 = vmul.f32 %v1997, %v2002
    %2006 = vrot.lane.b32.xlu0 %v2004, 16
    %v2007 = vpop.permute.xlu0 %2006
    %v2009 = vadd.f32 %v1999, %v2007
    %v2010 = vtanh.pop %v2009
    %2012 = vrot.lane.b32.xlu0 %v2010, 32
    %v2013 = vpop.permute.xlu0 %2012
    %v2015 = vmul.f32 %v1997, %v2013
    %v2016 = vmul.f32 %v1174, %v1978
    %v2017 = vmul.f32 %v1179, %v1856
    %v2018 = vadd.f32 %v2016, %v2017
    %v2019 = vmul.f32 %v1174, %v1972
    %v2020 = vmul.f32 %v1179, %v1859
    %v2021 = vadd.f32 %v2019, %v2020
    %v2022 = vmul.f32 %v1160, %v2015
    %v2023 = vmul.f32 %v1165, %v1862
    %v2024 = vadd.f32 %v2022, %v2023
    %v2025 = vmul.f32 %v1160, %v2009
    %v2026 = vmul.f32 %v1165, %v1865
    %v2027 = vadd.f32 %v2025, %v2026
    %v2028 = vadd.f32 %v1866, %v2018
    %v2029 = vadd.f32 %v1867, %v2024
    %v2030 = vmax.f32 %v1868, %v2018
    %v2031 = vmax.f32 %v1869, %v2024
    %v2032 = vrot.slane %v769, 7
    %v2034 = vrot.slane %v771, 6
    %v2036 = vrot.slane %v774, 5
    %v2038 = vrot.slane %v776, 4
    %v2040 = vsel %vm839, %v2032, %v2034
    %v2041 = vsel %vm841, %v2040, %v2036
    %v2042 = vsel %vm843, %v2041, %v2038
    %2044 = vrot.lane.b32.xlu0 %v2018, 80
    %v2045 = vpop.permute.xlu0 %2044
    %v2046 = vsel %vm845, %v2045, 0
    %2048 = vmatpush.msra.mxu0 0.0
    %2049 = vmatpush.msra.mxu0 0.0
    %2050 = vmatpush.msra.mxu0 0.0
    %2051 = vmatpush.msra.mxu0 0.0
    %2052 = vmatpush.msra.mxu0 0.0
    %2053 = vmatpush.msra.mxu0 0.0
    %2054 = vmatpush.msra.mxu0 0.0
    %2055 = vmatpush.msra.mxu0 0.0
    %2056 = vmatpush.msra.mxu0 0.0
    %2057 = vmatpush.msra.mxu0 0.0
    %2058 = vmatpush.msra.mxu0 0.0
    %2059 = vmatpush.msra.mxu0 0.0
    %2060 = vmatpush.msra.mxu0 0.0
    %2061 = vmatpush.msra.mxu0 0.0
    %2062 = vmatpush.msra.mxu0 %v826
    %2063 = vmatpush.msra.mxu0 %v825
    %2064 = vmatmul.f32.gmra.mxu0 %v2046
    %v2065 = vpop.f32.mrf.mxu0
    %v2066 = vadd.f32 0.0, %v2065
    %2067 = vdwg.mxu0
    %v2068 = vadd.f32 %v2042, %v2066
    %v2069 = vrot.slane %v818, 7
    %v2071 = vrot.slane %v821, 6
    %v2073 = vrot.slane %v823, 5
    %v2075 = vsel %vm839, %v816, %v2069
    %v2076 = vsel %vm841, %v2075, %v2071
    %v2077 = vsel %vm843, %v2076, %v2073
    %2079 = vrot.lane.b32.xlu0 %v2024, 80
    %v2080 = vpop.permute.xlu0 %2079
    %v2081 = vsel %vm845, %v2080, 0
    %2083 = vmatpush.msra.mxu0 0.0
    %2084 = vmatpush.msra.mxu0 0.0
    %2085 = vmatpush.msra.mxu0 0.0
    %2086 = vmatpush.msra.mxu0 0.0
    %2087 = vmatpush.msra.mxu0 0.0
    %2088 = vmatpush.msra.mxu0 0.0
    %2089 = vmatpush.msra.mxu0 0.0
    %2090 = vmatpush.msra.mxu0 0.0
    %2091 = vmatpush.msra.mxu0 0.0
    %2092 = vmatpush.msra.mxu0 0.0
    %2093 = vmatpush.msra.mxu0 0.0
    %2094 = vmatpush.msra.mxu0 0.0
    %2095 = vmatpush.msra.mxu0 0.0
    %2096 = vmatpush.msra.mxu0 0.0
    %2097 = vmatpush.msra.mxu0 %v828
    %2098 = vmatpush.msra.mxu0 %v827
    %2099 = vmatmul.f32.gmra.mxu0 %v2081
    %v2100 = vpop.f32.mrf.mxu0
    %v2101 = vadd.f32 0.0, %v2100
    %2102 = vdwg.mxu0
    %v2103 = vadd.f32 %v2077, %v2101
    %v2104 = vxor.u32 %v2068, 2147483648
    %v2105 = vmul.f32 %v2104, 1.442695
    %v2106 = vpow.pop %v2105
    %v2107 = vadd.f32 %v2106, 1.0
    %v2108 = vrcp.pop %v2107
    %v2109 = vmul.f32 %v2107, %v2108
    %v2110 = vsub.f32 1.0, %v2109
    %v2111 = vmul.f32 %v2108, %v2110
    %v2112 = vadd.f32 %v2108, %v2111
    %vm2113 = vweird.f32 %v2107
    %vm2114 = vweird.f32 %v2108
    %vm2115 = vmor %vm2113, %vm2114
    %v2116 = vsel %vm2115, %v2108, %v2112
    %v2117 = vand.u32 2147483647, %v2107
    %vm2118 = vcmp.eq.f32.partialorder %v2117, 8.507059e+37
    %v2119 = vand.u32 %v2107, 2147483648
    %v2120 = vor.u32 1.1754944e-38, %v2119
    %v2121 = vsel %vm2118, %v2120, %v2116
    %v2122 = vmul.f32 1.0, %v2121
    %v2123 = vtanh.pop %v2068
    %v2124 = vmul.f32 %v2122, %v2021
    %2126 = vrot.lane.b32.xlu0 %v2123, 96
    %v2127 = vpop.permute.xlu0 %2126
    %v2129 = vmul.f32 %v2122, %v2127
    %2131 = vrot.lane.b32.xlu0 %v2129, 16
    %v2132 = vpop.permute.xlu0 %2131
    %v2134 = vadd.f32 %v2124, %v2132
    %v2135 = vtanh.pop %v2134
    %2137 = vrot.lane.b32.xlu0 %v2135, 32
    %v2138 = vpop.permute.xlu0 %2137
    %v2140 = vmul.f32 %v2122, %v2138
    %v2141 = vxor.u32 %v2103, 2147483648
    %v2142 = vmul.f32 %v2141, 1.442695
    %v2143 = vpow.pop %v2142
    %v2144 = vadd.f32 %v2143, 1.0
    %v2145 = vrcp.pop %v2144
    %v2146 = vmul.f32 %v2144, %v2145
    %v2147 = vsub.f32 1.0, %v2146
    %v2148 = vmul.f32 %v2145, %v2147
    %v2149 = vadd.f32 %v2145, %v2148
    %vm2150 = vweird.f32 %v2144
    %vm2151 = vweird.f32 %v2145
    %vm2152 = vmor %vm2150, %vm2151
    %v2153 = vsel %vm2152, %v2145, %v2149
    %v2154 = vand.u32 2147483647, %v2144
    %vm2155 = vcmp.eq.f32.partialorder %v2154, 8.507059e+37
    %v2156 = vand.u32 %v2144, 2147483648
    %v2157 = vor.u32 1.1754944e-38, %v2156
    %v2158 = vsel %vm2155, %v2157, %v2153
    %v2159 = vmul.f32 1.0, %v2158
    %v2160 = vtanh.pop %v2103
    %v2161 = vmul.f32 %v2159, %v2027
    %2163 = vrot.lane.b32.xlu0 %v2160, 96
    %v2164 = vpop.permute.xlu0 %2163
    %v2166 = vmul.f32 %v2159, %v2164
    %2168 = vrot.lane.b32.xlu0 %v2166, 16
    %v2169 = vpop.permute.xlu0 %2168
    %v2171 = vadd.f32 %v2161, %v2169
    %v2172 = vtanh.pop %v2171
    %2174 = vrot.lane.b32.xlu0 %v2172, 32
    %v2175 = vpop.permute.xlu0 %2174
    %v2177 = vmul.f32 %v2159, %v2175
    %v2178 = vmul.f32 %v998, %v2140
    %v2179 = vmul.f32 %v1003, %v2018
    %v2180 = vadd.f32 %v2178, %v2179
    %v2181 = vmul.f32 %v983, %v2177
    %v2182 = vmul.f32 %v990, %v2024
    %v2183 = vadd.f32 %v2181, %v2182
    %v2184 = vadd.f32 %v2028, %v2180
    %v2185 = vadd.f32 %v2029, %v2183
    %v2186 = vmax.f32 %v2030, %v2180
    %v2187 = vmax.f32 %v2031, %v2183
    %v2188 = vmul.f32 %v2184, 0.125
    %v2189 = vmul.f32 %v2185, 0.125
    %2191 = vrot.lane.b32.xlu0 %v2188, 80
    %v2192 = vpop.permute.xlu0 %2191
    %2195 = vrot.lane.b32.xlu0 %v2189, 96
    %v2196 = vpop.permute.xlu0 %2195
    %2199 = vrot.lane.b32.xlu0 %v2186, 112
    %v2200 = vpop.permute.xlu0 %2199
    %v2202 = vsel %vm845, %v2192, %v2196
    %v2203 = vsel %vm73, %v2202, %v2200
    %vm2204 = vcmask 392192
    %v2205 = vsel %vm2204, %v2203, %v2187
    %v2207 = vrot.slane %v2205, 2
    %2208 = vrot.lane.b32.xlu0 %v2207, 64
    %v2209 = vpop.permute.xlu0 %2208
    %v2211 = vsel %vm719, %v2205, %v2209
    %v2212 = vld [vmem:[%s12] sm:$0xff]
    %v2213 = vld [vmem:[%s12 + $0x8] sm:$0xff]
    %v2214 = vld [vmem:[%s12 + $0x10] sm:$0xff]
    %v2215 = vld [vmem:[%s12 + $0x18] sm:$0xff]
    %v2216 = vld [vmem:[%s12 + $0x20] sm:$0xff]
    %v2217 = vld [vmem:[%s12 + $0x28] sm:$0xff]
    %v2218 = vld [vmem:[%s12 + $0x30] sm:$0xff]
    %v2219 = vld [vmem:[%s12 + $0x38] sm:$0xff]
    %v2220 = vld [vmem:[%s12 + $0x40] sm:$0xff]
    %v2221 = vld [vmem:[%s12 + $0x48] sm:$0xff]
    %v2222 = vld [vmem:[%s12 + $0x50] sm:$0xff]
    %v2223 = vld [vmem:[%s12 + $0x58] sm:$0xff]
    %v2224 = vld [vmem:[%s12 + $0x60] sm:$0xff]
    %v2225 = vld [vmem:[%s12 + $0x68] sm:$0xff]
    %v2226 = vld [vmem:[%s12 + $0x70] sm:$0xff]
    %v2227 = vld [vmem:[%s12 + $0x78] sm:$0xff]
    %v2228 = vpack.c.bf16 %v2211, %v2211
    %v2229 = vpack.c.bf16 %v2213, %v2212
    %v2230 = vpack.c.bf16 %v2215, %v2214
    %v2231 = vpack.c.bf16 %v2217, %v2216
    %v2232 = vpack.c.bf16 %v2219, %v2218
    %v2233 = vpack.c.bf16 %v2221, %v2220
    %v2234 = vpack.c.bf16 %v2223, %v2222
    %v2235 = vpack.c.bf16 %v2225, %v2224
    %v2236 = vpack.c.bf16 %v2227, %v2226
    %v2237 = vld [vmem:[%s13] sm:$0x1]
    %v2239 = vperm.slane %v2237, 0
    %2241 = vmatpush.bf16.msra.mxu0 %v2236
    %2242 = vmatpush.bf16.msra.mxu0 %v2235
    %2243 = vmatpush.bf16.msra.mxu0 %v2234
    %2244 = vmatpush.bf16.msra.mxu0 %v2233
    %2245 = vmatpush.bf16.msra.mxu0 %v2232
    %2246 = vmatpush.bf16.msra.mxu0 %v2231
    %2247 = vmatpush.bf16.msra.mxu0 %v2230
    %2248 = vmatpush.bf16.msra.mxu0 %v2229
    %2249 = vmatmul.bf16.gmra.mxu0 %v2228
    %v2250 = vpop.f32.mrf.mxu0
    %v2251 = vadd.f32 %v2239, %v2250
    %v2252 = vpop.f32.mrf.mxu0
    %2253 = vdwg.mxu0
    %v2254 = vtanh.pop %v2251
    %v2255 = vld [vmem:[%s14] sm:$0xff]
    %v2256 = vld [vmem:[%s14 + $0x8] sm:$0xff]
    %v2257 = vld [vmem:[%s14 + $0x10] sm:$0xff]
    %v2258 = vld [vmem:[%s14 + $0x18] sm:$0xff]
    %v2259 = vpack.c.bf16 %v2254, %v2254
    %v2260 = vpack.c.bf16 %v2256, %v2255
    %v2261 = vpack.c.bf16 %v2258, %v2257
    %v2262 = vld [vmem:[%s15] sm:$0x1]
    %v2264 = vperm.slane %v2262, 0
    %v2267 = vsel %vm73, %v2259, 0
    %2269 = vmatpush.bf16.msra.mxu0 0
    %2270 = vmatpush.bf16.msra.mxu0 0
    %2271 = vmatpush.bf16.msra.mxu0 0
    %2272 = vmatpush.bf16.msra.mxu0 0
    %2273 = vmatpush.bf16.msra.mxu0 0
    %2274 = vmatpush.bf16.msra.mxu0 0
    %2275 = vmatpush.bf16.msra.mxu0 %v2261
    %2276 = vmatpush.bf16.msra.mxu0 %v2260
    %2277 = vmatmul.bf16.gmra.mxu0 %v2267
    %v2278 = vpop.f32.mrf.mxu0
    %v2279 = vadd.f32 %v2264, %v2278
    %v2280 = vpop.f32.mrf.mxu0
    %2281 = vdwg.mxu0
    %v2282 = vtanh.pop %v2279
    %v2283 = vld [vmem:[%s16] sm:$0xff]
    %v2284 = vld [vmem:[%s16 + $0x8] sm:$0xff]
    %v2285 = vld [vmem:[%s16 + $0x10] sm:$0xff]
    %v2286 = vld [vmem:[%s16 + $0x18] sm:$0xff]
    %v2287 = vpack.c.bf16 %v2282, %v2282
    %v2288 = vpack.c.bf16 %v2284, %v2283
    %v2289 = vpack.c.bf16 %v2286, %v2285
    %v2290 = vld [vmem:[%s17] sm:$0x1]
    %v2292 = vperm.slane %v2290, 0
    %v2295 = vsel %vm73, %v2287, 0
    %2297 = vmatpush.bf16.msra.mxu0 0
    %2298 = vmatpush.bf16.msra.mxu0 0
    %2299 = vmatpush.bf16.msra.mxu0 0
    %2300 = vmatpush.bf16.msra.mxu0 0
    %2301 = vmatpush.bf16.msra.mxu0 0
    %2302 = vmatpush.bf16.msra.mxu0 0
    %2303 = vmatpush.bf16.msra.mxu0 %v2289
    %2304 = vmatpush.bf16.msra.mxu0 %v2288
    %2305 = vmatmul.bf16.gmra.mxu0 %v2295
    %v2306 = vpop.f32.mrf.mxu0
    %v2307 = vadd.f32 %v2292, %v2306
    %v2308 = vpop.f32.mrf.mxu0
    %2309 = vdwg.mxu0
    %vm2310 = vcmask 25600
    %2311 = vst.msk [vmem:[#allocation2] sm:$0x3] %vm2310, %v2307
    // Predicated region
    $region74: #{sent_matcher_forward.1} parent=1 // pred_check
      _
    $region75: #{sent_matcher_forward.1} parent=1 // pred_check_branch
      %2313 = sbr.rel (0) target = $region77
    $region76: #{sent_matcher_forward.1} parent=1 // pred_region
      %2315 = vsyncadd [#allocation3], 0
      %s2317 = sshll.u32 [#allocation2], 4
      %s2318 = int_to_ptr.vmem [resolvable:$true] %s2317
      %s2319 = sshll.u32 %s18, 4
      %s2320 = int_to_ptr.hbm [resolvable:$true] %s2319
      %2322 = dma.vmem_to_hbm [thread:$0]  %s2318, 32, %s2320, [#allocation3]
    $region77: #{sent_matcher_forward.1} parent=1 // pred_fallthru
      _
    // Predicated region
    $region78: #{sent_matcher_forward.1} parent=1 // pred_check
      _
    $region79: #{sent_matcher_forward.1} parent=1 // pred_check_branch
      %2324 = sbr.rel (0) target = $region81
    $region80: #{sent_matcher_forward.1} parent=1 // pred_region
      %2326 = dma.done [#allocation3], 32
    $region81: #{sent_matcher_forward.1} parent=1 // pred_fallthru
      _
    %2327 = vsyncpa [#allocation3], 1

</llo_original>
